<compile_context>
chip_gen: v7x
topology: tpu7x:2x2x1
jax: 0.10.0
libtpu: 0.0.40
codegen_flags: <defaults>
</compile_context>

<pallas_src>
import functools

import jax
import jax.numpy as jnp
from jax import lax
from jax.experimental import pallas as pl
from jax.experimental.pallas import tpu as pltpu


def _pick_tile(n, cap):
    """Largest divisor of `n` that is a multiple of 128 and <= cap; else n."""
    if n <= cap:
        return n
    best = 0
    d = 128
    while d <= cap:
        if n % d == 0:
            best = d
        d += 128
    # TODO(synk): for large N with no multiple-of-128 divisor, pad the node axis
    # instead of falling back to a single full-size tile.
    return best if best > 0 else n


# ----------------------------------------------------------------------------
# Kernel 1: fused pairwise-distance + k-NN selection (no N x N HBM round trip)
# ----------------------------------------------------------------------------
def _knn_kernel(xt_ref, xc_ref, knn_ref, *, num_neighbors):
    # xt_ref : (1, C, RT)  lane-dense feature slab of this row tile (query nodes)
    # xc_ref : (1, C, N)   full channel-major features of this batch sample
    # knn_ref: (1, RT, K)  int32 — K nearest neighbours of each query node
    xt = xt_ref[0]                                    # (C, RT)
    xc = xc_ref[0]                                    # (C, N)
    rt = xt.shape[-1]
    n = xc.shape[-1]
    row0 = pl.program_id(1) * rt

    # gram[t, j] = <x_t, x_j>, contracting the (small) channel/sublane axis of
    # both lane-dense operands — no node-major copy of X is ever made.
    gram = lax.dot_general(xt, xc, (((0,), (0,)), ((), ())),
                           preferred_element_type=jnp.float32)       # (RT, N)
    sq_j = jnp.sum(xc * xc, axis=0, keepdims=True)                   # (1, N)
    # score = -||x_t - x_j||^2 + ||x_t||^2; the per-row constant ||x_t||^2 does
    # not change the per-row ordering (and sqrt is monotone), so it is dropped.
    s = 2.0 * gram - sq_j

    ri = lax.broadcasted_iota(jnp.int32, (rt, n), 0) + row0
    ci = lax.broadcasted_iota(jnp.int32, (rt, n), 1)
    neg = jnp.float32(-3.0e38)                        # finite "-inf" (NaN-safe)
    s = jnp.where(ri == ci, neg, s)                   # exclude self (diag = inf dist)

    cif = ci.astype(jnp.float32)                      # exact for N < 2**24
    big = jnp.float32(n)
    for m in range(num_neighbors):                    # K-pass max/argmax over lanes
        cur = jnp.max(s, axis=1, keepdims=True)                          # (RT, 1)
        idxf = jnp.min(jnp.where(s == cur, cif, big), axis=1, keepdims=True)
        knn_ref[0, :, m:m + 1] = idxf.astype(jnp.int32)
        s = jnp.where(cif == idxf, neg, s)            # knock out the picked column


def compute_knn(x_chan, k, *, temp_budget_bytes=16 << 20):
    """x_chan: (B, C, N) f32 -> (B, N, k) int32 nearest-neighbour indices."""
    B, C, N = x_chan.shape
    assert 0 < k < N, "k_neighbors must be < num_nodes"
    # ~4 live (RT, N) f32 temporaries in-kernel  ->  RT * N * 16 <= budget
    rt = _pick_tile(N, max(128, temp_budget_bytes // (16 * N)))
    # give v7x's two TensorCores >= 2 parallel grid steps even when B == 1
    if B * (N // rt) < 2 and rt % 256 == 0:
        rt //= 2
    grid = (B, N // rt)
    return pl.pallas_call(
        functools.partial(_knn_kernel, num_neighbors=k),
        out_shape=jax.ShapeDtypeStruct((B, N, k), jnp.int32),
        grid=grid,
        in_specs=[
            pl.BlockSpec((1, C, rt), lambda b, t: (b, 0, t)),
            pl.BlockSpec((1, C, N), lambda b, t: (b, 0, 0)),
        ],
        out_specs=pl.BlockSpec((1, rt, k), lambda b, t: (b, t, 0)),
        compiler_params=pltpu.CompilerParams(
            dimension_semantics=("parallel", "parallel"),
            vmem_limit_bytes=32 << 20),
    )(x_chan, x_chan)


# ----------------------------------------------------------------------------
# Kernel 2: GCN head — project, aggregate (column-tiled A^T), ReLU, BN, pool
# ----------------------------------------------------------------------------
def _gcn_head_kernel(xc_ref, knn_ref, w_ref, b_ref, scale_ref, shift_ref,
                     o_ref, xw_ref, acc_ref, *, inv_k, inv_n, use_bf16):
    # xc_ref   : (1, C, N)   channel-major node features of sample b
    # knn_ref  : (1, K, CT)  int32; knn_ref[0, m, i] = m-th neighbour of node i
    # w_ref    : (O, C) conv1x1 weight; b_ref/scale_ref/shift_ref: (O, 1)
    # o_ref    : (1, O, 1)   pooled output
    # xw_ref   : (O, N) f32 scratch — projected features W @ x (per sample)
    # acc_ref  : (O, 1) f32 scratch — running pooled sum over node-column tiles
    ti = pl.program_id(1)
    nt = pl.num_programs(1)

    @pl.when(ti == 0)
    def _():
        # project-then-aggregate: the tiny (O,C)@(C,N) projection runs once per
        # sample, so the big aggregation matmul below has a lane-dense (.,N) LHS.
        xw_ref[...] = jnp.dot(w_ref[...], xc_ref[0],
                              preferred_element_type=jnp.float32)
        acc_ref[...] = jnp.zeros_like(acc_ref)

    knn_t = knn_ref[0]                                # (K, CT)
    n = xw_ref.shape[-1]
    ct = knn_t.shape[-1]
    kk = knn_t.shape[0]

    # Build this column tile of A^T from the kNN index list (dense adjacency is
    # never materialised in HBM): a_t[j, i] = 1 iff j is a neighbour of node i.
    row_iota = lax.broadcasted_iota(jnp.int32, (n, ct), 0)
    adj_dtype = jnp.bfloat16 if use_bf16 else jnp.float32
    a_t = (knn_t[0:1, :] == row_iota).astype(adj_dtype)
    for m in range(1, kk):
        a_t = a_t + (knn_t[m:m + 1, :] == row_iota).astype(adj_dtype)

    xw = xw_ref[...]
    if use_bf16:   # v6e / v7x knob only (A^T 0/1 values are exact in bf16)
        xw = xw.astype(jnp.bfloat16)
    # every row degree is exactly k  ->  D^-1/2 A D^-1/2 == A / k
    z = jnp.dot(xw, a_t, preferred_element_type=jnp.float32)         # (O, CT)
    f = jnp.maximum(z * inv_k + b_ref[...], 0.0)      # conv1x1 bias + ReLU
    # TODO(synk): Dropout2d(0.2) is identity in eval mode; training RNG mask omitted.
    acc_ref[...] += jnp.sum(f, axis=1, keepdims=True)

    @pl.when(ti == nt - 1)
    def _():
        pooled = acc_ref[...] * inv_n                 # AdaptiveAvgPool2d((1,1))
        # BatchNorm2d (eval) is a per-channel affine -> commutes with the mean.
        o_ref[0] = pooled * scale_ref[...] + shift_ref[...]


def gcn_head(x_chan, knn_t, W, bias, bn_scale, bn_shift, k, *,
             use_bf16=False, temp_budget_bytes=16 << 20):
    B, C, N = x_chan.shape
    K = knn_t.shape[1]
    O = W.shape[0]
    # ~4 live (N, CT) temporaries for the A^T build  ->  N * CT * 16 <= budget
    ct = _pick_tile(N, max(128, temp_budget_bytes // (16 * N)))
    grid = (B, N // ct)
    out = pl.pallas_call(
        functools.partial(_gcn_head_kernel, inv_k=1.0 / k, inv_n=1.0 / N,
                          use_bf16=use_bf16),
        out_shape=jax.ShapeDtypeStruct((B, O, 1), jnp.float32),
        grid=grid,
        in_specs=[
            pl.BlockSpec((1, C, N), lambda b, t: (b, 0, 0)),
            pl.BlockSpec((1, K, ct), lambda b, t: (b, 0, t)),
            pl.BlockSpec((O, C), lambda b, t: (0, 0)),
            pl.BlockSpec((O, 1), lambda b, t: (0, 0)),
            pl.BlockSpec((O, 1), lambda b, t: (0, 0)),
            pl.BlockSpec((O, 1), lambda b, t: (0, 0)),
        ],
        out_specs=pl.BlockSpec((1, O, 1), lambda b, t: (b, 0, 0)),
        scratch_shapes=[pltpu.VMEM((O, N), jnp.float32),
                        pltpu.VMEM((O, 1), jnp.float32)],
        compiler_params=pltpu.CompilerParams(
            dimension_semantics=("parallel", "arbitrary"),
            vmem_limit_bytes=32 << 20),
    )(x_chan, knn_t, W, bias, bn_scale, bn_shift)
    return out.reshape(B, O)


# ----------------------------------------------------------------------------
# Wrapper: full BatchGCNLayer.forward
# ----------------------------------------------------------------------------
def batch_gcn_layer(X, W, bias, bn_scale, bn_shift, k, *, use_bf16=False):
    B, C, M, _ = X.shape
    N = M * M
    x_chan = X.reshape(B, C, N)                      # channel-major, N on lanes
    knn = compute_knn(x_chan, k)                     # (B, N, k) fused dist+top-k
    knn_t = jnp.transpose(knn, (0, 2, 1))            # tiny (B, k, N) int32 copy
    return gcn_head(x_chan, knn_t, W, bias, bn_scale, bn_shift, k,
                    use_bf16=use_bf16)               # (B, O)


# ----------------------------------------------------------------------------
if __name__ == "__main__":
    B, C, M, O, K = 2, 4, 16, 32, 8
    N = M * M

    key = jax.random.PRNGKey(0)
    kx, kw = jax.random.split(key)
    X = jax.random.normal(kx, (B, C, M, M), dtype=jnp.float32)

    # conv1x1: kaiming_normal_(mode='fan_out', nonlinearity='relu') -> std = sqrt(2/O)
    W = jax.random.normal(kw, (O, C), dtype=jnp.float32) * jnp.sqrt(2.0 / O)
    bias = jnp.zeros((O, 1), jnp.float32)            # conv bias init to 0

    # BatchNorm2d eval with fresh defaults: gamma=1, beta=0, mean=0, var=1, eps=1e-5
    eps = 1e-5
    gamma = jnp.ones((O,), jnp.float32)
    beta = jnp.zeros((O,), jnp.float32)
    rmean = jnp.zeros((O,), jnp.float32)
    rvar = jnp.ones((O,), jnp.float32)
    inv_std = gamma / jnp.sqrt(rvar + eps)
    bn_scale = inv_std.reshape(O, 1)
    bn_shift = (beta - rmean * inv_std).reshape(O, 1)

    out = batch_gcn_layer(X, W, bias, bn_scale, bn_shift, K)
    out = jax.block_until_ready(out)
    assert out.shape == (B, O) and out.dtype == jnp.float32

    # --- correctness checks against plain-JAX reference ----------------------
    x_chan = X.reshape(B, C, N)
    x_nodes = jnp.transpose(x_chan, (0, 2, 1))       # (B, N, C)

    sq = jnp.sum(x_nodes * x_nodes, axis=-1)
    d2 = sq[:, :, None] + sq[:, None, :] - 2.0 * jnp.einsum("bic,bjc->bij",
                                                            x_nodes, x_nodes)
    d = jnp.sqrt(jnp.maximum(d2, 0.0))
    d = jnp.where(jnp.eye(N, dtype=bool)[None], jnp.inf, d)
    _, knn_ref_idx = lax.top_k(-d, K)                # reference neighbour sets

    # fused kernel must pick the same neighbour sets (order within k irrelevant)
    knn_kernel = jax.block_until_ready(compute_knn(x_chan, K))
    assert bool(jnp.all(jnp.sort(knn_kernel, axis=-1) ==
                        jnp.sort(knn_ref_idx.astype(jnp.int32), axis=-1)))

    # end-to-end reference mirroring the PyTorch module
    A = jax.nn.one_hot(knn_ref_idx, N, dtype=jnp.float32).sum(axis=2)
    deg = A.sum(axis=-1)
    dinv = jnp.where(deg > 0, deg ** -0.5, 0.0)
    A_norm = dinv[:, :, None] * A * dinv[:, None, :]
    Z = jnp.einsum("bij,bjc->bic", A_norm, x_nodes)
    Fg = jnp.maximum(jnp.einsum("bic,oc->bio", Z, W) + bias[:, 0][None, None, :], 0.0)
    Fg = Fg * bn_scale[:, 0][None, None, :] + bn_shift[:, 0][None, None, :]
    out_ref = Fg.mean(axis=1)
    assert bool(jnp.allclose(out, out_ref, atol=2e-4, rtol=2e-4))

    print("KERNEL_OK")
</pallas_src>

<mosaic_0001>
module attributes {stable_mosaic.version = 11 : i64} {
  func.func @_knn_kernel(%arg0: i32, %arg1: i32, %arg2: memref<1x4x256xf32, #tpu.memory_space<vmem>>, %arg3: memref<1x4x256xf32, #tpu.memory_space<vmem>>, %arg4: memref<1x256x8xi32, #tpu.memory_space<vmem>>) attributes {dimension_semantics = [#tpu.dimension_semantics<parallel>, #tpu.dimension_semantics<parallel>], iteration_bounds = array<i64: 2, 1>, scalar_prefetch = 0 : i64, scratch_operands = 0 : i64, tpu.core_type = #tpu.core_type<tc>, window_params = [{transform_indices = @transform_0, window_bounds = array<i64: 1, 4, 256>}, {transform_indices = @transform_1, window_bounds = array<i64: 1, 4, 256>}, {transform_indices = @transform_2, window_bounds = array<i64: 1, 256, 8>}]} {
    %c0 = arith.constant 0 : index
    %c0_0 = arith.constant 0 : index
    %c0_1 = arith.constant 0 : index
    %0 = vector.load %arg2[%c0, %c0_0, %c0_1] : memref<1x4x256xf32, #tpu.memory_space<vmem>>, vector<1x4x256xf32>
    %1 = vector.shape_cast %0 : vector<1x4x256xf32> to vector<4x256xf32>
    %c0_2 = arith.constant 0 : index
    %c0_3 = arith.constant 0 : index
    %c0_4 = arith.constant 0 : index
    %2 = vector.load %arg3[%c0_2, %c0_3, %c0_4] : memref<1x4x256xf32, #tpu.memory_space<vmem>>, vector<1x4x256xf32>
    %3 = vector.shape_cast %2 : vector<1x4x256xf32> to vector<4x256xf32>
    %c256_i32 = arith.constant 256 : i32
    %4 = arith.muli %arg1, %c256_i32 : i32
    %cst = arith.constant dense<0.000000e+00> : vector<256x256xf32>
    %5 = tpu.matmul %1, %3, %cst {dimension_numbers = #tpu.dot_dimension_numbers<[0], [0], [1], [1], [0, 1, 1, 1], [], []>} : vector<4x256xf32>, vector<4x256xf32>, vector<256x256xf32> -> vector<256x256xf32>
    %6 = arith.mulf %3, %3 : vector<4x256xf32>
    %cst_5 = arith.constant dense<0.000000e+00> : vector<256xf32>
    %7 = vector.multi_reduction <add>, %6, %cst_5 [0] : vector<4x256xf32> to vector<256xf32>
    %8 = vector.shape_cast %7 : vector<256xf32> to vector<1x256xf32>
    %cst_6 = arith.constant 2.000000e+00 : f32
    %9 = vector.broadcast %cst_6 : f32 to vector<256x256xf32>
    %10 = arith.mulf %9, %5 : vector<256x256xf32>
    %11 = vector.broadcast %8 : vector<1x256xf32> to vector<256x256xf32>
    %12 = arith.subf %10, %11 : vector<256x256xf32>
    %13 = tpu.iota {dimensions = array<i32: 0>} : vector<256x256xi32>
    %14 = vector.broadcast %4 : i32 to vector<256x256xi32>
    %15 = arith.addi %13, %14 : vector<256x256xi32>
    %16 = tpu.iota {dimensions = array<i32: 1>} : vector<256x256xi32>
    %17 = arith.cmpi eq, %15, %16 : vector<256x256xi32>
    %cst_7 = arith.constant -3.000000e+38 : f32
    %18 = vector.broadcast %cst_7 : f32 to vector<256x256xf32>
    %19 = arith.select %17, %18, %12 : vector<256x256xi1>, vector<256x256xf32>
    %20 = arith.sitofp %16 : vector<256x256xi32> to vector<256x256xf32>
    %cst_8 = arith.constant dense<0xFF800000> : vector<256xf32>
    %21 = vector.multi_reduction <maximumf>, %19, %cst_8 [1] : vector<256x256xf32> to vector<256xf32>
    %22 = vector.shape_cast %21 : vector<256xf32> to vector<256x1xf32>
    %23 = vector.broadcast %22 : vector<256x1xf32> to vector<256x256xf32>
    %24 = arith.cmpf oeq, %19, %23 : vector<256x256xf32>
    %cst_9 = arith.constant 2.560000e+02 : f32
    %25 = vector.broadcast %cst_9 : f32 to vector<256x256xf32>
    %26 = arith.select %24, %20, %25 : vector<256x256xi1>, vector<256x256xf32>
    %cst_10 = arith.constant dense<0x7F800000> : vector<256xf32>
    %27 = vector.multi_reduction <minimumf>, %26, %cst_10 [1] : vector<256x256xf32> to vector<256xf32>
    %28 = vector.shape_cast %27 : vector<256xf32> to vector<256x1xf32>
    %29 = arith.fptosi %28 : vector<256x1xf32> to vector<256x1xi32>
    %c0_11 = arith.constant 0 : index
    %c0_12 = arith.constant 0 : index
    %c0_13 = arith.constant 0 : index
    %30 = vector.load %arg4[%c0_11, %c0_12, %c0_13] : memref<1x256x8xi32, #tpu.memory_space<vmem>>, vector<1x256x1xi32>
    %31 = vector.shape_cast %30 : vector<1x256x1xi32> to vector<256x1xi32>
    %32 = vector.shape_cast %29 : vector<256x1xi32> to vector<1x256x1xi32>
    tpu.vector_store %arg4[%c0_11, %c0_12, %c0_13], %32 {strides = array<i32>} : memref<1x256x8xi32, #tpu.memory_space<vmem>>, vector<1x256x1xi32>,
    %33 = vector.broadcast %28 : vector<256x1xf32> to vector<256x256xf32>
    %34 = arith.cmpf oeq, %20, %33 : vector<256x256xf32>
    %cst_14 = arith.constant -3.000000e+38 : f32
    %35 = vector.broadcast %cst_14 : f32 to vector<256x256xf32>
    %36 = arith.select %34, %35, %19 : vector<256x256xi1>, vector<256x256xf32>
    %cst_15 = arith.constant dense<0xFF800000> : vector<256xf32>
    %37 = vector.multi_reduction <maximumf>, %36, %cst_15 [1] : vector<256x256xf32> to vector<256xf32>
    %38 = vector.shape_cast %37 : vector<256xf32> to vector<256x1xf32>
    %39 = vector.broadcast %38 : vector<256x1xf32> to vector<256x256xf32>
    %40 = arith.cmpf oeq, %36, %39 : vector<256x256xf32>
    %cst_16 = arith.constant 2.560000e+02 : f32
    %41 = vector.broadcast %cst_16 : f32 to vector<256x256xf32>
    %42 = arith.select %40, %20, %41 : vector<256x256xi1>, vector<256x256xf32>
    %cst_17 = arith.constant dense<0x7F800000> : vector<256xf32>
    %43 = vector.multi_reduction <minimumf>, %42, %cst_17 [1] : vector<256x256xf32> to vector<256xf32>
    %44 = vector.shape_cast %43 : vector<256xf32> to vector<256x1xf32>
    %45 = arith.fptosi %44 : vector<256x1xf32> to vector<256x1xi32>
    %c0_18 = arith.constant 0 : index
    %c0_19 = arith.constant 0 : index
    %c1 = arith.constant 1 : index
    %46 = vector.load %arg4[%c0_18, %c0_19, %c1] : memref<1x256x8xi32, #tpu.memory_space<vmem>>, vector<1x256x1xi32>
    %47 = vector.shape_cast %46 : vector<1x256x1xi32> to vector<256x1xi32>
    %48 = vector.shape_cast %45 : vector<256x1xi32> to vector<1x256x1xi32>
    tpu.vector_store %arg4[%c0_18, %c0_19, %c1], %48 {strides = array<i32>} : memref<1x256x8xi32, #tpu.memory_space<vmem>>, vector<1x256x1xi32>,
    %49 = vector.broadcast %44 : vector<256x1xf32> to vector<256x256xf32>
    %50 = arith.cmpf oeq, %20, %49 : vector<256x256xf32>
    %cst_20 = arith.constant -3.000000e+38 : f32
    %51 = vector.broadcast %cst_20 : f32 to vector<256x256xf32>
    %52 = arith.select %50, %51, %36 : vector<256x256xi1>, vector<256x256xf32>
    %cst_21 = arith.constant dense<0xFF800000> : vector<256xf32>
    %53 = vector.multi_reduction <maximumf>, %52, %cst_21 [1] : vector<256x256xf32> to vector<256xf32>
    %54 = vector.shape_cast %53 : vector<256xf32> to vector<256x1xf32>
    %55 = vector.broadcast %54 : vector<256x1xf32> to vector<256x256xf32>
    %56 = arith.cmpf oeq, %52, %55 : vector<256x256xf32>
    %cst_22 = arith.constant 2.560000e+02 : f32
    %57 = vector.broadcast %cst_22 : f32 to vector<256x256xf32>
    %58 = arith.select %56, %20, %57 : vector<256x256xi1>, vector<256x256xf32>
    %cst_23 = arith.constant dense<0x7F800000> : vector<256xf32>
    %59 = vector.multi_reduction <minimumf>, %58, %cst_23 [1] : vector<256x256xf32> to vector<256xf32>
    %60 = vector.shape_cast %59 : vector<256xf32> to vector<256x1xf32>
    %61 = arith.fptosi %60 : vector<256x1xf32> to vector<256x1xi32>
    %c0_24 = arith.constant 0 : index
    %c0_25 = arith.constant 0 : index
    %c2 = arith.constant 2 : index
    %62 = vector.load %arg4[%c0_24, %c0_25, %c2] : memref<1x256x8xi32, #tpu.memory_space<vmem>>, vector<1x256x1xi32>
    %63 = vector.shape_cast %62 : vector<1x256x1xi32> to vector<256x1xi32>
    %64 = vector.shape_cast %61 : vector<256x1xi32> to vector<1x256x1xi32>
    tpu.vector_store %arg4[%c0_24, %c0_25, %c2], %64 {strides = array<i32>} : memref<1x256x8xi32, #tpu.memory_space<vmem>>, vector<1x256x1xi32>,
    %65 = vector.broadcast %60 : vector<256x1xf32> to vector<256x256xf32>
    %66 = arith.cmpf oeq, %20, %65 : vector<256x256xf32>
    %cst_26 = arith.constant -3.000000e+38 : f32
    %67 = vector.broadcast %cst_26 : f32 to vector<256x256xf32>
    %68 = arith.select %66, %67, %52 : vector<256x256xi1>, vector<256x256xf32>
    %cst_27 = arith.constant dense<0xFF800000> : vector<256xf32>
    %69 = vector.multi_reduction <maximumf>, %68, %cst_27 [1] : vector<256x256xf32> to vector<256xf32>
    %70 = vector.shape_cast %69 : vector<256xf32> to vector<256x1xf32>
    %71 = vector.broadcast %70 : vector<256x1xf32> to vector<256x256xf32>
    %72 = arith.cmpf oeq, %68, %71 : vector<256x256xf32>
    %cst_28 = arith.constant 2.560000e+02 : f32
    %73 = vector.broadcast %cst_28 : f32 to vector<256x256xf32>
    %74 = arith.select %72, %20, %73 : vector<256x256xi1>, vector<256x256xf32>
    %cst_29 = arith.constant dense<0x7F800000> : vector<256xf32>
    %75 = vector.multi_reduction <minimumf>, %74, %cst_29 [1] : vector<256x256xf32> to vector<256xf32>
    %76 = vector.shape_cast %75 : vector<256xf32> to vector<256x1xf32>
    %77 = arith.fptosi %76 : vector<256x1xf32> to vector<256x1xi32>
    %c0_30 = arith.constant 0 : index
    %c0_31 = arith.constant 0 : index
    %c3 = arith.constant 3 : index
    %78 = vector.load %arg4[%c0_30, %c0_31, %c3] : memref<1x256x8xi32, #tpu.memory_space<vmem>>, vector<1x256x1xi32>
    %79 = vector.shape_cast %78 : vector<1x256x1xi32> to vector<256x1xi32>
    %80 = vector.shape_cast %77 : vector<256x1xi32> to vector<1x256x1xi32>
    tpu.vector_store %arg4[%c0_30, %c0_31, %c3], %80 {strides = array<i32>} : memref<1x256x8xi32, #tpu.memory_space<vmem>>, vector<1x256x1xi32>,
    %81 = vector.broadcast %76 : vector<256x1xf32> to vector<256x256xf32>
    %82 = arith.cmpf oeq, %20, %81 : vector<256x256xf32>
    %cst_32 = arith.constant -3.000000e+38 : f32
    %83 = vector.broadcast %cst_32 : f32 to vector<256x256xf32>
    %84 = arith.select %82, %83, %68 : vector<256x256xi1>, vector<256x256xf32>
    %cst_33 = arith.constant dense<0xFF800000> : vector<256xf32>
    %85 = vector.multi_reduction <maximumf>, %84, %cst_33 [1] : vector<256x256xf32> to vector<256xf32>
    %86 = vector.shape_cast %85 : vector<256xf32> to vector<256x1xf32>
    %87 = vector.broadcast %86 : vector<256x1xf32> to vector<256x256xf32>
    %88 = arith.cmpf oeq, %84, %87 : vector<256x256xf32>
    %cst_34 = arith.constant 2.560000e+02 : f32
    %89 = vector.broadcast %cst_34 : f32 to vector<256x256xf32>
    %90 = arith.select %88, %20, %89 : vector<256x256xi1>, vector<256x256xf32>
    %cst_35 = arith.constant dense<0x7F800000> : vector<256xf32>
    %91 = vector.multi_reduction <minimumf>, %90, %cst_35 [1] : vector<256x256xf32> to vector<256xf32>
    %92 = vector.shape_cast %91 : vector<256xf32> to vector<256x1xf32>
    %93 = arith.fptosi %92 : vector<256x1xf32> to vector<256x1xi32>
    %c0_36 = arith.constant 0 : index
    %c0_37 = arith.constant 0 : index
    %c4 = arith.constant 4 : index
    %94 = vector.load %arg4[%c0_36, %c0_37, %c4] : memref<1x256x8xi32, #tpu.memory_space<vmem>>, vector<1x256x1xi32>
    %95 = vector.shape_cast %94 : vector<1x256x1xi32> to vector<256x1xi32>
    %96 = vector.shape_cast %93 : vector<256x1xi32> to vector<1x256x1xi32>
    tpu.vector_store %arg4[%c0_36, %c0_37, %c4], %96 {strides = array<i32>} : memref<1x256x8xi32, #tpu.memory_space<vmem>>, vector<1x256x1xi32>,
    %97 = vector.broadcast %92 : vector<256x1xf32> to vector<256x256xf32>
    %98 = arith.cmpf oeq, %20, %97 : vector<256x256xf32>
    %cst_38 = arith.constant -3.000000e+38 : f32
    %99 = vector.broadcast %cst_38 : f32 to vector<256x256xf32>
    %100 = arith.select %98, %99, %84 : vector<256x256xi1>, vector<256x256xf32>
    %cst_39 = arith.constant dense<0xFF800000> : vector<256xf32>
    %101 = vector.multi_reduction <maximumf>, %100, %cst_39 [1] : vector<256x256xf32> to vector<256xf32>
    %102 = vector.shape_cast %101 : vector<256xf32> to vector<256x1xf32>
    %103 = vector.broadcast %102 : vector<256x1xf32> to vector<256x256xf32>
    %104 = arith.cmpf oeq, %100, %103 : vector<256x256xf32>
    %cst_40 = arith.constant 2.560000e+02 : f32
    %105 = vector.broadcast %cst_40 : f32 to vector<256x256xf32>
    %106 = arith.select %104, %20, %105 : vector<256x256xi1>, vector<256x256xf32>
    %cst_41 = arith.constant dense<0x7F800000> : vector<256xf32>
    %107 = vector.multi_reduction <minimumf>, %106, %cst_41 [1] : vector<256x256xf32> to vector<256xf32>
    %108 = vector.shape_cast %107 : vector<256xf32> to vector<256x1xf32>
    %109 = arith.fptosi %108 : vector<256x1xf32> to vector<256x1xi32>
    %c0_42 = arith.constant 0 : index
    %c0_43 = arith.constant 0 : index
    %c5 = arith.constant 5 : index
    %110 = vector.load %arg4[%c0_42, %c0_43, %c5] : memref<1x256x8xi32, #tpu.memory_space<vmem>>, vector<1x256x1xi32>
    %111 = vector.shape_cast %110 : vector<1x256x1xi32> to vector<256x1xi32>
    %112 = vector.shape_cast %109 : vector<256x1xi32> to vector<1x256x1xi32>
    tpu.vector_store %arg4[%c0_42, %c0_43, %c5], %112 {strides = array<i32>} : memref<1x256x8xi32, #tpu.memory_space<vmem>>, vector<1x256x1xi32>,
    %113 = vector.broadcast %108 : vector<256x1xf32> to vector<256x256xf32>
    %114 = arith.cmpf oeq, %20, %113 : vector<256x256xf32>
    %cst_44 = arith.constant -3.000000e+38 : f32
    %115 = vector.broadcast %cst_44 : f32 to vector<256x256xf32>
    %116 = arith.select %114, %115, %100 : vector<256x256xi1>, vector<256x256xf32>
    %cst_45 = arith.constant dense<0xFF800000> : vector<256xf32>
    %117 = vector.multi_reduction <maximumf>, %116, %cst_45 [1] : vector<256x256xf32> to vector<256xf32>
    %118 = vector.shape_cast %117 : vector<256xf32> to vector<256x1xf32>
    %119 = vector.broadcast %118 : vector<256x1xf32> to vector<256x256xf32>
    %120 = arith.cmpf oeq, %116, %119 : vector<256x256xf32>
    %cst_46 = arith.constant 2.560000e+02 : f32
    %121 = vector.broadcast %cst_46 : f32 to vector<256x256xf32>
    %122 = arith.select %120, %20, %121 : vector<256x256xi1>, vector<256x256xf32>
    %cst_47 = arith.constant dense<0x7F800000> : vector<256xf32>
    %123 = vector.multi_reduction <minimumf>, %122, %cst_47 [1] : vector<256x256xf32> to vector<256xf32>
    %124 = vector.shape_cast %123 : vector<256xf32> to vector<256x1xf32>
    %125 = arith.fptosi %124 : vector<256x1xf32> to vector<256x1xi32>
    %c0_48 = arith.constant 0 : index
    %c0_49 = arith.constant 0 : index
    %c6 = arith.constant 6 : index
    %126 = vector.load %arg4[%c0_48, %c0_49, %c6] : memref<1x256x8xi32, #tpu.memory_space<vmem>>, vector<1x256x1xi32>
    %127 = vector.shape_cast %126 : vector<1x256x1xi32> to vector<256x1xi32>
    %128 = vector.shape_cast %125 : vector<256x1xi32> to vector<1x256x1xi32>
    tpu.vector_store %arg4[%c0_48, %c0_49, %c6], %128 {strides = array<i32>} : memref<1x256x8xi32, #tpu.memory_space<vmem>>, vector<1x256x1xi32>,
    %129 = vector.broadcast %124 : vector<256x1xf32> to vector<256x256xf32>
    %130 = arith.cmpf oeq, %20, %129 : vector<256x256xf32>
    %cst_50 = arith.constant -3.000000e+38 : f32
    %131 = vector.broadcast %cst_50 : f32 to vector<256x256xf32>
    %132 = arith.select %130, %131, %116 : vector<256x256xi1>, vector<256x256xf32>
    %cst_51 = arith.constant dense<0xFF800000> : vector<256xf32>
    %133 = vector.multi_reduction <maximumf>, %132, %cst_51 [1] : vector<256x256xf32> to vector<256xf32>
    %134 = vector.shape_cast %133 : vector<256xf32> to vector<256x1xf32>
    %135 = vector.broadcast %134 : vector<256x1xf32> to vector<256x256xf32>
    %136 = arith.cmpf oeq, %132, %135 : vector<256x256xf32>
    %cst_52 = arith.constant 2.560000e+02 : f32
    %137 = vector.broadcast %cst_52 : f32 to vector<256x256xf32>
    %138 = arith.select %136, %20, %137 : vector<256x256xi1>, vector<256x256xf32>
    %cst_53 = arith.constant dense<0x7F800000> : vector<256xf32>
    %139 = vector.multi_reduction <minimumf>, %138, %cst_53 [1] : vector<256x256xf32> to vector<256xf32>
    %140 = vector.shape_cast %139 : vector<256xf32> to vector<256x1xf32>
    %141 = arith.fptosi %140 : vector<256x1xf32> to vector<256x1xi32>
    %c0_54 = arith.constant 0 : index
    %c0_55 = arith.constant 0 : index
    %c7 = arith.constant 7 : index
    %142 = vector.load %arg4[%c0_54, %c0_55, %c7] : memref<1x256x8xi32, #tpu.memory_space<vmem>>, vector<1x256x1xi32>
    %143 = vector.shape_cast %142 : vector<1x256x1xi32> to vector<256x1xi32>
    %144 = vector.shape_cast %141 : vector<256x1xi32> to vector<1x256x1xi32>
    tpu.vector_store %arg4[%c0_54, %c0_55, %c7], %144 {strides = array<i32>} : memref<1x256x8xi32, #tpu.memory_space<vmem>>, vector<1x256x1xi32>,
    return
  }
  func.func @transform_0(%arg0: i32, %arg1: i32) -> (i32, i32, i32) {
    %c0_i32 = arith.constant 0 : i32
    %c0_i32_0 = arith.constant 0 : i32
    return %arg0, %c0_i32, %arg1 : i32, i32, i32
  }
  func.func @transform_1(%arg0: i32, %arg1: i32) -> (i32, i32, i32) {
    %c0_i32 = arith.constant 0 : i32
    %c0_i32_0 = arith.constant 0 : i32
    %c0_i32_1 = arith.constant 0 : i32
    return %arg0, %c0_i32, %c0_i32_0 : i32, i32, i32
  }
  func.func @transform_2(%arg0: i32, %arg1: i32) -> (i32, i32, i32) {
    %c0_i32 = arith.constant 0 : i32
    %c0_i32_0 = arith.constant 0 : i32
    return %arg0, %arg1, %c0_i32 : i32, i32, i32
  }
}

</mosaic_0001>

<llo_original>
// kernel: tpu_custom_call.1
$region0: #{tpu_custom_call.1}
  #allocation0 [shape = 'u32[]', space=smem, size = 0x4, offset = 0x4, fixed_abs, tag = 'smem constant byte address 0x4 - core index']
  #allocation1 [shape = 'u32[144,128]{1,0:T(1,128)}', space=vmem, size = 0x12000, scoped, tag = 'internal scratch']
  %s0 = inlined_call_operand.hbm [shape: f32[2,4,256], index: 0, kind: input, shape index: {}]
  %s1 = inlined_call_operand.hbm [shape: f32[2,4,256], index: 1, kind: input, shape index: {}]
  %s2 = inlined_call_operand.vmem [shape: s32[2,256,8], index: 2, kind: output, shape index: {}]
  %s3 = sld [smem:[#allocation0]]
  $region49: #{tpu_custom_call.1} parent=0
    _
  %s5 = ssub.s32 1, %s3
  %s6 = scalar_select 0, %s5, %s3
  $region1: #{tpu_custom_call.1} parent=0
    #allocation2 [shape = 'u8[8192]{0}', space=vmem, size = 0x2000, scoped, tag = 'input window, operand 0']
    #allocation3 [shape = 's32[2]{0}', space=sflag, size = 0x8, scoped, tag = 'scoped memory for tpu_custom_call.1']
    #allocation4 [shape = 'u8[8192]{0}', space=vmem, size = 0x2000, scoped, tag = 'input window, operand 1']
    #allocation5 [shape = 's32[2]{0}', space=sflag, size = 0x8, scoped, tag = 'scoped memory for tpu_custom_call.1']
    %7 = vsyncpa [#allocation3], 0
    %s8 = scalar_lea.sflag [#allocation3], 1
    %9 = vsyncpa %s8, 0
    %10 = vsyncpa [#allocation5], 0
    %s11 = scalar_lea.sflag [#allocation5], 1
    %12 = vsyncpa %s11, 0
    loop: start=0, step=1, limit=4
    $region2: #{tpu_custom_call.1} parent=1 // loop_pre_header
      _
    $region3: #{tpu_custom_call.1} parent=1 // loop_header
      %s14 = sphi 0, %s18
      %p15 = scmp.ge.s32.totalorder %s14, 4
      %s21 = sphi 0, %s33
      %s22 = sphi 0, %s29
      %s23 = sphi 0, %s21
      %s24 = sphi 0, %s22
      %s25 = sphi 0, %s23
      %s26 = sphi 0, %s24
      %s38 = sphi 0, %s40
      %s41 = sphi 0, %s38
      %s42 = sphi 0, %s41
      %s58 = sphi 0, %s42
      %s64 = sphi 0, %s66
      %s67 = sphi 0, %s64
      %s68 = sphi 0, %s67
      %s84 = sphi 0, %s68
      %s92 = sphi 0, %s94
      %s95 = sphi 0, %s92
      %s96 = sphi 0, %s95
      %s112 = sphi 0, %s96
    $region4: #{tpu_custom_call.1} parent=1 // loop_header_branch
      %17 = sbr.rel (%p15) target = $region8
    $region5: #{tpu_custom_call.1} parent=1 // loop_body
      %s19 = ssub.s32 %s14, 1
      %s20 = ssub.s32 %s14, 2
      %s27 = sadd.s32 1, %s22
      %p28 = scmp.ge.s32.totalorder %s27, 1
      %s29 = scalar_select %p28, 0, %s27
      %s30 = sadd.s32 1, %s21
      %s31 = scalar_select %p28, %s30, %s21
      %p32 = scmp.ge.s32.totalorder %s31, 2
      %s33 = scalar_select %p32, 0, %s31
      %s34 = ssub.s32 %s21, %s33
      %s35 = ssub.s32 %s22, %s29
      %s36 = sor.u32 %s34, %s35
      %p37 = scmp.eq.s32.totalorder %s36, 0
      %s39 = sadd.s32 %s38, 1
      %s40 = scalar_select %p37, %s38, %s39
      %p43 = pneg %p37
      %p44 = scmp.eq.s32.totalorder %s14, 1
      %p45 = por %p43, %p44
      %p46 = scmp.ne.s32.totalorder %s38, %s41
      %p47 = scmp.eq.s32.totalorder %s14, 0
      %p48 = por %p46, %p47
      %p49 = scmp.ne.s32.totalorder %s38, %s41
      %p50 = scmp.eq.s32.totalorder %s19, 1
      %p51 = por %p49, %p50
      %p52 = scmp.ne.s32.totalorder %s41, %s42
      %p53 = scmp.eq.s32.totalorder %s19, 0
      %p54 = por %p52, %p53
      %p55 = scmp.ne.s32.totalorder %s41, %s42
      %p56 = scmp.eq.s32.totalorder %s20, 1
      %p57 = por %p55, %p56
      %p59 = scmp.ne.s32.totalorder %s42, %s58
      %p60 = scmp.eq.s32.totalorder %s20, 0
      %p61 = por %p59, %p60
      %s62 = ssub.s32 %s21, %s33
      %p63 = scmp.eq.s32.totalorder %s62, 0
      %s65 = sadd.s32 %s64, 1
      %s66 = scalar_select %p63, %s64, %s65
      %p69 = pneg %p63
      %p70 = scmp.eq.s32.totalorder %s14, 1
      %p71 = por %p69, %p70
      %p72 = scmp.ne.s32.totalorder %s64, %s67
      %p73 = scmp.eq.s32.totalorder %s14, 0
      %p74 = por %p72, %p73
      %p75 = scmp.ne.s32.totalorder %s64, %s67
      %p76 = scmp.eq.s32.totalorder %s19, 1
      %p77 = por %p75, %p76
      %p78 = scmp.ne.s32.totalorder %s67, %s68
      %p79 = scmp.eq.s32.totalorder %s19, 0
      %p80 = por %p78, %p79
      %p81 = scmp.ne.s32.totalorder %s67, %s68
      %p82 = scmp.eq.s32.totalorder %s20, 1
      %p83 = por %p81, %p82
      %p85 = scmp.ne.s32.totalorder %s68, %s84
      %p86 = scmp.eq.s32.totalorder %s20, 0
      %p87 = por %p85, %p86
      %s88 = ssub.s32 %s21, %s33
      %s89 = ssub.s32 %s22, %s29
      %s90 = sor.u32 %s88, %s89
      %p91 = scmp.eq.s32.totalorder %s90, 0
      %s93 = sadd.s32 %s92, 1
      %s94 = scalar_select %p91, %s92, %s93
      %p97 = pneg %p91
      %p98 = scmp.eq.s32.totalorder %s14, 1
      %p99 = por %p97, %p98
      %p100 = scmp.ne.s32.totalorder %s92, %s95
      %p101 = scmp.eq.s32.totalorder %s14, 0
      %p102 = por %p100, %p101
      %p103 = scmp.ne.s32.totalorder %s92, %s95
      %p104 = scmp.eq.s32.totalorder %s19, 1
      %p105 = por %p103, %p104
      %p106 = scmp.ne.s32.totalorder %s95, %s96
      %p107 = scmp.eq.s32.totalorder %s19, 0
      %p108 = por %p106, %p107
      %p109 = scmp.ne.s32.totalorder %s95, %s96
      %p110 = scmp.eq.s32.totalorder %s20, 1
      %p111 = por %p109, %p110
      %p113 = scmp.ne.s32.totalorder %s96, %s112
      %p114 = scmp.eq.s32.totalorder %s20, 0
      %p115 = por %p113, %p114
      %p116 = scmp.le.s32.totalorder 1, %s14
      %p117 = scmp.lt.s32.totalorder %s14, 3
      %p118 = pnand %p116, %p117
      %p119 = pneg %p118
      // Predicated region
      $region9: #{tpu_custom_call.1} parent=5 // pred_check
        _
      $region10: #{tpu_custom_call.1} parent=5 // pred_check_branch
        %121 = sbr.rel (%p118) target = $region12
      $region11: #{tpu_custom_call.1} parent=5 // pred_region
        %s122 = ssub.s32 %s14, 1
      $region12: #{tpu_custom_call.1} parent=5 // pred_fallthru
        _
      %p123 = scmp.lt.s32.totalorder %s14, 2
      // Predicated region
      $region13: #{tpu_custom_call.1} parent=5 // pred_check
        %p124 = pneg %p123
      $region14: #{tpu_custom_call.1} parent=5 // pred_check_branch
        %126 = sbr.rel (%p124) target = $region16
      $region15: #{tpu_custom_call.1} parent=5 // pred_region
        // Predicated region
        $region17: #{tpu_custom_call.1} parent=15 // pred_check
          %p127 = pneg %p48
        $region18: #{tpu_custom_call.1} parent=15 // pred_check_branch
          %129 = sbr.rel (%p127) target = $region20
        $region19: #{tpu_custom_call.1} parent=15 // pred_region
          %s130 = sand.u32 %s38, 1
          %s131 = scalar_lea.sflag [#allocation3], %s130
          %s132 = sand.u32 %s38, 1
          %s133 = smul.addr %s132, 8
          %s134 = scalar_lea.vmem [#allocation2], %s133
          %s135 = smul.u32 2, %s22
          %s137 = ssub.s32 128, 128
          %138 = vsyncadd %s131, %s137
          %s139 = smul.addr %s21, 2
          %s140 = sadd.s32 %s135, %s139
          %s141 = smul.addr %s140, 64
          %s142 = scalar_lea.hbm %s0, %s141
          %s144 = sshll.u32 %s134, 4
          %s145 = int_to_ptr.vmem [resolvable:$true] %s144
          %147 = dma.hbm_to_vmem [thread:$0]  %s142, 128, %s145, %s131
        $region20: #{tpu_custom_call.1} parent=15 // pred_fallthru
          _
        // Predicated region
        $region21: #{tpu_custom_call.1} parent=15 // pred_check
          %p148 = pneg %p74
        $region22: #{tpu_custom_call.1} parent=15 // pred_check_branch
          %150 = sbr.rel (%p148) target = $region24
        $region23: #{tpu_custom_call.1} parent=15 // pred_region
          %s151 = sand.u32 %s64, 1
          %s152 = scalar_lea.sflag [#allocation5], %s151
          %s153 = sand.u32 %s64, 1
          %s154 = smul.addr %s153, 8
          %s155 = scalar_lea.vmem [#allocation4], %s154
          %s157 = ssub.s32 128, 128
          %158 = vsyncadd %s152, %s157
          %s159 = smul.addr %s21, 2
          %s160 = smul.addr %s159, 64
          %s161 = scalar_lea.hbm %s1, %s160
          %s163 = sshll.u32 %s155, 4
          %s164 = int_to_ptr.vmem [resolvable:$true] %s163
          %166 = dma.hbm_to_vmem [thread:$0]  %s161, 128, %s164, %s152
        $region24: #{tpu_custom_call.1} parent=15 // pred_fallthru
          _
      $region16: #{tpu_custom_call.1} parent=5 // pred_fallthru
        _
      %p167 = scmp.le.s32.totalorder 1, %s14
      %p168 = scmp.lt.s32.totalorder %s14, 3
      %p169 = pnand %p167, %p168
      %p170 = pneg %p169
      // Predicated region
      $region25: #{tpu_custom_call.1} parent=5 // pred_check
        _
      $region26: #{tpu_custom_call.1} parent=5 // pred_check_branch
        %172 = sbr.rel (%p169) target = $region28
      $region27: #{tpu_custom_call.1} parent=5 // pred_region
        %s173 = ssub.s32 %s14, 1
        %s174 = sand.u32 %s41, 1
        %s175 = scalar_lea.sflag [#allocation3], %s174
        %s176 = sand.u32 %s41, 1
        %s177 = smul.addr %s176, 8
        %s178 = scalar_lea.vmem [#allocation2], %s177
        // Predicated region
        $region29: #{tpu_custom_call.1} parent=27 // pred_check
          %p179 = pneg %p54
        $region30: #{tpu_custom_call.1} parent=27 // pred_check_branch
          %181 = sbr.rel (%p179) target = $region32
        $region31: #{tpu_custom_call.1} parent=27 // pred_region
          %182 = dma.done %s175, 128
        $region32: #{tpu_custom_call.1} parent=27 // pred_fallthru
          _
        %s183 = sand.u32 %s67, 1
        %s184 = scalar_lea.sflag [#allocation5], %s183
        %s185 = sand.u32 %s67, 1
        %s186 = smul.addr %s185, 8
        %s187 = scalar_lea.vmem [#allocation4], %s186
        // Predicated region
        $region33: #{tpu_custom_call.1} parent=27 // pred_check
          %p188 = pneg %p80
        $region34: #{tpu_custom_call.1} parent=27 // pred_check_branch
          %190 = sbr.rel (%p188) target = $region36
        $region35: #{tpu_custom_call.1} parent=27 // pred_region
          %191 = dma.done %s184, 128
        $region36: #{tpu_custom_call.1} parent=27 // pred_fallthru
          _
        %s192 = sand.u32 %s41, 1
        %s193 = scalar_lea.sflag [#allocation3], %s192
        %s194 = sand.u32 %s41, 1
        %s195 = smul.addr %s194, 8
        %s196 = scalar_lea.vmem [#allocation2], %s195
        %p197 = pneg %p54
        %p198 = pneg %p51
        %s199 = sand.u32 %s67, 1
        %s200 = scalar_lea.sflag [#allocation5], %s199
        %s201 = sand.u32 %s67, 1
        %s202 = smul.addr %s201, 8
        %s203 = scalar_lea.vmem [#allocation4], %s202
        %p204 = pneg %p80
        %p205 = pneg %p77
        %p206 = pneg %p108
        %p207 = pneg %p105
        %s208 = smul.u32 32, %s24
        %p209 = scmp.lt.s32.totalorder %s23, 1
        %s210 = scalar_select %p209, %s23, 1
        %p211 = scmp.lt.s32.totalorder %s208, 31
        %s212 = scalar_select %p211, %s208, 31
        %s213 = smul.addr %s210, 32
        %s214 = sadd.s32 %s212, %s213
        %s215 = smul.addr %s214, 8
        %s216 = scalar_lea.vmem %s2, %s215
        %s217 = smul.u32 2, %s24
        %s218 = smul.u32 32, %s24
        %p219 = scmp.lt.s32.totalorder %s23, 1
        %s220 = scalar_select %p219, %s23, 1
        %p221 = scmp.lt.s32.totalorder %s218, 31
        %s222 = scalar_select %p221, %s218, 31
        %s223 = smul.addr %s220, 32
        %s224 = sadd.s32 %s222, %s223
        %s225 = smul.addr %s224, 8
        %s226 = scalar_lea.vmem %s2, %s225
        %s227 = smul.u32 32, %s24
        %v228 = vld [vmem:[%s178] sm:$0xff]
        %v229 = vld [vmem:[%s187] sm:$0xff]
        %s230 = smul.u32 %s24, 256
        %v232 = vcombine.high %v228, %v228
        %234 = vxpose.xlu0.b32.start [1/16] %v228, 128
        %235 = vxpose.xlu0.b32.cont [2/16] 0.0, 128
        %236 = vxpose.xlu0.b32.cont [3/16] 0.0, 128
        %237 = vxpose.xlu0.b32.cont [4/16] 0.0, 128
        %238 = vxpose.xlu0.b32.cont [5/16] 0.0, 128
        %239 = vxpose.xlu0.b32.cont [6/16] 0.0, 128
        %240 = vxpose.xlu0.b32.cont [7/16] 0.0, 128
        %241 = vxpose.xlu0.b32.cont [8/16] 0.0, 128
        %242 = vxpose.xlu0.b32.cont [9/16] 0.0, 128
        %243 = vxpose.xlu0.b32.cont [10/16] 0.0, 128
        %244 = vxpose.xlu0.b32.cont [11/16] 0.0, 128
        %245 = vxpose.xlu0.b32.cont [12/16] 0.0, 128
        %246 = vxpose.xlu0.b32.cont [13/16] 0.0, 128
        %247 = vxpose.xlu0.b32.cont [14/16] 0.0, 128
        %248 = vxpose.xlu0.b32.cont [15/16] 0.0, 128
        %249 = vxpose.xlu0.b32.end [16/16] 0.0, 128
        %v250 = vpop.trf.xlu0
        %v251 = vpop.trf.xlu0
        %v252 = vpop.trf.xlu0
        %v253 = vpop.trf.xlu0
        %v254 = vpop.trf.xlu0
        %v255 = vpop.trf.xlu0
        %v256 = vpop.trf.xlu0
        %v257 = vpop.trf.xlu0
        %v258 = vpop.trf.xlu0
        %v259 = vpop.trf.xlu0
        %v260 = vpop.trf.xlu0
        %v261 = vpop.trf.xlu0
        %v262 = vpop.trf.xlu0
        %v263 = vpop.trf.xlu0
        %v264 = vpop.trf.xlu0
        %v265 = vpop.trf.xlu0
        %266 = vxpose.xlu0.b32.start [1/16] %v232, 128
        %267 = vxpose.xlu0.b32.cont [2/16] 0.0, 128
        %268 = vxpose.xlu0.b32.cont [3/16] 0.0, 128
        %269 = vxpose.xlu0.b32.cont [4/16] 0.0, 128
        %270 = vxpose.xlu0.b32.cont [5/16] 0.0, 128
        %271 = vxpose.xlu0.b32.cont [6/16] 0.0, 128
        %272 = vxpose.xlu0.b32.cont [7/16] 0.0, 128
        %273 = vxpose.xlu0.b32.cont [8/16] 0.0, 128
        %274 = vxpose.xlu0.b32.cont [9/16] 0.0, 128
        %275 = vxpose.xlu0.b32.cont [10/16] 0.0, 128
        %276 = vxpose.xlu0.b32.cont [11/16] 0.0, 128
        %277 = vxpose.xlu0.b32.cont [12/16] 0.0, 128
        %278 = vxpose.xlu0.b32.cont [13/16] 0.0, 128
        %279 = vxpose.xlu0.b32.cont [14/16] 0.0, 128
        %280 = vxpose.xlu0.b32.cont [15/16] 0.0, 128
        %281 = vxpose.xlu0.b32.end [16/16] 0.0, 128
        %v282 = vpop.trf.xlu0
        %v283 = vpop.trf.xlu0
        %v284 = vpop.trf.xlu0
        %v285 = vpop.trf.xlu0
        %v286 = vpop.trf.xlu0
        %v287 = vpop.trf.xlu0
        %v288 = vpop.trf.xlu0
        %v289 = vpop.trf.xlu0
        %v290 = vpop.trf.xlu0
        %v291 = vpop.trf.xlu0
        %v292 = vpop.trf.xlu0
        %v293 = vpop.trf.xlu0
        %v294 = vpop.trf.xlu0
        %v295 = vpop.trf.xlu0
        %v296 = vpop.trf.xlu0
        %v297 = vpop.trf.xlu0
        %v299 = vcombine.high %v229, %v229
        %vm300 = vcmask 31744
        %v302 = vsel %vm300, %v250, 0
        %v305 = vsel %vm300, %v251, 0
        %v308 = vsel %vm300, %v252, 0
        %v311 = vsel %vm300, %v253, 0
        %v314 = vsel %vm300, %v254, 0
        %v317 = vsel %vm300, %v255, 0
        %v320 = vsel %vm300, %v256, 0
        %v323 = vsel %vm300, %v257, 0
        %v326 = vsel %vm300, %v258, 0
        %v329 = vsel %vm300, %v259, 0
        %v332 = vsel %vm300, %v260, 0
        %v335 = vsel %vm300, %v261, 0
        %v338 = vsel %vm300, %v262, 0
        %v341 = vsel %vm300, %v263, 0
        %v344 = vsel %vm300, %v264, 0
        %v347 = vsel %vm300, %v265, 0
        %v350 = vsel %vm300, %v282, 0
        %v353 = vsel %vm300, %v283, 0
        %v356 = vsel %vm300, %v284, 0
        %v359 = vsel %vm300, %v285, 0
        %v362 = vsel %vm300, %v286, 0
        %v365 = vsel %vm300, %v287, 0
        %v368 = vsel %vm300, %v288, 0
        %v371 = vsel %vm300, %v289, 0
        %v374 = vsel %vm300, %v290, 0
        %v377 = vsel %vm300, %v291, 0
        %v380 = vsel %vm300, %v292, 0
        %v383 = vsel %vm300, %v293, 0
        %v386 = vsel %vm300, %v294, 0
        %v389 = vsel %vm300, %v295, 0
        %v392 = vsel %vm300, %v296, 0
        %v395 = vsel %vm300, %v297, 0
        %vm397 = vcmask 1043456
        %v398 = vsel %vm397, %v229, 0
        %v400 = vsel %vm397, %v299, 0
        %402 = vmatprep.subr.mxu0 %v400
        %403 = vmatpush1.msra.mxu0 %v398
        %404 = vmatprep.subr.mxu0 0.0
        %405 = vmatpush1.msra.mxu0 0.0
        %406 = vmatprep.subr.mxu0 0.0
        %407 = vmatpush1.msra.mxu0 0.0
        %408 = vmatprep.subr.mxu0 0.0
        %409 = vmatpush1.msra.mxu0 0.0
        %410 = vmatprep.subr.mxu0 0.0
        %411 = vmatpush1.msra.mxu0 0.0
        %412 = vmatprep.subr.mxu0 0.0
        %413 = vmatpush1.msra.mxu0 0.0
        %414 = vmatprep.subr.mxu0 0.0
        %415 = vmatpush1.msra.mxu0 0.0
        %416 = vmatprep.subr.mxu0 0.0
        %417 = vmatpush1.msra.mxu0 0.0
        %418 = vmatprep.subr.mxu0 0.0
        %419 = vmatpush1.msra.mxu0 0.0
        %420 = vmatprep.subr.mxu0 0.0
        %421 = vmatpush1.msra.mxu0 0.0
        %422 = vmatprep.subr.mxu0 0.0
        %423 = vmatpush1.msra.mxu0 0.0
        %424 = vmatprep.subr.mxu0 0.0
        %425 = vmatpush1.msra.mxu0 0.0
        %426 = vmatprep.subr.mxu0 0.0
        %427 = vmatpush1.msra.mxu0 0.0
        %428 = vmatprep.subr.mxu0 0.0
        %429 = vmatpush1.msra.mxu0 0.0
        %430 = vmatprep.subr.mxu0 0.0
        %431 = vmatpush1.msra.mxu0 0.0
        %432 = vmatprep.subr.mxu0 0.0
        %433 = vmatpush1.msra.mxu0 0.0
        %434 = vmatprep.subr.mxu0 0.0
        %435 = vmatpush1.msra.mxu0 0.0
        %436 = vmatprep.subr.mxu0 0.0
        %437 = vmatpush1.msra.mxu0 0.0
        %438 = vmatprep.subr.mxu0 0.0
        %439 = vmatpush1.msra.mxu0 0.0
        %440 = vmatprep.subr.mxu0 0.0
        %441 = vmatpush1.msra.mxu0 0.0
        %442 = vmatprep.subr.mxu0 0.0
        %443 = vmatpush1.msra.mxu0 0.0
        %444 = vmatprep.subr.mxu0 0.0
        %445 = vmatpush1.msra.mxu0 0.0
        %446 = vmatprep.subr.mxu0 0.0
        %447 = vmatpush1.msra.mxu0 0.0
        %448 = vmatprep.subr.mxu0 0.0
        %449 = vmatpush1.msra.mxu0 0.0
        %450 = vmatprep.subr.mxu0 0.0
        %451 = vmatpush1.msra.mxu0 0.0
        %452 = vmatprep.subr.mxu0 0.0
        %453 = vmatpush1.msra.mxu0 0.0
        %454 = vmatprep.subr.mxu0 0.0
        %455 = vmatpush1.msra.mxu0 0.0
        %456 = vmatprep.subr.mxu0 0.0
        %457 = vmatpush1.msra.mxu0 0.0
        %458 = vmatprep.subr.mxu0 0.0
        %459 = vmatpush1.msra.mxu0 0.0
        %460 = vmatprep.subr.mxu0 0.0
        %461 = vmatpush1.msra.mxu0 0.0
        %462 = vmatprep.subr.mxu0 0.0
        %463 = vmatpush1.msra.mxu0 0.0
        %464 = vmatprep.subr.mxu0 0.0
        %465 = vmatpush1.msra.mxu0 0.0
        %466 = vmatprep.mubr.f32.mxu0 0.0
        %467 = vmatmul.mubr.f32.gmra.mrb[0].mxu0 %v302
        %v468 = vpop.f32.mrb[0].mxu0
        %v469 = vadd.f32 0.0, %v468
        %v470 = vpop.f32.mrb[0].mxu0
        %v471 = vadd.f32 0.0, %v470
        %472 = vmatprep.mubr.f32.mxu0 0.0
        %473 = vmatmul.mubr.f32.gmra.mrb[0].mxu0 %v305
        %v474 = vpop.f32.mrb[0].mxu0
        %v475 = vadd.f32 0.0, %v474
        %v476 = vpop.f32.mrb[0].mxu0
        %v477 = vadd.f32 0.0, %v476
        %478 = vmatprep.mubr.f32.mxu0 0.0
        %479 = vmatmul.mubr.f32.gmra.mrb[0].mxu0 %v308
        %v480 = vpop.f32.mrb[0].mxu0
        %v481 = vadd.f32 0.0, %v480
        %v482 = vpop.f32.mrb[0].mxu0
        %v483 = vadd.f32 0.0, %v482
        %484 = vmatprep.mubr.f32.mxu0 0.0
        %485 = vmatmul.mubr.f32.gmra.mrb[0].mxu0 %v311
        %v486 = vpop.f32.mrb[0].mxu0
        %v487 = vadd.f32 0.0, %v486
        %v488 = vpop.f32.mrb[0].mxu0
        %v489 = vadd.f32 0.0, %v488
        %490 = vmatprep.mubr.f32.mxu0 0.0
        %491 = vmatmul.mubr.f32.gmra.mrb[0].mxu0 %v314
        %v492 = vpop.f32.mrb[0].mxu0
        %v493 = vadd.f32 0.0, %v492
        %v494 = vpop.f32.mrb[0].mxu0
        %v495 = vadd.f32 0.0, %v494
        %496 = vmatprep.mubr.f32.mxu0 0.0
        %497 = vmatmul.mubr.f32.gmra.mrb[0].mxu0 %v317
        %v498 = vpop.f32.mrb[0].mxu0
        %v499 = vadd.f32 0.0, %v498
        %v500 = vpop.f32.mrb[0].mxu0
        %v501 = vadd.f32 0.0, %v500
        %502 = vmatprep.mubr.f32.mxu0 0.0
        %503 = vmatmul.mubr.f32.gmra.mrb[0].mxu0 %v320
        %v504 = vpop.f32.mrb[0].mxu0
        %v505 = vadd.f32 0.0, %v504
        %v506 = vpop.f32.mrb[0].mxu0
        %v507 = vadd.f32 0.0, %v506
        %508 = vmatprep.mubr.f32.mxu0 0.0
        %509 = vmatmul.mubr.f32.gmra.mrb[0].mxu0 %v323
        %v510 = vpop.f32.mrb[0].mxu0
        %v511 = vadd.f32 0.0, %v510
        %v512 = vpop.f32.mrb[0].mxu0
        %v513 = vadd.f32 0.0, %v512
        %514 = vmatprep.mubr.f32.mxu0 0.0
        %515 = vmatmul.mubr.f32.gmra.mrb[0].mxu0 %v326
        %v516 = vpop.f32.mrb[0].mxu0
        %v517 = vadd.f32 0.0, %v516
        %v518 = vpop.f32.mrb[0].mxu0
        %v519 = vadd.f32 0.0, %v518
        %520 = vmatprep.mubr.f32.mxu0 0.0
        %521 = vmatmul.mubr.f32.gmra.mrb[0].mxu0 %v329
        %v522 = vpop.f32.mrb[0].mxu0
        %v523 = vadd.f32 0.0, %v522
        %v524 = vpop.f32.mrb[0].mxu0
        %v525 = vadd.f32 0.0, %v524
        %526 = vmatprep.mubr.f32.mxu0 0.0
        %527 = vmatmul.mubr.f32.gmra.mrb[0].mxu0 %v332
        %v528 = vpop.f32.mrb[0].mxu0
        %v529 = vadd.f32 0.0, %v528
        %v530 = vpop.f32.mrb[0].mxu0
        %v531 = vadd.f32 0.0, %v530
        %532 = vmatprep.mubr.f32.mxu0 0.0
        %533 = vmatmul.mubr.f32.gmra.mrb[0].mxu0 %v335
        %v534 = vpop.f32.mrb[0].mxu0
        %v535 = vadd.f32 0.0, %v534
        %v536 = vpop.f32.mrb[0].mxu0
        %v537 = vadd.f32 0.0, %v536
        %538 = vmatprep.mubr.f32.mxu0 0.0
        %539 = vmatmul.mubr.f32.gmra.mrb[0].mxu0 %v338
        %v540 = vpop.f32.mrb[0].mxu0
        %v541 = vadd.f32 0.0, %v540
        %v542 = vpop.f32.mrb[0].mxu0
        %v543 = vadd.f32 0.0, %v542
        %544 = vmatprep.mubr.f32.mxu0 0.0
        %545 = vmatmul.mubr.f32.gmra.mrb[0].mxu0 %v341
        %v546 = vpop.f32.mrb[0].mxu0
        %v547 = vadd.f32 0.0, %v546
        %v548 = vpop.f32.mrb[0].mxu0
        %v549 = vadd.f32 0.0, %v548
        %550 = vmatprep.mubr.f32.mxu0 0.0
        %551 = vmatmul.mubr.f32.gmra.mrb[0].mxu0 %v344
        %v552 = vpop.f32.mrb[0].mxu0
        %v553 = vadd.f32 0.0, %v552
        %v554 = vpop.f32.mrb[0].mxu0
        %v555 = vadd.f32 0.0, %v554
        %556 = vmatprep.mubr.f32.mxu0 0.0
        %557 = vmatmul.mubr.f32.gmra.mrb[0].mxu0 %v347
        %v558 = vpop.f32.mrb[0].mxu0
        %v559 = vadd.f32 0.0, %v558
        %v560 = vpop.f32.mrb[0].mxu0
        %v561 = vadd.f32 0.0, %v560
        %562 = vmatprep.mubr.f32.mxu0 0.0
        %563 = vmatmul.mubr.f32.gmra.mrb[0].mxu0 %v350
        %v564 = vpop.f32.mrb[0].mxu0
        %v565 = vadd.f32 0.0, %v564
        %v566 = vpop.f32.mrb[0].mxu0
        %v567 = vadd.f32 0.0, %v566
        %568 = vmatprep.mubr.f32.mxu0 0.0
        %569 = vmatmul.mubr.f32.gmra.mrb[0].mxu0 %v353
        %v570 = vpop.f32.mrb[0].mxu0
        %v571 = vadd.f32 0.0, %v570
        %v572 = vpop.f32.mrb[0].mxu0
        %v573 = vadd.f32 0.0, %v572
        %574 = vmatprep.mubr.f32.mxu0 0.0
        %575 = vmatmul.mubr.f32.gmra.mrb[0].mxu0 %v356
        %v576 = vpop.f32.mrb[0].mxu0
        %v577 = vadd.f32 0.0, %v576
        %v578 = vpop.f32.mrb[0].mxu0
        %v579 = vadd.f32 0.0, %v578
        %580 = vmatprep.mubr.f32.mxu0 0.0
        %581 = vmatmul.mubr.f32.gmra.mrb[0].mxu0 %v359
        %v582 = vpop.f32.mrb[0].mxu0
        %v583 = vadd.f32 0.0, %v582
        %v584 = vpop.f32.mrb[0].mxu0
        %v585 = vadd.f32 0.0, %v584
        %586 = vmatprep.mubr.f32.mxu0 0.0
        %587 = vmatmul.mubr.f32.gmra.mrb[0].mxu0 %v362
        %v588 = vpop.f32.mrb[0].mxu0
        %v589 = vadd.f32 0.0, %v588
        %v590 = vpop.f32.mrb[0].mxu0
        %v591 = vadd.f32 0.0, %v590
        %592 = vmatprep.mubr.f32.mxu0 0.0
        %593 = vmatmul.mubr.f32.gmra.mrb[0].mxu0 %v365
        %v594 = vpop.f32.mrb[0].mxu0
        %v595 = vadd.f32 0.0, %v594
        %v596 = vpop.f32.mrb[0].mxu0
        %v597 = vadd.f32 0.0, %v596
        %598 = vmatprep.mubr.f32.mxu0 0.0
        %599 = vmatmul.mubr.f32.gmra.mrb[0].mxu0 %v368
        %v600 = vpop.f32.mrb[0].mxu0
        %v601 = vadd.f32 0.0, %v600
        %v602 = vpop.f32.mrb[0].mxu0
        %v603 = vadd.f32 0.0, %v602
        %604 = vmatprep.mubr.f32.mxu0 0.0
        %605 = vmatmul.mubr.f32.gmra.mrb[0].mxu0 %v371
        %v606 = vpop.f32.mrb[0].mxu0
        %v607 = vadd.f32 0.0, %v606
        %v608 = vpop.f32.mrb[0].mxu0
        %v609 = vadd.f32 0.0, %v608
        %610 = vmatprep.mubr.f32.mxu0 0.0
        %611 = vmatmul.mubr.f32.gmra.mrb[0].mxu0 %v374
        %v612 = vpop.f32.mrb[0].mxu0
        %v613 = vadd.f32 0.0, %v612
        %v614 = vpop.f32.mrb[0].mxu0
        %v615 = vadd.f32 0.0, %v614
        %616 = vmatprep.mubr.f32.mxu0 0.0
        %617 = vmatmul.mubr.f32.gmra.mrb[0].mxu0 %v377
        %v618 = vpop.f32.mrb[0].mxu0
        %v619 = vadd.f32 0.0, %v618
        %v620 = vpop.f32.mrb[0].mxu0
        %v621 = vadd.f32 0.0, %v620
        %622 = vmatprep.mubr.f32.mxu0 0.0
        %623 = vmatmul.mubr.f32.gmra.mrb[0].mxu0 %v380
        %v624 = vpop.f32.mrb[0].mxu0
        %v625 = vadd.f32 0.0, %v624
        %v626 = vpop.f32.mrb[0].mxu0
        %v627 = vadd.f32 0.0, %v626
        %628 = vmatprep.mubr.f32.mxu0 0.0
        %629 = vmatmul.mubr.f32.gmra.mrb[0].mxu0 %v383
        %v630 = vpop.f32.mrb[0].mxu0
        %v631 = vadd.f32 0.0, %v630
        %v632 = vpop.f32.mrb[0].mxu0
        %v633 = vadd.f32 0.0, %v632
        %634 = vmatprep.mubr.f32.mxu0 0.0
        %635 = vmatmul.mubr.f32.gmra.mrb[0].mxu0 %v386
        %v636 = vpop.f32.mrb[0].mxu0
        %v637 = vadd.f32 0.0, %v636
        %v638 = vpop.f32.mrb[0].mxu0
        %v639 = vadd.f32 0.0, %v638
        %640 = vmatprep.mubr.f32.mxu0 0.0
        %641 = vmatmul.mubr.f32.gmra.mrb[0].mxu0 %v389
        %v642 = vpop.f32.mrb[0].mxu0
        %v643 = vadd.f32 0.0, %v642
        %v644 = vpop.f32.mrb[0].mxu0
        %v645 = vadd.f32 0.0, %v644
        %646 = vmatprep.mubr.f32.mxu0 0.0
        %647 = vmatmul.mubr.f32.gmra.mrb[0].mxu0 %v392
        %v648 = vpop.f32.mrb[0].mxu0
        %v649 = vadd.f32 0.0, %v648
        %v650 = vpop.f32.mrb[0].mxu0
        %v651 = vadd.f32 0.0, %v650
        %652 = vmatprep.mubr.f32.mxu0 0.0
        %653 = vmatmul.mubr.f32.gmra.mrb[0].mxu0 %v395
        %v654 = vpop.f32.mrb[0].mxu0
        %v655 = vadd.f32 0.0, %v654
        %v656 = vpop.f32.mrb[0].mxu0
        %v657 = vadd.f32 0.0, %v656
        %658 = vdwg.mxu0
        %v659 = vmul.f32 %v229, %v229
        %v661 = vcombine.high %v659, %v659
        %v663 = vsel %vm397, %v659, 0.0
        %v664 = vrot.slane %v663, 4
        %v665 = vadd.f32 %v663, %v664
        %v666 = vrot.slane %v665, 2
        %v667 = vadd.f32 %v665, %v666
        %v668 = vrot.slane %v667, 1
        %v669 = vadd.f32 %v667, %v668
        %v670 = vsel %vm397, %v661, 0.0
        %v671 = vrot.slane %v670, 4
        %v672 = vadd.f32 %v670, %v671
        %v673 = vrot.slane %v672, 2
        %v674 = vadd.f32 %v672, %v673
        %v675 = vrot.slane %v674, 1
        %v676 = vadd.f32 %v674, %v675
        %v677 = vmul.f32 %v469, 2.0
        %v678 = vmul.f32 %v471, 2.0
        %v679 = vmul.f32 %v475, 2.0
        %v680 = vmul.f32 %v477, 2.0
        %v681 = vmul.f32 %v481, 2.0
        %v682 = vmul.f32 %v483, 2.0
        %v683 = vmul.f32 %v487, 2.0
        %v684 = vmul.f32 %v489, 2.0
        %v685 = vmul.f32 %v493, 2.0
        %v686 = vmul.f32 %v495, 2.0
        %v687 = vmul.f32 %v499, 2.0
        %v688 = vmul.f32 %v501, 2.0
        %v689 = vmul.f32 %v505, 2.0
        %v690 = vmul.f32 %v507, 2.0
        %v691 = vmul.f32 %v511, 2.0
        %v692 = vmul.f32 %v513, 2.0
        %v693 = vmul.f32 %v517, 2.0
        %v694 = vmul.f32 %v519, 2.0
        %v695 = vmul.f32 %v523, 2.0
        %v696 = vmul.f32 %v525, 2.0
        %v697 = vmul.f32 %v529, 2.0
        %v698 = vmul.f32 %v531, 2.0
        %v699 = vmul.f32 %v535, 2.0
        %v700 = vmul.f32 %v537, 2.0
        %v701 = vmul.f32 %v541, 2.0
        %v702 = vmul.f32 %v543, 2.0
        %v703 = vmul.f32 %v547, 2.0
        %v704 = vmul.f32 %v549, 2.0
        %v705 = vmul.f32 %v553, 2.0
        %v706 = vmul.f32 %v555, 2.0
        %v707 = vmul.f32 %v559, 2.0
        %v708 = vmul.f32 %v561, 2.0
        %v709 = vmul.f32 %v565, 2.0
        %v710 = vmul.f32 %v567, 2.0
        %v711 = vmul.f32 %v571, 2.0
        %v712 = vmul.f32 %v573, 2.0
        %v713 = vmul.f32 %v577, 2.0
        %v714 = vmul.f32 %v579, 2.0
        %v715 = vmul.f32 %v583, 2.0
        %v716 = vmul.f32 %v585, 2.0
        %v717 = vmul.f32 %v589, 2.0
        %v718 = vmul.f32 %v591, 2.0
        %v719 = vmul.f32 %v595, 2.0
        %v720 = vmul.f32 %v597, 2.0
        %v721 = vmul.f32 %v601, 2.0
        %v722 = vmul.f32 %v603, 2.0
        %v723 = vmul.f32 %v607, 2.0
        %v724 = vmul.f32 %v609, 2.0
        %v725 = vmul.f32 %v613, 2.0
        %v726 = vmul.f32 %v615, 2.0
        %v727 = vmul.f32 %v619, 2.0
        %v728 = vmul.f32 %v621, 2.0
        %v729 = vmul.f32 %v625, 2.0
        %v730 = vmul.f32 %v627, 2.0
        %v731 = vmul.f32 %v631, 2.0
        %v732 = vmul.f32 %v633, 2.0
        %v733 = vmul.f32 %v637, 2.0
        %v734 = vmul.f32 %v639, 2.0
        %v735 = vmul.f32 %v643, 2.0
        %v736 = vmul.f32 %v645, 2.0
        %v737 = vmul.f32 %v649, 2.0
        %v738 = vmul.f32 %v651, 2.0
        %v739 = vmul.f32 %v655, 2.0
        %v740 = vmul.f32 %v657, 2.0
        %v741 = vsub.f32 %v677, %v669
        %v742 = vsub.f32 %v678, %v676
        %v743 = vsub.f32 %v679, %v669
        %v744 = vsub.f32 %v680, %v676
        %v745 = vsub.f32 %v681, %v669
        %v746 = vsub.f32 %v682, %v676
        %v747 = vsub.f32 %v683, %v669
        %v748 = vsub.f32 %v684, %v676
        %v749 = vsub.f32 %v685, %v669
        %v750 = vsub.f32 %v686, %v676
        %v751 = vsub.f32 %v687, %v669
        %v752 = vsub.f32 %v688, %v676
        %v753 = vsub.f32 %v689, %v669
        %v754 = vsub.f32 %v690, %v676
        %v755 = vsub.f32 %v691, %v669
        %v756 = vsub.f32 %v692, %v676
        %v757 = vsub.f32 %v693, %v669
        %v758 = vsub.f32 %v694, %v676
        %v759 = vsub.f32 %v695, %v669
        %v760 = vsub.f32 %v696, %v676
        %v761 = vsub.f32 %v697, %v669
        %v762 = vsub.f32 %v698, %v676
        %v763 = vsub.f32 %v699, %v669
        %v764 = vsub.f32 %v700, %v676
        %v765 = vsub.f32 %v701, %v669
        %v766 = vsub.f32 %v702, %v676
        %v767 = vsub.f32 %v703, %v669
        %v768 = vsub.f32 %v704, %v676
        %v769 = vsub.f32 %v705, %v669
        %v770 = vsub.f32 %v706, %v676
        %v771 = vsub.f32 %v707, %v669
        %v772 = vsub.f32 %v708, %v676
        %v773 = vsub.f32 %v709, %v669
        %v774 = vsub.f32 %v710, %v676
        %v775 = vsub.f32 %v711, %v669
        %v776 = vsub.f32 %v712, %v676
        %v777 = vsub.f32 %v713, %v669
        %v778 = vsub.f32 %v714, %v676
        %v779 = vsub.f32 %v715, %v669
        %v780 = vsub.f32 %v716, %v676
        %v781 = vsub.f32 %v717, %v669
        %v782 = vsub.f32 %v718, %v676
        %v783 = vsub.f32 %v719, %v669
        %v784 = vsub.f32 %v720, %v676
        %v785 = vsub.f32 %v721, %v669
        %v786 = vsub.f32 %v722, %v676
        %v787 = vsub.f32 %v723, %v669
        %v788 = vsub.f32 %v724, %v676
        %v789 = vsub.f32 %v725, %v669
        %v790 = vsub.f32 %v726, %v676
        %v791 = vsub.f32 %v727, %v669
        %v792 = vsub.f32 %v728, %v676
        %v793 = vsub.f32 %v729, %v669
        %v794 = vsub.f32 %v730, %v676
        %v795 = vsub.f32 %v731, %v669
        %v796 = vsub.f32 %v732, %v676
        %v797 = vsub.f32 %v733, %v669
        %v798 = vsub.f32 %v734, %v676
        %v799 = vsub.f32 %v735, %v669
        %v800 = vsub.f32 %v736, %v676
        %v801 = vsub.f32 %v737, %v669
        %v802 = vsub.f32 %v738, %v676
        %v803 = vsub.f32 %v739, %v669
        %v804 = vsub.f32 %v740, %v676
        %v805 = vlaneseq
        %v806 = vshrl.u32 %v805, 7
        %v807 = vadd.s32 %v806, 8
        %v808 = vadd.s32 %v806, 16
        %v809 = vadd.s32 %v806, 24
        %v810 = vadd.s32 %v806, 32
        %v811 = vadd.s32 %v806, 40
        %v812 = vadd.s32 %v806, 48
        %v813 = vadd.s32 %v806, 56
        %v814 = vadd.s32 %v806, 64
        %v815 = vadd.s32 %v806, 72
        %v816 = vadd.s32 %v806, 80
        %v817 = vadd.s32 %v806, 88
        %v818 = vadd.s32 %v806, 96
        %v819 = vadd.s32 %v806, 104
        %v820 = vadd.s32 %v806, 112
        %v821 = vadd.s32 %v806, 120
        %v822 = vadd.s32 %v806, 128
        %v823 = vadd.s32 %v806, 136
        %v824 = vadd.s32 %v806, 144
        %v825 = vadd.s32 %v806, 152
        %v826 = vadd.s32 %v806, 160
        %v827 = vadd.s32 %v806, 168
        %v828 = vadd.s32 %v806, 176
        %v829 = vadd.s32 %v806, 184
        %v830 = vadd.s32 %v806, 192
        %v831 = vadd.s32 %v806, 200
        %v832 = vadd.s32 %v806, 208
        %v833 = vadd.s32 %v806, 216
        %v834 = vadd.s32 %v806, 224
        %v835 = vadd.s32 %v806, 232
        %v836 = vadd.s32 %v806, 240
        %v837 = vadd.s32 %v806, 248
        %v838 = vstv %s230
        %v839 = vadd.s32 %v806, %v838
        %v840 = vadd.s32 %v807, %v838
        %v841 = vadd.s32 %v808, %v838
        %v842 = vadd.s32 %v809, %v838
        %v843 = vadd.s32 %v810, %v838
        %v844 = vadd.s32 %v811, %v838
        %v845 = vadd.s32 %v812, %v838
        %v846 = vadd.s32 %v813, %v838
        %v847 = vadd.s32 %v814, %v838
        %v848 = vadd.s32 %v815, %v838
        %v849 = vadd.s32 %v816, %v838
        %v850 = vadd.s32 %v817, %v838
        %v851 = vadd.s32 %v818, %v838
        %v852 = vadd.s32 %v819, %v838
        %v853 = vadd.s32 %v820, %v838
        %v854 = vadd.s32 %v821, %v838
        %v855 = vadd.s32 %v822, %v838
        %v856 = vadd.s32 %v823, %v838
        %v857 = vadd.s32 %v824, %v838
        %v858 = vadd.s32 %v825, %v838
        %v859 = vadd.s32 %v826, %v838
        %v860 = vadd.s32 %v827, %v838
        %v861 = vadd.s32 %v828, %v838
        %v862 = vadd.s32 %v829, %v838
        %v863 = vadd.s32 %v830, %v838
        %v864 = vadd.s32 %v831, %v838
        %v865 = vadd.s32 %v832, %v838
        %v866 = vadd.s32 %v833, %v838
        %v867 = vadd.s32 %v834, %v838
        %v868 = vadd.s32 %v835, %v838
        %v869 = vadd.s32 %v836, %v838
        %v870 = vadd.s32 %v837, %v838
        %v871 = vlaneseq
        %v872 = vand.u32 %v871, 127
        %v873 = vadd.s32 %v872, 128
        %vm874 = vcmp.eq.s32.totalorder %v839, %v872
        %vm875 = vcmp.eq.s32.totalorder %v839, %v873
        %vm876 = vcmp.eq.s32.totalorder %v840, %v872
        %vm877 = vcmp.eq.s32.totalorder %v840, %v873
        %vm878 = vcmp.eq.s32.totalorder %v841, %v872
        %vm879 = vcmp.eq.s32.totalorder %v841, %v873
        %vm880 = vcmp.eq.s32.totalorder %v842, %v872
        %vm881 = vcmp.eq.s32.totalorder %v842, %v873
        %vm882 = vcmp.eq.s32.totalorder %v843, %v872
        %vm883 = vcmp.eq.s32.totalorder %v843, %v873
        %vm884 = vcmp.eq.s32.totalorder %v844, %v872
        %vm885 = vcmp.eq.s32.totalorder %v844, %v873
        %vm886 = vcmp.eq.s32.totalorder %v845, %v872
        %vm887 = vcmp.eq.s32.totalorder %v845, %v873
        %vm888 = vcmp.eq.s32.totalorder %v846, %v872
        %vm889 = vcmp.eq.s32.totalorder %v846, %v873
        %vm890 = vcmp.eq.s32.totalorder %v847, %v872
        %vm891 = vcmp.eq.s32.totalorder %v847, %v873
        %vm892 = vcmp.eq.s32.totalorder %v848, %v872
        %vm893 = vcmp.eq.s32.totalorder %v848, %v873
        %vm894 = vcmp.eq.s32.totalorder %v849, %v872
        %vm895 = vcmp.eq.s32.totalorder %v849, %v873
        %vm896 = vcmp.eq.s32.totalorder %v850, %v872
        %vm897 = vcmp.eq.s32.totalorder %v850, %v873
        %vm898 = vcmp.eq.s32.totalorder %v851, %v872
        %vm899 = vcmp.eq.s32.totalorder %v851, %v873
        %vm900 = vcmp.eq.s32.totalorder %v852, %v872
        %vm901 = vcmp.eq.s32.totalorder %v852, %v873
        %vm902 = vcmp.eq.s32.totalorder %v853, %v872
        %vm903 = vcmp.eq.s32.totalorder %v853, %v873
        %vm904 = vcmp.eq.s32.totalorder %v854, %v872
        %vm905 = vcmp.eq.s32.totalorder %v854, %v873
        %vm906 = vcmp.eq.s32.totalorder %v855, %v872
        %vm907 = vcmp.eq.s32.totalorder %v855, %v873
        %vm908 = vcmp.eq.s32.totalorder %v856, %v872
        %vm909 = vcmp.eq.s32.totalorder %v856, %v873
        %vm910 = vcmp.eq.s32.totalorder %v857, %v872
        %vm911 = vcmp.eq.s32.totalorder %v857, %v873
        %vm912 = vcmp.eq.s32.totalorder %v858, %v872
        %vm913 = vcmp.eq.s32.totalorder %v858, %v873
        %vm914 = vcmp.eq.s32.totalorder %v859, %v872
        %vm915 = vcmp.eq.s32.totalorder %v859, %v873
        %vm916 = vcmp.eq.s32.totalorder %v860, %v872
        %vm917 = vcmp.eq.s32.totalorder %v860, %v873
        %vm918 = vcmp.eq.s32.totalorder %v861, %v872
        %vm919 = vcmp.eq.s32.totalorder %v861, %v873
        %vm920 = vcmp.eq.s32.totalorder %v862, %v872
        %vm921 = vcmp.eq.s32.totalorder %v862, %v873
        %vm922 = vcmp.eq.s32.totalorder %v863, %v872
        %vm923 = vcmp.eq.s32.totalorder %v863, %v873
        %vm924 = vcmp.eq.s32.totalorder %v864, %v872
        %vm925 = vcmp.eq.s32.totalorder %v864, %v873
        %vm926 = vcmp.eq.s32.totalorder %v865, %v872
        %vm927 = vcmp.eq.s32.totalorder %v865, %v873
        %vm928 = vcmp.eq.s32.totalorder %v866, %v872
        %vm929 = vcmp.eq.s32.totalorder %v866, %v873
        %vm930 = vcmp.eq.s32.totalorder %v867, %v872
        %vm931 = vcmp.eq.s32.totalorder %v867, %v873
        %vm932 = vcmp.eq.s32.totalorder %v868, %v872
        %vm933 = vcmp.eq.s32.totalorder %v868, %v873
        %vm934 = vcmp.eq.s32.totalorder %v869, %v872
        %vm935 = vcmp.eq.s32.totalorder %v869, %v873
        %vm936 = vcmp.eq.s32.totalorder %v870, %v872
        %vm937 = vcmp.eq.s32.totalorder %v870, %v873
        %v938 = vsel %vm874, -3e+38, %v741
        %v939 = vsel %vm875, -3e+38, %v742
        %v940 = vsel %vm876, -3e+38, %v743
        %v941 = vsel %vm877, -3e+38, %v744
        %v942 = vsel %vm878, -3e+38, %v745
        %v943 = vsel %vm879, -3e+38, %v746
        %v944 = vsel %vm880, -3e+38, %v747
        %v945 = vsel %vm881, -3e+38, %v748
        %v946 = vsel %vm882, -3e+38, %v749
        %v947 = vsel %vm883, -3e+38, %v750
        %v948 = vsel %vm884, -3e+38, %v751
        %v949 = vsel %vm885, -3e+38, %v752
        %v950 = vsel %vm886, -3e+38, %v753
        %v951 = vsel %vm887, -3e+38, %v754
        %v952 = vsel %vm888, -3e+38, %v755
        %v953 = vsel %vm889, -3e+38, %v756
        %v954 = vsel %vm890, -3e+38, %v757
        %v955 = vsel %vm891, -3e+38, %v758
        %v956 = vsel %vm892, -3e+38, %v759
        %v957 = vsel %vm893, -3e+38, %v760
        %v958 = vsel %vm894, -3e+38, %v761
        %v959 = vsel %vm895, -3e+38, %v762
        %v960 = vsel %vm896, -3e+38, %v763
        %v961 = vsel %vm897, -3e+38, %v764
        %v962 = vsel %vm898, -3e+38, %v765
        %v963 = vsel %vm899, -3e+38, %v766
        %v964 = vsel %vm900, -3e+38, %v767
        %v965 = vsel %vm901, -3e+38, %v768
        %v966 = vsel %vm902, -3e+38, %v769
        %v967 = vsel %vm903, -3e+38, %v770
        %v968 = vsel %vm904, -3e+38, %v771
        %v969 = vsel %vm905, -3e+38, %v772
        %v970 = vsel %vm906, -3e+38, %v773
        %v971 = vsel %vm907, -3e+38, %v774
        %v972 = vsel %vm908, -3e+38, %v775
        %v973 = vsel %vm909, -3e+38, %v776
        %v974 = vsel %vm910, -3e+38, %v777
        %v975 = vsel %vm911, -3e+38, %v778
        %v976 = vsel %vm912, -3e+38, %v779
        %v977 = vsel %vm913, -3e+38, %v780
        %v978 = vsel %vm914, -3e+38, %v781
        %v979 = vsel %vm915, -3e+38, %v782
        %v980 = vsel %vm916, -3e+38, %v783
        %v981 = vsel %vm917, -3e+38, %v784
        %v982 = vsel %vm918, -3e+38, %v785
        %v983 = vsel %vm919, -3e+38, %v786
        %v984 = vsel %vm920, -3e+38, %v787
        %v985 = vsel %vm921, -3e+38, %v788
        %v986 = vsel %vm922, -3e+38, %v789
        %v987 = vsel %vm923, -3e+38, %v790
        %v988 = vsel %vm924, -3e+38, %v791
        %v989 = vsel %vm925, -3e+38, %v792
        %v990 = vsel %vm926, -3e+38, %v793
        %v991 = vsel %vm927, -3e+38, %v794
        %v992 = vsel %vm928, -3e+38, %v795
        %v993 = vsel %vm929, -3e+38, %v796
        %v994 = vsel %vm930, -3e+38, %v797
        %v995 = vsel %vm931, -3e+38, %v798
        %v996 = vsel %vm932, -3e+38, %v799
        %v997 = vsel %vm933, -3e+38, %v800
        %v998 = vsel %vm934, -3e+38, %v801
        %v999 = vsel %vm935, -3e+38, %v802
        %v1000 = vsel %vm936, -3e+38, %v803
        %v1001 = vsel %vm937, -3e+38, %v804
        %v1002 = vcvt.s32.f32 %v872
        %v1003 = vcvt.s32.f32 %v873
        %v1004 = vmax.f32 %v938, %v939
        %1005 = vmax.xlane.f32.xlu0 %v1004
        %v1006 = vpop.xlane.xlu0 %1005
        %v1007 = vmax.f32 %v940, %v941
        %1008 = vmax.xlane.f32.xlu0 %v1007
        %v1009 = vpop.xlane.xlu0 %1008
        %v1010 = vmax.f32 %v942, %v943
        %1011 = vmax.xlane.f32.xlu0 %v1010
        %v1012 = vpop.xlane.xlu0 %1011
        %v1013 = vmax.f32 %v944, %v945
        %1014 = vmax.xlane.f32.xlu0 %v1013
        %v1015 = vpop.xlane.xlu0 %1014
        %v1016 = vmax.f32 %v946, %v947
        %1017 = vmax.xlane.f32.xlu0 %v1016
        %v1018 = vpop.xlane.xlu0 %1017
        %v1019 = vmax.f32 %v948, %v949
        %1020 = vmax.xlane.f32.xlu0 %v1019
        %v1021 = vpop.xlane.xlu0 %1020
        %v1022 = vmax.f32 %v950, %v951
        %1023 = vmax.xlane.f32.xlu0 %v1022
        %v1024 = vpop.xlane.xlu0 %1023
        %v1025 = vmax.f32 %v952, %v953
        %1026 = vmax.xlane.f32.xlu0 %v1025
        %v1027 = vpop.xlane.xlu0 %1026
        %v1028 = vmax.f32 %v954, %v955
        %1029 = vmax.xlane.f32.xlu0 %v1028
        %v1030 = vpop.xlane.xlu0 %1029
        %v1031 = vmax.f32 %v956, %v957
        %1032 = vmax.xlane.f32.xlu0 %v1031
        %v1033 = vpop.xlane.xlu0 %1032
        %v1034 = vmax.f32 %v958, %v959
        %1035 = vmax.xlane.f32.xlu0 %v1034
        %v1036 = vpop.xlane.xlu0 %1035
        %v1037 = vmax.f32 %v960, %v961
        %1038 = vmax.xlane.f32.xlu0 %v1037
        %v1039 = vpop.xlane.xlu0 %1038
        %v1040 = vmax.f32 %v962, %v963
        %1041 = vmax.xlane.f32.xlu0 %v1040
        %v1042 = vpop.xlane.xlu0 %1041
        %v1043 = vmax.f32 %v964, %v965
        %1044 = vmax.xlane.f32.xlu0 %v1043
        %v1045 = vpop.xlane.xlu0 %1044
        %v1046 = vmax.f32 %v966, %v967
        %1047 = vmax.xlane.f32.xlu0 %v1046
        %v1048 = vpop.xlane.xlu0 %1047
        %v1049 = vmax.f32 %v968, %v969
        %1050 = vmax.xlane.f32.xlu0 %v1049
        %v1051 = vpop.xlane.xlu0 %1050
        %v1052 = vmax.f32 %v970, %v971
        %1053 = vmax.xlane.f32.xlu0 %v1052
        %v1054 = vpop.xlane.xlu0 %1053
        %v1055 = vmax.f32 %v972, %v973
        %1056 = vmax.xlane.f32.xlu0 %v1055
        %v1057 = vpop.xlane.xlu0 %1056
        %v1058 = vmax.f32 %v974, %v975
        %1059 = vmax.xlane.f32.xlu0 %v1058
        %v1060 = vpop.xlane.xlu0 %1059
        %v1061 = vmax.f32 %v976, %v977
        %1062 = vmax.xlane.f32.xlu0 %v1061
        %v1063 = vpop.xlane.xlu0 %1062
        %v1064 = vmax.f32 %v978, %v979
        %1065 = vmax.xlane.f32.xlu0 %v1064
        %v1066 = vpop.xlane.xlu0 %1065
        %v1067 = vmax.f32 %v980, %v981
        %1068 = vmax.xlane.f32.xlu0 %v1067
        %v1069 = vpop.xlane.xlu0 %1068
        %v1070 = vmax.f32 %v982, %v983
        %1071 = vmax.xlane.f32.xlu0 %v1070
        %v1072 = vpop.xlane.xlu0 %1071
        %v1073 = vmax.f32 %v984, %v985
        %1074 = vmax.xlane.f32.xlu0 %v1073
        %v1075 = vpop.xlane.xlu0 %1074
        %v1076 = vmax.f32 %v986, %v987
        %1077 = vmax.xlane.f32.xlu0 %v1076
        %v1078 = vpop.xlane.xlu0 %1077
        %v1079 = vmax.f32 %v988, %v989
        %1080 = vmax.xlane.f32.xlu0 %v1079
        %v1081 = vpop.xlane.xlu0 %1080
        %v1082 = vmax.f32 %v990, %v991
        %1083 = vmax.xlane.f32.xlu0 %v1082
        %v1084 = vpop.xlane.xlu0 %1083
        %v1085 = vmax.f32 %v992, %v993
        %1086 = vmax.xlane.f32.xlu0 %v1085
        %v1087 = vpop.xlane.xlu0 %1086
        %v1088 = vmax.f32 %v994, %v995
        %1089 = vmax.xlane.f32.xlu0 %v1088
        %v1090 = vpop.xlane.xlu0 %1089
        %v1091 = vmax.f32 %v996, %v997
        %1092 = vmax.xlane.f32.xlu0 %v1091
        %v1093 = vpop.xlane.xlu0 %1092
        %v1094 = vmax.f32 %v998, %v999
        %1095 = vmax.xlane.f32.xlu0 %v1094
        %v1096 = vpop.xlane.xlu0 %1095
        %v1097 = vmax.f32 %v1000, %v1001
        %1098 = vmax.xlane.f32.xlu0 %v1097
        %v1099 = vpop.xlane.xlu0 %1098
        %vm1100 = vcmp.eq.f32.partialorder %v938, %v1006
        %vm1101 = vcmp.eq.f32.partialorder %v939, %v1006
        %vm1102 = vcmp.eq.f32.partialorder %v940, %v1009
        %vm1103 = vcmp.eq.f32.partialorder %v941, %v1009
        %vm1104 = vcmp.eq.f32.partialorder %v942, %v1012
        %vm1105 = vcmp.eq.f32.partialorder %v943, %v1012
        %vm1106 = vcmp.eq.f32.partialorder %v944, %v1015
        %vm1107 = vcmp.eq.f32.partialorder %v945, %v1015
        %vm1108 = vcmp.eq.f32.partialorder %v946, %v1018
        %vm1109 = vcmp.eq.f32.partialorder %v947, %v1018
        %vm1110 = vcmp.eq.f32.partialorder %v948, %v1021
        %vm1111 = vcmp.eq.f32.partialorder %v949, %v1021
        %vm1112 = vcmp.eq.f32.partialorder %v950, %v1024
        %vm1113 = vcmp.eq.f32.partialorder %v951, %v1024
        %vm1114 = vcmp.eq.f32.partialorder %v952, %v1027
        %vm1115 = vcmp.eq.f32.partialorder %v953, %v1027
        %vm1116 = vcmp.eq.f32.partialorder %v954, %v1030
        %vm1117 = vcmp.eq.f32.partialorder %v955, %v1030
        %vm1118 = vcmp.eq.f32.partialorder %v956, %v1033
        %vm1119 = vcmp.eq.f32.partialorder %v957, %v1033
        %vm1120 = vcmp.eq.f32.partialorder %v958, %v1036
        %vm1121 = vcmp.eq.f32.partialorder %v959, %v1036
        %vm1122 = vcmp.eq.f32.partialorder %v960, %v1039
        %vm1123 = vcmp.eq.f32.partialorder %v961, %v1039
        %vm1124 = vcmp.eq.f32.partialorder %v962, %v1042
        %vm1125 = vcmp.eq.f32.partialorder %v963, %v1042
        %vm1126 = vcmp.eq.f32.partialorder %v964, %v1045
        %vm1127 = vcmp.eq.f32.partialorder %v965, %v1045
        %vm1128 = vcmp.eq.f32.partialorder %v966, %v1048
        %vm1129 = vcmp.eq.f32.partialorder %v967, %v1048
        %vm1130 = vcmp.eq.f32.partialorder %v968, %v1051
        %vm1131 = vcmp.eq.f32.partialorder %v969, %v1051
        %vm1132 = vcmp.eq.f32.partialorder %v970, %v1054
        %vm1133 = vcmp.eq.f32.partialorder %v971, %v1054
        %vm1134 = vcmp.eq.f32.partialorder %v972, %v1057
        %vm1135 = vcmp.eq.f32.partialorder %v973, %v1057
        %vm1136 = vcmp.eq.f32.partialorder %v974, %v1060
        %vm1137 = vcmp.eq.f32.partialorder %v975, %v1060
        %vm1138 = vcmp.eq.f32.partialorder %v976, %v1063
        %vm1139 = vcmp.eq.f32.partialorder %v977, %v1063
        %vm1140 = vcmp.eq.f32.partialorder %v978, %v1066
        %vm1141 = vcmp.eq.f32.partialorder %v979, %v1066
        %vm1142 = vcmp.eq.f32.partialorder %v980, %v1069
        %vm1143 = vcmp.eq.f32.partialorder %v981, %v1069
        %vm1144 = vcmp.eq.f32.partialorder %v982, %v1072
        %vm1145 = vcmp.eq.f32.partialorder %v983, %v1072
        %vm1146 = vcmp.eq.f32.partialorder %v984, %v1075
        %vm1147 = vcmp.eq.f32.partialorder %v985, %v1075
        %vm1148 = vcmp.eq.f32.partialorder %v986, %v1078
        %vm1149 = vcmp.eq.f32.partialorder %v987, %v1078
        %vm1150 = vcmp.eq.f32.partialorder %v988, %v1081
        %vm1151 = vcmp.eq.f32.partialorder %v989, %v1081
        %vm1152 = vcmp.eq.f32.partialorder %v990, %v1084
        %vm1153 = vcmp.eq.f32.partialorder %v991, %v1084
        %vm1154 = vcmp.eq.f32.partialorder %v992, %v1087
        %vm1155 = vcmp.eq.f32.partialorder %v993, %v1087
        %vm1156 = vcmp.eq.f32.partialorder %v994, %v1090
        %vm1157 = vcmp.eq.f32.partialorder %v995, %v1090
        %vm1158 = vcmp.eq.f32.partialorder %v996, %v1093
        %vm1159 = vcmp.eq.f32.partialorder %v997, %v1093
        %vm1160 = vcmp.eq.f32.partialorder %v998, %v1096
        %vm1161 = vcmp.eq.f32.partialorder %v999, %v1096
        %vm1162 = vcmp.eq.f32.partialorder %v1000, %v1099
        %vm1163 = vcmp.eq.f32.partialorder %v1001, %v1099
        %v1164 = vsel %vm1100, %v1002, 256.0
        %v1165 = vsel %vm1101, %v1003, 256.0
        %v1166 = vsel %vm1102, %v1002, 256.0
        %v1167 = vsel %vm1103, %v1003, 256.0
        %v1168 = vsel %vm1104, %v1002, 256.0
        %v1169 = vsel %vm1105, %v1003, 256.0
        %v1170 = vsel %vm1106, %v1002, 256.0
        %v1171 = vsel %vm1107, %v1003, 256.0
        %v1172 = vsel %vm1108, %v1002, 256.0
        %v1173 = vsel %vm1109, %v1003, 256.0
        %v1174 = vsel %vm1110, %v1002, 256.0
        %v1175 = vsel %vm1111, %v1003, 256.0
        %v1176 = vsel %vm1112, %v1002, 256.0
        %v1177 = vsel %vm1113, %v1003, 256.0
        %v1178 = vsel %vm1114, %v1002, 256.0
        %v1179 = vsel %vm1115, %v1003, 256.0
        %v1180 = vsel %vm1116, %v1002, 256.0
        %v1181 = vsel %vm1117, %v1003, 256.0
        %v1182 = vsel %vm1118, %v1002, 256.0
        %v1183 = vsel %vm1119, %v1003, 256.0
        %v1184 = vsel %vm1120, %v1002, 256.0
        %v1185 = vsel %vm1121, %v1003, 256.0
        %v1186 = vsel %vm1122, %v1002, 256.0
        %v1187 = vsel %vm1123, %v1003, 256.0
        %v1188 = vsel %vm1124, %v1002, 256.0
        %v1189 = vsel %vm1125, %v1003, 256.0
        %v1190 = vsel %vm1126, %v1002, 256.0
        %v1191 = vsel %vm1127, %v1003, 256.0
        %v1192 = vsel %vm1128, %v1002, 256.0
        %v1193 = vsel %vm1129, %v1003, 256.0
        %v1194 = vsel %vm1130, %v1002, 256.0
        %v1195 = vsel %vm1131, %v1003, 256.0
        %v1196 = vsel %vm1132, %v1002, 256.0
        %v1197 = vsel %vm1133, %v1003, 256.0
        %v1198 = vsel %vm1134, %v1002, 256.0
        %v1199 = vsel %vm1135, %v1003, 256.0
        %v1200 = vsel %vm1136, %v1002, 256.0
        %v1201 = vsel %vm1137, %v1003, 256.0
        %v1202 = vsel %vm1138, %v1002, 256.0
        %v1203 = vsel %vm1139, %v1003, 256.0
        %v1204 = vsel %vm1140, %v1002, 256.0
        %v1205 = vsel %vm1141, %v1003, 256.0
        %v1206 = vsel %vm1142, %v1002, 256.0
        %v1207 = vsel %vm1143, %v1003, 256.0
        %v1208 = vsel %vm1144, %v1002, 256.0
        %v1209 = vsel %vm1145, %v1003, 256.0
        %v1210 = vsel %vm1146, %v1002, 256.0
        %v1211 = vsel %vm1147, %v1003, 256.0
        %v1212 = vsel %vm1148, %v1002, 256.0
        %v1213 = vsel %vm1149, %v1003, 256.0
        %v1214 = vsel %vm1150, %v1002, 256.0
        %v1215 = vsel %vm1151, %v1003, 256.0
        %v1216 = vsel %vm1152, %v1002, 256.0
        %v1217 = vsel %vm1153, %v1003, 256.0
        %v1218 = vsel %vm1154, %v1002, 256.0
        %v1219 = vsel %vm1155, %v1003, 256.0
        %v1220 = vsel %vm1156, %v1002, 256.0
        %v1221 = vsel %vm1157, %v1003, 256.0
        %v1222 = vsel %vm1158, %v1002, 256.0
        %v1223 = vsel %vm1159, %v1003, 256.0
        %v1224 = vsel %vm1160, %v1002, 256.0
        %v1225 = vsel %vm1161, %v1003, 256.0
        %v1226 = vsel %vm1162, %v1002, 256.0
        %v1227 = vsel %vm1163, %v1003, 256.0
        %v1228 = vmin.f32 %v1164, %v1165
        %1229 = vmin.xlane.f32.xlu0 %v1228
        %v1230 = vpop.xlane.xlu0 %1229
        %v1231 = vmin.f32 %v1166, %v1167
        %1232 = vmin.xlane.f32.xlu0 %v1231
        %v1233 = vpop.xlane.xlu0 %1232
        %v1234 = vmin.f32 %v1168, %v1169
        %1235 = vmin.xlane.f32.xlu0 %v1234
        %v1236 = vpop.xlane.xlu0 %1235
        %v1237 = vmin.f32 %v1170, %v1171
        %1238 = vmin.xlane.f32.xlu0 %v1237
        %v1239 = vpop.xlane.xlu0 %1238
        %v1240 = vmin.f32 %v1172, %v1173
        %1241 = vmin.xlane.f32.xlu0 %v1240
        %v1242 = vpop.xlane.xlu0 %1241
        %v1243 = vmin.f32 %v1174, %v1175
        %1244 = vmin.xlane.f32.xlu0 %v1243
        %v1245 = vpop.xlane.xlu0 %1244
        %v1246 = vmin.f32 %v1176, %v1177
        %1247 = vmin.xlane.f32.xlu0 %v1246
        %v1248 = vpop.xlane.xlu0 %1247
        %v1249 = vmin.f32 %v1178, %v1179
        %1250 = vmin.xlane.f32.xlu0 %v1249
        %v1251 = vpop.xlane.xlu0 %1250
        %v1252 = vmin.f32 %v1180, %v1181
        %1253 = vmin.xlane.f32.xlu0 %v1252
        %v1254 = vpop.xlane.xlu0 %1253
        %v1255 = vmin.f32 %v1182, %v1183
        %1256 = vmin.xlane.f32.xlu0 %v1255
        %v1257 = vpop.xlane.xlu0 %1256
        %v1258 = vmin.f32 %v1184, %v1185
        %1259 = vmin.xlane.f32.xlu0 %v1258
        %v1260 = vpop.xlane.xlu0 %1259
        %v1261 = vmin.f32 %v1186, %v1187
        %1262 = vmin.xlane.f32.xlu0 %v1261
        %v1263 = vpop.xlane.xlu0 %1262
        %v1264 = vmin.f32 %v1188, %v1189
        %1265 = vmin.xlane.f32.xlu0 %v1264
        %v1266 = vpop.xlane.xlu0 %1265
        %v1267 = vmin.f32 %v1190, %v1191
        %1268 = vmin.xlane.f32.xlu0 %v1267
        %v1269 = vpop.xlane.xlu0 %1268
        %v1270 = vmin.f32 %v1192, %v1193
        %1271 = vmin.xlane.f32.xlu0 %v1270
        %v1272 = vpop.xlane.xlu0 %1271
        %v1273 = vmin.f32 %v1194, %v1195
        %1274 = vmin.xlane.f32.xlu0 %v1273
        %v1275 = vpop.xlane.xlu0 %1274
        %v1276 = vmin.f32 %v1196, %v1197
        %1277 = vmin.xlane.f32.xlu0 %v1276
        %v1278 = vpop.xlane.xlu0 %1277
        %v1279 = vmin.f32 %v1198, %v1199
        %1280 = vmin.xlane.f32.xlu0 %v1279
        %v1281 = vpop.xlane.xlu0 %1280
        %v1282 = vmin.f32 %v1200, %v1201
        %1283 = vmin.xlane.f32.xlu0 %v1282
        %v1284 = vpop.xlane.xlu0 %1283
        %v1285 = vmin.f32 %v1202, %v1203
        %1286 = vmin.xlane.f32.xlu0 %v1285
        %v1287 = vpop.xlane.xlu0 %1286
        %v1288 = vmin.f32 %v1204, %v1205
        %1289 = vmin.xlane.f32.xlu0 %v1288
        %v1290 = vpop.xlane.xlu0 %1289
        %v1291 = vmin.f32 %v1206, %v1207
        %1292 = vmin.xlane.f32.xlu0 %v1291
        %v1293 = vpop.xlane.xlu0 %1292
        %v1294 = vmin.f32 %v1208, %v1209
        %1295 = vmin.xlane.f32.xlu0 %v1294
        %v1296 = vpop.xlane.xlu0 %1295
        %v1297 = vmin.f32 %v1210, %v1211
        %1298 = vmin.xlane.f32.xlu0 %v1297
        %v1299 = vpop.xlane.xlu0 %1298
        %v1300 = vmin.f32 %v1212, %v1213
        %1301 = vmin.xlane.f32.xlu0 %v1300
        %v1302 = vpop.xlane.xlu0 %1301
        %v1303 = vmin.f32 %v1214, %v1215
        %1304 = vmin.xlane.f32.xlu0 %v1303
        %v1305 = vpop.xlane.xlu0 %1304
        %v1306 = vmin.f32 %v1216, %v1217
        %1307 = vmin.xlane.f32.xlu0 %v1306
        %v1308 = vpop.xlane.xlu0 %1307
        %v1309 = vmin.f32 %v1218, %v1219
        %1310 = vmin.xlane.f32.xlu0 %v1309
        %v1311 = vpop.xlane.xlu0 %1310
        %v1312 = vmin.f32 %v1220, %v1221
        %1313 = vmin.xlane.f32.xlu0 %v1312
        %v1314 = vpop.xlane.xlu0 %1313
        %v1315 = vmin.f32 %v1222, %v1223
        %1316 = vmin.xlane.f32.xlu0 %v1315
        %v1317 = vpop.xlane.xlu0 %1316
        %v1318 = vmin.f32 %v1224, %v1225
        %1319 = vmin.xlane.f32.xlu0 %v1318
        %v1320 = vpop.xlane.xlu0 %1319
        %v1321 = vmin.f32 %v1226, %v1227
        %1322 = vmin.xlane.f32.xlu0 %v1321
        %v1323 = vpop.xlane.xlu0 %1322
        %v1324 = vcvt.f32.s32.to.zero.pseudo %v1230
        %v1325 = vcvt.f32.s32.to.zero.pseudo %v1233
        %v1326 = vcvt.f32.s32.to.zero.pseudo %v1236
        %v1327 = vcvt.f32.s32.to.zero.pseudo %v1239
        %v1328 = vcvt.f32.s32.to.zero.pseudo %v1242
        %v1329 = vcvt.f32.s32.to.zero.pseudo %v1245
        %v1330 = vcvt.f32.s32.to.zero.pseudo %v1248
        %v1331 = vcvt.f32.s32.to.zero.pseudo %v1251
        %v1332 = vcvt.f32.s32.to.zero.pseudo %v1254
        %v1333 = vcvt.f32.s32.to.zero.pseudo %v1257
        %v1334 = vcvt.f32.s32.to.zero.pseudo %v1260
        %v1335 = vcvt.f32.s32.to.zero.pseudo %v1263
        %v1336 = vcvt.f32.s32.to.zero.pseudo %v1266
        %v1337 = vcvt.f32.s32.to.zero.pseudo %v1269
        %v1338 = vcvt.f32.s32.to.zero.pseudo %v1272
        %v1339 = vcvt.f32.s32.to.zero.pseudo %v1275
        %v1340 = vcvt.f32.s32.to.zero.pseudo %v1278
        %v1341 = vcvt.f32.s32.to.zero.pseudo %v1281
        %v1342 = vcvt.f32.s32.to.zero.pseudo %v1284
        %v1343 = vcvt.f32.s32.to.zero.pseudo %v1287
        %v1344 = vcvt.f32.s32.to.zero.pseudo %v1290
        %v1345 = vcvt.f32.s32.to.zero.pseudo %v1293
        %v1346 = vcvt.f32.s32.to.zero.pseudo %v1296
        %v1347 = vcvt.f32.s32.to.zero.pseudo %v1299
        %v1348 = vcvt.f32.s32.to.zero.pseudo %v1302
        %v1349 = vcvt.f32.s32.to.zero.pseudo %v1305
        %v1350 = vcvt.f32.s32.to.zero.pseudo %v1308
        %v1351 = vcvt.f32.s32.to.zero.pseudo %v1311
        %v1352 = vcvt.f32.s32.to.zero.pseudo %v1314
        %v1353 = vcvt.f32.s32.to.zero.pseudo %v1317
        %v1354 = vcvt.f32.s32.to.zero.pseudo %v1320
        %v1355 = vcvt.f32.s32.to.zero.pseudo %v1323
        %vm1356 = vcmask 7168
        %1357 = vst.msk [vmem:[%s226] sm:$0xff] %vm1356, %v1324
        %1358 = vst.msk [vmem:[%s226 + $0x8] sm:$0xff] %vm1356, %v1325
        %1359 = vst.msk [vmem:[%s226 + $0x10] sm:$0xff] %vm1356, %v1326
        %1360 = vst.msk [vmem:[%s226 + $0x18] sm:$0xff] %vm1356, %v1327
        %1361 = vst.msk [vmem:[%s226 + $0x20] sm:$0xff] %vm1356, %v1328
        %1362 = vst.msk [vmem:[%s226 + $0x28] sm:$0xff] %vm1356, %v1329
        %1363 = vst.msk [vmem:[%s226 + $0x30] sm:$0xff] %vm1356, %v1330
        %1364 = vst.msk [vmem:[%s226 + $0x38] sm:$0xff] %vm1356, %v1331
        %1365 = vst.msk [vmem:[%s226 + $0x40] sm:$0xff] %vm1356, %v1332
        %1366 = vst.msk [vmem:[%s226 + $0x48] sm:$0xff] %vm1356, %v1333
        %1367 = vst.msk [vmem:[%s226 + $0x50] sm:$0xff] %vm1356, %v1334
        %1368 = vst.msk [vmem:[%s226 + $0x58] sm:$0xff] %vm1356, %v1335
        %1369 = vst.msk [vmem:[%s226 + $0x60] sm:$0xff] %vm1356, %v1336
        %1370 = vst.msk [vmem:[%s226 + $0x68] sm:$0xff] %vm1356, %v1337
        %1371 = vst.msk [vmem:[%s226 + $0x70] sm:$0xff] %vm1356, %v1338
        %1372 = vst.msk [vmem:[%s226 + $0x78] sm:$0xff] %vm1356, %v1339
        %1373 = vst.msk [vmem:[%s226 + $0x80] sm:$0xff] %vm1356, %v1340
        %1374 = vst.msk [vmem:[%s226 + $0x88] sm:$0xff] %vm1356, %v1341
        %1375 = vst.msk [vmem:[%s226 + $0x90] sm:$0xff] %vm1356, %v1342
        %1376 = vst.msk [vmem:[%s226 + $0x98] sm:$0xff] %vm1356, %v1343
        %1377 = vst.msk [vmem:[%s226 + $0xa0] sm:$0xff] %vm1356, %v1344
        %1378 = vst.msk [vmem:[%s226 + $0xa8] sm:$0xff] %vm1356, %v1345
        %1379 = vst.msk [vmem:[%s226 + $0xb0] sm:$0xff] %vm1356, %v1346
        %1380 = vst.msk [vmem:[%s226 + $0xb8] sm:$0xff] %vm1356, %v1347
        %1381 = vst.msk [vmem:[%s226 + $0xc0] sm:$0xff] %vm1356, %v1348
        %1382 = vst.msk [vmem:[%s226 + $0xc8] sm:$0xff] %vm1356, %v1349
        %1383 = vst.msk [vmem:[%s226 + $0xd0] sm:$0xff] %vm1356, %v1350
        %1384 = vst.msk [vmem:[%s226 + $0xd8] sm:$0xff] %vm1356, %v1351
        %1385 = vst.msk [vmem:[%s226 + $0xe0] sm:$0xff] %vm1356, %v1352
        %1386 = vst.msk [vmem:[%s226 + $0xe8] sm:$0xff] %vm1356, %v1353
        %1387 = vst.msk [vmem:[%s226 + $0xf0] sm:$0xff] %vm1356, %v1354
        %1388 = vst.msk [vmem:[%s226 + $0xf8] sm:$0xff] %vm1356, %v1355
        %vm1389 = vcmp.eq.f32.partialorder %v1002, %v1230
        %vm1390 = vcmp.eq.f32.partialorder %v1003, %v1230
        %vm1391 = vcmp.eq.f32.partialorder %v1002, %v1233
        %vm1392 = vcmp.eq.f32.partialorder %v1003, %v1233
        %vm1393 = vcmp.eq.f32.partialorder %v1002, %v1236
        %vm1394 = vcmp.eq.f32.partialorder %v1003, %v1236
        %vm1395 = vcmp.eq.f32.partialorder %v1002, %v1239
        %vm1396 = vcmp.eq.f32.partialorder %v1003, %v1239
        %vm1397 = vcmp.eq.f32.partialorder %v1002, %v1242
        %vm1398 = vcmp.eq.f32.partialorder %v1003, %v1242
        %vm1399 = vcmp.eq.f32.partialorder %v1002, %v1245
        %vm1400 = vcmp.eq.f32.partialorder %v1003, %v1245
        %vm1401 = vcmp.eq.f32.partialorder %v1002, %v1248
        %vm1402 = vcmp.eq.f32.partialorder %v1003, %v1248
        %vm1403 = vcmp.eq.f32.partialorder %v1002, %v1251
        %vm1404 = vcmp.eq.f32.partialorder %v1003, %v1251
        %vm1405 = vcmp.eq.f32.partialorder %v1002, %v1254
        %vm1406 = vcmp.eq.f32.partialorder %v1003, %v1254
        %vm1407 = vcmp.eq.f32.partialorder %v1002, %v1257
        %vm1408 = vcmp.eq.f32.partialorder %v1003, %v1257
        %vm1409 = vcmp.eq.f32.partialorder %v1002, %v1260
        %vm1410 = vcmp.eq.f32.partialorder %v1003, %v1260
        %vm1411 = vcmp.eq.f32.partialorder %v1002, %v1263
        %vm1412 = vcmp.eq.f32.partialorder %v1003, %v1263
        %vm1413 = vcmp.eq.f32.partialorder %v1002, %v1266
        %vm1414 = vcmp.eq.f32.partialorder %v1003, %v1266
        %vm1415 = vcmp.eq.f32.partialorder %v1002, %v1269
        %vm1416 = vcmp.eq.f32.partialorder %v1003, %v1269
        %vm1417 = vcmp.eq.f32.partialorder %v1002, %v1272
        %vm1418 = vcmp.eq.f32.partialorder %v1003, %v1272
        %vm1419 = vcmp.eq.f32.partialorder %v1002, %v1275
        %vm1420 = vcmp.eq.f32.partialorder %v1003, %v1275
        %vm1421 = vcmp.eq.f32.partialorder %v1002, %v1278
        %vm1422 = vcmp.eq.f32.partialorder %v1003, %v1278
        %vm1423 = vcmp.eq.f32.partialorder %v1002, %v1281
        %vm1424 = vcmp.eq.f32.partialorder %v1003, %v1281
        %vm1425 = vcmp.eq.f32.partialorder %v1002, %v1284
        %vm1426 = vcmp.eq.f32.partialorder %v1003, %v1284
        %vm1427 = vcmp.eq.f32.partialorder %v1002, %v1287
        %vm1428 = vcmp.eq.f32.partialorder %v1003, %v1287
        %vm1429 = vcmp.eq.f32.partialorder %v1002, %v1290
        %vm1430 = vcmp.eq.f32.partialorder %v1003, %v1290
        %vm1431 = vcmp.eq.f32.partialorder %v1002, %v1293
        %vm1432 = vcmp.eq.f32.partialorder %v1003, %v1293
        %vm1433 = vcmp.eq.f32.partialorder %v1002, %v1296
        %vm1434 = vcmp.eq.f32.partialorder %v1003, %v1296
        %vm1435 = vcmp.eq.f32.partialorder %v1002, %v1299
        %vm1436 = vcmp.eq.f32.partialorder %v1003, %v1299
        %vm1437 = vcmp.eq.f32.partialorder %v1002, %v1302
        %vm1438 = vcmp.eq.f32.partialorder %v1003, %v1302
        %vm1439 = vcmp.eq.f32.partialorder %v1002, %v1305
        %vm1440 = vcmp.eq.f32.partialorder %v1003, %v1305
        %vm1441 = vcmp.eq.f32.partialorder %v1002, %v1308
        %vm1442 = vcmp.eq.f32.partialorder %v1003, %v1308
        %vm1443 = vcmp.eq.f32.partialorder %v1002, %v1311
        %vm1444 = vcmp.eq.f32.partialorder %v1003, %v1311
        %vm1445 = vcmp.eq.f32.partialorder %v1002, %v1314
        %vm1446 = vcmp.eq.f32.partialorder %v1003, %v1314
        %vm1447 = vcmp.eq.f32.partialorder %v1002, %v1317
        %vm1448 = vcmp.eq.f32.partialorder %v1003, %v1317
        %vm1449 = vcmp.eq.f32.partialorder %v1002, %v1320
        %vm1450 = vcmp.eq.f32.partialorder %v1003, %v1320
        %vm1451 = vcmp.eq.f32.partialorder %v1002, %v1323
        %vm1452 = vcmp.eq.f32.partialorder %v1003, %v1323
        %v1453 = vsel %vm1389, -3e+38, %v938
        %v1454 = vsel %vm1390, -3e+38, %v939
        %v1455 = vsel %vm1391, -3e+38, %v940
        %v1456 = vsel %vm1392, -3e+38, %v941
        %v1457 = vsel %vm1393, -3e+38, %v942
        %v1458 = vsel %vm1394, -3e+38, %v943
        %v1459 = vsel %vm1395, -3e+38, %v944
        %v1460 = vsel %vm1396, -3e+38, %v945
        %v1461 = vsel %vm1397, -3e+38, %v946
        %v1462 = vsel %vm1398, -3e+38, %v947
        %v1463 = vsel %vm1399, -3e+38, %v948
        %v1464 = vsel %vm1400, -3e+38, %v949
        %v1465 = vsel %vm1401, -3e+38, %v950
        %v1466 = vsel %vm1402, -3e+38, %v951
        %v1467 = vsel %vm1403, -3e+38, %v952
        %v1468 = vsel %vm1404, -3e+38, %v953
        %v1469 = vsel %vm1405, -3e+38, %v954
        %v1470 = vsel %vm1406, -3e+38, %v955
        %v1471 = vsel %vm1407, -3e+38, %v956
        %v1472 = vsel %vm1408, -3e+38, %v957
        %v1473 = vsel %vm1409, -3e+38, %v958
        %v1474 = vsel %vm1410, -3e+38, %v959
        %v1475 = vsel %vm1411, -3e+38, %v960
        %v1476 = vsel %vm1412, -3e+38, %v961
        %v1477 = vsel %vm1413, -3e+38, %v962
        %v1478 = vsel %vm1414, -3e+38, %v963
        %v1479 = vsel %vm1415, -3e+38, %v964
        %v1480 = vsel %vm1416, -3e+38, %v965
        %v1481 = vsel %vm1417, -3e+38, %v966
        %v1482 = vsel %vm1418, -3e+38, %v967
        %v1483 = vsel %vm1419, -3e+38, %v968
        %v1484 = vsel %vm1420, -3e+38, %v969
        %v1485 = vsel %vm1421, -3e+38, %v970
        %v1486 = vsel %vm1422, -3e+38, %v971
        %v1487 = vsel %vm1423, -3e+38, %v972
        %v1488 = vsel %vm1424, -3e+38, %v973
        %v1489 = vsel %vm1425, -3e+38, %v974
        %v1490 = vsel %vm1426, -3e+38, %v975
        %v1491 = vsel %vm1427, -3e+38, %v976
        %v1492 = vsel %vm1428, -3e+38, %v977
        %v1493 = vsel %vm1429, -3e+38, %v978
        %v1494 = vsel %vm1430, -3e+38, %v979
        %v1495 = vsel %vm1431, -3e+38, %v980
        %v1496 = vsel %vm1432, -3e+38, %v981
        %v1497 = vsel %vm1433, -3e+38, %v982
        %v1498 = vsel %vm1434, -3e+38, %v983
        %v1499 = vsel %vm1435, -3e+38, %v984
        %v1500 = vsel %vm1436, -3e+38, %v985
        %v1501 = vsel %vm1437, -3e+38, %v986
        %v1502 = vsel %vm1438, -3e+38, %v987
        %v1503 = vsel %vm1439, -3e+38, %v988
        %v1504 = vsel %vm1440, -3e+38, %v989
        %v1505 = vsel %vm1441, -3e+38, %v990
        %v1506 = vsel %vm1442, -3e+38, %v991
        %v1507 = vsel %vm1443, -3e+38, %v992
        %v1508 = vsel %vm1444, -3e+38, %v993
        %v1509 = vsel %vm1445, -3e+38, %v994
        %v1510 = vsel %vm1446, -3e+38, %v995
        %v1511 = vsel %vm1447, -3e+38, %v996
        %v1512 = vsel %vm1448, -3e+38, %v997
        %v1513 = vsel %vm1449, -3e+38, %v998
        %v1514 = vsel %vm1450, -3e+38, %v999
        %v1515 = vsel %vm1451, -3e+38, %v1000
        %v1516 = vsel %vm1452, -3e+38, %v1001
        %v1517 = vmax.f32 %v1453, %v1454
        %1518 = vmax.xlane.f32.xlu0 %v1517
        %v1519 = vpop.xlane.xlu0 %1518
        %v1520 = vmax.f32 %v1455, %v1456
        %1521 = vmax.xlane.f32.xlu0 %v1520
        %v1522 = vpop.xlane.xlu0 %1521
        %v1523 = vmax.f32 %v1457, %v1458
        %1524 = vmax.xlane.f32.xlu0 %v1523
        %v1525 = vpop.xlane.xlu0 %1524
        %v1526 = vmax.f32 %v1459, %v1460
        %1527 = vmax.xlane.f32.xlu0 %v1526
        %v1528 = vpop.xlane.xlu0 %1527
        %v1529 = vmax.f32 %v1461, %v1462
        %1530 = vmax.xlane.f32.xlu0 %v1529
        %v1531 = vpop.xlane.xlu0 %1530
        %v1532 = vmax.f32 %v1463, %v1464
        %1533 = vmax.xlane.f32.xlu0 %v1532
        %v1534 = vpop.xlane.xlu0 %1533
        %v1535 = vmax.f32 %v1465, %v1466
        %1536 = vmax.xlane.f32.xlu0 %v1535
        %v1537 = vpop.xlane.xlu0 %1536
        %v1538 = vmax.f32 %v1467, %v1468
        %1539 = vmax.xlane.f32.xlu0 %v1538
        %v1540 = vpop.xlane.xlu0 %1539
        %v1541 = vmax.f32 %v1469, %v1470
        %1542 = vmax.xlane.f32.xlu0 %v1541
        %v1543 = vpop.xlane.xlu0 %1542
        %v1544 = vmax.f32 %v1471, %v1472
        %1545 = vmax.xlane.f32.xlu0 %v1544
        %v1546 = vpop.xlane.xlu0 %1545
        %v1547 = vmax.f32 %v1473, %v1474
        %1548 = vmax.xlane.f32.xlu0 %v1547
        %v1549 = vpop.xlane.xlu0 %1548
        %v1550 = vmax.f32 %v1475, %v1476
        %1551 = vmax.xlane.f32.xlu0 %v1550
        %v1552 = vpop.xlane.xlu0 %1551
        %v1553 = vmax.f32 %v1477, %v1478
        %1554 = vmax.xlane.f32.xlu0 %v1553
        %v1555 = vpop.xlane.xlu0 %1554
        %v1556 = vmax.f32 %v1479, %v1480
        %1557 = vmax.xlane.f32.xlu0 %v1556
        %v1558 = vpop.xlane.xlu0 %1557
        %v1559 = vmax.f32 %v1481, %v1482
        %1560 = vmax.xlane.f32.xlu0 %v1559
        %v1561 = vpop.xlane.xlu0 %1560
        %v1562 = vmax.f32 %v1483, %v1484
        %1563 = vmax.xlane.f32.xlu0 %v1562
        %v1564 = vpop.xlane.xlu0 %1563
        %v1565 = vmax.f32 %v1485, %v1486
        %1566 = vmax.xlane.f32.xlu0 %v1565
        %v1567 = vpop.xlane.xlu0 %1566
        %v1568 = vmax.f32 %v1487, %v1488
        %1569 = vmax.xlane.f32.xlu0 %v1568
        %v1570 = vpop.xlane.xlu0 %1569
        %v1571 = vmax.f32 %v1489, %v1490
        %1572 = vmax.xlane.f32.xlu0 %v1571
        %v1573 = vpop.xlane.xlu0 %1572
        %v1574 = vmax.f32 %v1491, %v1492
        %1575 = vmax.xlane.f32.xlu0 %v1574
        %v1576 = vpop.xlane.xlu0 %1575
        %v1577 = vmax.f32 %v1493, %v1494
        %1578 = vmax.xlane.f32.xlu0 %v1577
        %v1579 = vpop.xlane.xlu0 %1578
        %v1580 = vmax.f32 %v1495, %v1496
        %1581 = vmax.xlane.f32.xlu0 %v1580
        %v1582 = vpop.xlane.xlu0 %1581
        %v1583 = vmax.f32 %v1497, %v1498
        %1584 = vmax.xlane.f32.xlu0 %v1583
        %v1585 = vpop.xlane.xlu0 %1584
        %v1586 = vmax.f32 %v1499, %v1500
        %1587 = vmax.xlane.f32.xlu0 %v1586
        %v1588 = vpop.xlane.xlu0 %1587
        %v1589 = vmax.f32 %v1501, %v1502
        %1590 = vmax.xlane.f32.xlu0 %v1589
        %v1591 = vpop.xlane.xlu0 %1590
        %v1592 = vmax.f32 %v1503, %v1504
        %1593 = vmax.xlane.f32.xlu0 %v1592
        %v1594 = vpop.xlane.xlu0 %1593
        %v1595 = vmax.f32 %v1505, %v1506
        %1596 = vmax.xlane.f32.xlu0 %v1595
        %v1597 = vpop.xlane.xlu0 %1596
        %v1598 = vmax.f32 %v1507, %v1508
        %1599 = vmax.xlane.f32.xlu0 %v1598
        %v1600 = vpop.xlane.xlu0 %1599
        %v1601 = vmax.f32 %v1509, %v1510
        %1602 = vmax.xlane.f32.xlu0 %v1601
        %v1603 = vpop.xlane.xlu0 %1602
        %v1604 = vmax.f32 %v1511, %v1512
        %1605 = vmax.xlane.f32.xlu0 %v1604
        %v1606 = vpop.xlane.xlu0 %1605
        %v1607 = vmax.f32 %v1513, %v1514
        %1608 = vmax.xlane.f32.xlu0 %v1607
        %v1609 = vpop.xlane.xlu0 %1608
        %v1610 = vmax.f32 %v1515, %v1516
        %1611 = vmax.xlane.f32.xlu0 %v1610
        %v1612 = vpop.xlane.xlu0 %1611
        %vm1613 = vcmp.eq.f32.partialorder %v1453, %v1519
        %vm1614 = vcmp.eq.f32.partialorder %v1454, %v1519
        %vm1615 = vcmp.eq.f32.partialorder %v1455, %v1522
        %vm1616 = vcmp.eq.f32.partialorder %v1456, %v1522
        %vm1617 = vcmp.eq.f32.partialorder %v1457, %v1525
        %vm1618 = vcmp.eq.f32.partialorder %v1458, %v1525
        %vm1619 = vcmp.eq.f32.partialorder %v1459, %v1528
        %vm1620 = vcmp.eq.f32.partialorder %v1460, %v1528
        %vm1621 = vcmp.eq.f32.partialorder %v1461, %v1531
        %vm1622 = vcmp.eq.f32.partialorder %v1462, %v1531
        %vm1623 = vcmp.eq.f32.partialorder %v1463, %v1534
        %vm1624 = vcmp.eq.f32.partialorder %v1464, %v1534
        %vm1625 = vcmp.eq.f32.partialorder %v1465, %v1537
        %vm1626 = vcmp.eq.f32.partialorder %v1466, %v1537
        %vm1627 = vcmp.eq.f32.partialorder %v1467, %v1540
        %vm1628 = vcmp.eq.f32.partialorder %v1468, %v1540
        %vm1629 = vcmp.eq.f32.partialorder %v1469, %v1543
        %vm1630 = vcmp.eq.f32.partialorder %v1470, %v1543
        %vm1631 = vcmp.eq.f32.partialorder %v1471, %v1546
        %vm1632 = vcmp.eq.f32.partialorder %v1472, %v1546
        %vm1633 = vcmp.eq.f32.partialorder %v1473, %v1549
        %vm1634 = vcmp.eq.f32.partialorder %v1474, %v1549
        %vm1635 = vcmp.eq.f32.partialorder %v1475, %v1552
        %vm1636 = vcmp.eq.f32.partialorder %v1476, %v1552
        %vm1637 = vcmp.eq.f32.partialorder %v1477, %v1555
        %vm1638 = vcmp.eq.f32.partialorder %v1478, %v1555
        %vm1639 = vcmp.eq.f32.partialorder %v1479, %v1558
        %vm1640 = vcmp.eq.f32.partialorder %v1480, %v1558
        %vm1641 = vcmp.eq.f32.partialorder %v1481, %v1561
        %vm1642 = vcmp.eq.f32.partialorder %v1482, %v1561
        %vm1643 = vcmp.eq.f32.partialorder %v1483, %v1564
        %vm1644 = vcmp.eq.f32.partialorder %v1484, %v1564
        %vm1645 = vcmp.eq.f32.partialorder %v1485, %v1567
        %vm1646 = vcmp.eq.f32.partialorder %v1486, %v1567
        %vm1647 = vcmp.eq.f32.partialorder %v1487, %v1570
        %vm1648 = vcmp.eq.f32.partialorder %v1488, %v1570
        %vm1649 = vcmp.eq.f32.partialorder %v1489, %v1573
        %vm1650 = vcmp.eq.f32.partialorder %v1490, %v1573
        %vm1651 = vcmp.eq.f32.partialorder %v1491, %v1576
        %vm1652 = vcmp.eq.f32.partialorder %v1492, %v1576
        %vm1653 = vcmp.eq.f32.partialorder %v1493, %v1579
        %vm1654 = vcmp.eq.f32.partialorder %v1494, %v1579
        %vm1655 = vcmp.eq.f32.partialorder %v1495, %v1582
        %vm1656 = vcmp.eq.f32.partialorder %v1496, %v1582
        %vm1657 = vcmp.eq.f32.partialorder %v1497, %v1585
        %vm1658 = vcmp.eq.f32.partialorder %v1498, %v1585
        %vm1659 = vcmp.eq.f32.partialorder %v1499, %v1588
        %vm1660 = vcmp.eq.f32.partialorder %v1500, %v1588
        %vm1661 = vcmp.eq.f32.partialorder %v1501, %v1591
        %vm1662 = vcmp.eq.f32.partialorder %v1502, %v1591
        %vm1663 = vcmp.eq.f32.partialorder %v1503, %v1594
        %vm1664 = vcmp.eq.f32.partialorder %v1504, %v1594
        %vm1665 = vcmp.eq.f32.partialorder %v1505, %v1597
        %vm1666 = vcmp.eq.f32.partialorder %v1506, %v1597
        %vm1667 = vcmp.eq.f32.partialorder %v1507, %v1600
        %vm1668 = vcmp.eq.f32.partialorder %v1508, %v1600
        %vm1669 = vcmp.eq.f32.partialorder %v1509, %v1603
        %vm1670 = vcmp.eq.f32.partialorder %v1510, %v1603
        %vm1671 = vcmp.eq.f32.partialorder %v1511, %v1606
        %vm1672 = vcmp.eq.f32.partialorder %v1512, %v1606
        %vm1673 = vcmp.eq.f32.partialorder %v1513, %v1609
        %vm1674 = vcmp.eq.f32.partialorder %v1514, %v1609
        %vm1675 = vcmp.eq.f32.partialorder %v1515, %v1612
        %vm1676 = vcmp.eq.f32.partialorder %v1516, %v1612
        %v1677 = vsel %vm1613, %v1002, 256.0
        %v1678 = vsel %vm1614, %v1003, 256.0
        %v1679 = vsel %vm1615, %v1002, 256.0
        %v1680 = vsel %vm1616, %v1003, 256.0
        %v1681 = vsel %vm1617, %v1002, 256.0
        %v1682 = vsel %vm1618, %v1003, 256.0
        %v1683 = vsel %vm1619, %v1002, 256.0
        %v1684 = vsel %vm1620, %v1003, 256.0
        %v1685 = vsel %vm1621, %v1002, 256.0
        %v1686 = vsel %vm1622, %v1003, 256.0
        %v1687 = vsel %vm1623, %v1002, 256.0
        %v1688 = vsel %vm1624, %v1003, 256.0
        %v1689 = vsel %vm1625, %v1002, 256.0
        %v1690 = vsel %vm1626, %v1003, 256.0
        %v1691 = vsel %vm1627, %v1002, 256.0
        %v1692 = vsel %vm1628, %v1003, 256.0
        %v1693 = vsel %vm1629, %v1002, 256.0
        %v1694 = vsel %vm1630, %v1003, 256.0
        %v1695 = vsel %vm1631, %v1002, 256.0
        %v1696 = vsel %vm1632, %v1003, 256.0
        %v1697 = vsel %vm1633, %v1002, 256.0
        %v1698 = vsel %vm1634, %v1003, 256.0
        %v1699 = vsel %vm1635, %v1002, 256.0
        %v1700 = vsel %vm1636, %v1003, 256.0
        %v1701 = vsel %vm1637, %v1002, 256.0
        %v1702 = vsel %vm1638, %v1003, 256.0
        %v1703 = vsel %vm1639, %v1002, 256.0
        %v1704 = vsel %vm1640, %v1003, 256.0
        %v1705 = vsel %vm1641, %v1002, 256.0
        %v1706 = vsel %vm1642, %v1003, 256.0
        %v1707 = vsel %vm1643, %v1002, 256.0
        %v1708 = vsel %vm1644, %v1003, 256.0
        %v1709 = vsel %vm1645, %v1002, 256.0
        %v1710 = vsel %vm1646, %v1003, 256.0
        %v1711 = vsel %vm1647, %v1002, 256.0
        %v1712 = vsel %vm1648, %v1003, 256.0
        %v1713 = vsel %vm1649, %v1002, 256.0
        %v1714 = vsel %vm1650, %v1003, 256.0
        %v1715 = vsel %vm1651, %v1002, 256.0
        %v1716 = vsel %vm1652, %v1003, 256.0
        %v1717 = vsel %vm1653, %v1002, 256.0
        %v1718 = vsel %vm1654, %v1003, 256.0
        %v1719 = vsel %vm1655, %v1002, 256.0
        %v1720 = vsel %vm1656, %v1003, 256.0
        %v1721 = vsel %vm1657, %v1002, 256.0
        %v1722 = vsel %vm1658, %v1003, 256.0
        %v1723 = vsel %vm1659, %v1002, 256.0
        %v1724 = vsel %vm1660, %v1003, 256.0
        %v1725 = vsel %vm1661, %v1002, 256.0
        %v1726 = vsel %vm1662, %v1003, 256.0
        %v1727 = vsel %vm1663, %v1002, 256.0
        %v1728 = vsel %vm1664, %v1003, 256.0
        %v1729 = vsel %vm1665, %v1002, 256.0
        %v1730 = vsel %vm1666, %v1003, 256.0
        %v1731 = vsel %vm1667, %v1002, 256.0
        %v1732 = vsel %vm1668, %v1003, 256.0
        %v1733 = vsel %vm1669, %v1002, 256.0
        %v1734 = vsel %vm1670, %v1003, 256.0
        %v1735 = vsel %vm1671, %v1002, 256.0
        %v1736 = vsel %vm1672, %v1003, 256.0
        %v1737 = vsel %vm1673, %v1002, 256.0
        %v1738 = vsel %vm1674, %v1003, 256.0
        %v1739 = vsel %vm1675, %v1002, 256.0
        %v1740 = vsel %vm1676, %v1003, 256.0
        %v1741 = vmin.f32 %v1677, %v1678
        %1742 = vmin.xlane.f32.xlu0 %v1741
        %v1743 = vpop.xlane.xlu0 %1742
        %v1744 = vmin.f32 %v1679, %v1680
        %1745 = vmin.xlane.f32.xlu0 %v1744
        %v1746 = vpop.xlane.xlu0 %1745
        %v1747 = vmin.f32 %v1681, %v1682
        %1748 = vmin.xlane.f32.xlu0 %v1747
        %v1749 = vpop.xlane.xlu0 %1748
        %v1750 = vmin.f32 %v1683, %v1684
        %1751 = vmin.xlane.f32.xlu0 %v1750
        %v1752 = vpop.xlane.xlu0 %1751
        %v1753 = vmin.f32 %v1685, %v1686
        %1754 = vmin.xlane.f32.xlu0 %v1753
        %v1755 = vpop.xlane.xlu0 %1754
        %v1756 = vmin.f32 %v1687, %v1688
        %1757 = vmin.xlane.f32.xlu0 %v1756
        %v1758 = vpop.xlane.xlu0 %1757
        %v1759 = vmin.f32 %v1689, %v1690
        %1760 = vmin.xlane.f32.xlu0 %v1759
        %v1761 = vpop.xlane.xlu0 %1760
        %v1762 = vmin.f32 %v1691, %v1692
        %1763 = vmin.xlane.f32.xlu0 %v1762
        %v1764 = vpop.xlane.xlu0 %1763
        %v1765 = vmin.f32 %v1693, %v1694
        %1766 = vmin.xlane.f32.xlu0 %v1765
        %v1767 = vpop.xlane.xlu0 %1766
        %v1768 = vmin.f32 %v1695, %v1696
        %1769 = vmin.xlane.f32.xlu0 %v1768
        %v1770 = vpop.xlane.xlu0 %1769
        %v1771 = vmin.f32 %v1697, %v1698
        %1772 = vmin.xlane.f32.xlu0 %v1771
        %v1773 = vpop.xlane.xlu0 %1772
        %v1774 = vmin.f32 %v1699, %v1700
        %1775 = vmin.xlane.f32.xlu0 %v1774
        %v1776 = vpop.xlane.xlu0 %1775
        %v1777 = vmin.f32 %v1701, %v1702
        %1778 = vmin.xlane.f32.xlu0 %v1777
        %v1779 = vpop.xlane.xlu0 %1778
        %v1780 = vmin.f32 %v1703, %v1704
        %1781 = vmin.xlane.f32.xlu0 %v1780
        %v1782 = vpop.xlane.xlu0 %1781
        %v1783 = vmin.f32 %v1705, %v1706
        %1784 = vmin.xlane.f32.xlu0 %v1783
        %v1785 = vpop.xlane.xlu0 %1784
        %v1786 = vmin.f32 %v1707, %v1708
        %1787 = vmin.xlane.f32.xlu0 %v1786
        %v1788 = vpop.xlane.xlu0 %1787
        %v1789 = vmin.f32 %v1709, %v1710
        %1790 = vmin.xlane.f32.xlu0 %v1789
        %v1791 = vpop.xlane.xlu0 %1790
        %v1792 = vmin.f32 %v1711, %v1712
        %1793 = vmin.xlane.f32.xlu0 %v1792
        %v1794 = vpop.xlane.xlu0 %1793
        %v1795 = vmin.f32 %v1713, %v1714
        %1796 = vmin.xlane.f32.xlu0 %v1795
        %v1797 = vpop.xlane.xlu0 %1796
        %v1798 = vmin.f32 %v1715, %v1716
        %1799 = vmin.xlane.f32.xlu0 %v1798
        %v1800 = vpop.xlane.xlu0 %1799
        %v1801 = vmin.f32 %v1717, %v1718
        %1802 = vmin.xlane.f32.xlu0 %v1801
        %v1803 = vpop.xlane.xlu0 %1802
        %v1804 = vmin.f32 %v1719, %v1720
        %1805 = vmin.xlane.f32.xlu0 %v1804
        %v1806 = vpop.xlane.xlu0 %1805
        %v1807 = vmin.f32 %v1721, %v1722
        %1808 = vmin.xlane.f32.xlu0 %v1807
        %v1809 = vpop.xlane.xlu0 %1808
        %v1810 = vmin.f32 %v1723, %v1724
        %1811 = vmin.xlane.f32.xlu0 %v1810
        %v1812 = vpop.xlane.xlu0 %1811
        %v1813 = vmin.f32 %v1725, %v1726
        %1814 = vmin.xlane.f32.xlu0 %v1813
        %v1815 = vpop.xlane.xlu0 %1814
        %v1816 = vmin.f32 %v1727, %v1728
        %1817 = vmin.xlane.f32.xlu0 %v1816
        %v1818 = vpop.xlane.xlu0 %1817
        %v1819 = vmin.f32 %v1729, %v1730
        %1820 = vmin.xlane.f32.xlu0 %v1819
        %v1821 = vpop.xlane.xlu0 %1820
        %v1822 = vmin.f32 %v1731, %v1732
        %1823 = vmin.xlane.f32.xlu0 %v1822
        %v1824 = vpop.xlane.xlu0 %1823
        %v1825 = vmin.f32 %v1733, %v1734
        %1826 = vmin.xlane.f32.xlu0 %v1825
        %v1827 = vpop.xlane.xlu0 %1826
        %v1828 = vmin.f32 %v1735, %v1736
        %1829 = vmin.xlane.f32.xlu0 %v1828
        %v1830 = vpop.xlane.xlu0 %1829
        %v1831 = vmin.f32 %v1737, %v1738
        %1832 = vmin.xlane.f32.xlu0 %v1831
        %v1833 = vpop.xlane.xlu0 %1832
        %v1834 = vmin.f32 %v1739, %v1740
        %1835 = vmin.xlane.f32.xlu0 %v1834
        %v1836 = vpop.xlane.xlu0 %1835
        %v1837 = vcvt.f32.s32.to.zero.pseudo %v1743
        %v1838 = vcvt.f32.s32.to.zero.pseudo %v1746
        %v1839 = vcvt.f32.s32.to.zero.pseudo %v1749
        %v1840 = vcvt.f32.s32.to.zero.pseudo %v1752
        %v1841 = vcvt.f32.s32.to.zero.pseudo %v1755
        %v1842 = vcvt.f32.s32.to.zero.pseudo %v1758
        %v1843 = vcvt.f32.s32.to.zero.pseudo %v1761
        %v1844 = vcvt.f32.s32.to.zero.pseudo %v1764
        %v1845 = vcvt.f32.s32.to.zero.pseudo %v1767
        %v1846 = vcvt.f32.s32.to.zero.pseudo %v1770
        %v1847 = vcvt.f32.s32.to.zero.pseudo %v1773
        %v1848 = vcvt.f32.s32.to.zero.pseudo %v1776
        %v1849 = vcvt.f32.s32.to.zero.pseudo %v1779
        %v1850 = vcvt.f32.s32.to.zero.pseudo %v1782
        %v1851 = vcvt.f32.s32.to.zero.pseudo %v1785
        %v1852 = vcvt.f32.s32.to.zero.pseudo %v1788
        %v1853 = vcvt.f32.s32.to.zero.pseudo %v1791
        %v1854 = vcvt.f32.s32.to.zero.pseudo %v1794
        %v1855 = vcvt.f32.s32.to.zero.pseudo %v1797
        %v1856 = vcvt.f32.s32.to.zero.pseudo %v1800
        %v1857 = vcvt.f32.s32.to.zero.pseudo %v1803
        %v1858 = vcvt.f32.s32.to.zero.pseudo %v1806
        %v1859 = vcvt.f32.s32.to.zero.pseudo %v1809
        %v1860 = vcvt.f32.s32.to.zero.pseudo %v1812
        %v1861 = vcvt.f32.s32.to.zero.pseudo %v1815
        %v1862 = vcvt.f32.s32.to.zero.pseudo %v1818
        %v1863 = vcvt.f32.s32.to.zero.pseudo %v1821
        %v1864 = vcvt.f32.s32.to.zero.pseudo %v1824
        %v1865 = vcvt.f32.s32.to.zero.pseudo %v1827
        %v1866 = vcvt.f32.s32.to.zero.pseudo %v1830
        %v1867 = vcvt.f32.s32.to.zero.pseudo %v1833
        %v1868 = vcvt.f32.s32.to.zero.pseudo %v1836
        %vm1869 = vcmask 15368
        %1870 = vst.msk [vmem:[%s226] sm:$0xff] %vm1869, %v1837
        %1871 = vst.msk [vmem:[%s226 + $0x8] sm:$0xff] %vm1869, %v1838
        %1872 = vst.msk [vmem:[%s226 + $0x10] sm:$0xff] %vm1869, %v1839
        %1873 = vst.msk [vmem:[%s226 + $0x18] sm:$0xff] %vm1869, %v1840
        %1874 = vst.msk [vmem:[%s226 + $0x20] sm:$0xff] %vm1869, %v1841
        %1875 = vst.msk [vmem:[%s226 + $0x28] sm:$0xff] %vm1869, %v1842
        %1876 = vst.msk [vmem:[%s226 + $0x30] sm:$0xff] %vm1869, %v1843
        %1877 = vst.msk [vmem:[%s226 + $0x38] sm:$0xff] %vm1869, %v1844
        %1878 = vst.msk [vmem:[%s226 + $0x40] sm:$0xff] %vm1869, %v1845
        %1879 = vst.msk [vmem:[%s226 + $0x48] sm:$0xff] %vm1869, %v1846
        %1880 = vst.msk [vmem:[%s226 + $0x50] sm:$0xff] %vm1869, %v1847
        %1881 = vst.msk [vmem:[%s226 + $0x58] sm:$0xff] %vm1869, %v1848
        %1882 = vst.msk [vmem:[%s226 + $0x60] sm:$0xff] %vm1869, %v1849
        %1883 = vst.msk [vmem:[%s226 + $0x68] sm:$0xff] %vm1869, %v1850
        %1884 = vst.msk [vmem:[%s226 + $0x70] sm:$0xff] %vm1869, %v1851
        %1885 = vst.msk [vmem:[%s226 + $0x78] sm:$0xff] %vm1869, %v1852
        %1886 = vst.msk [vmem:[%s226 + $0x80] sm:$0xff] %vm1869, %v1853
        %1887 = vst.msk [vmem:[%s226 + $0x88] sm:$0xff] %vm1869, %v1854
        %1888 = vst.msk [vmem:[%s226 + $0x90] sm:$0xff] %vm1869, %v1855
        %1889 = vst.msk [vmem:[%s226 + $0x98] sm:$0xff] %vm1869, %v1856
        %1890 = vst.msk [vmem:[%s226 + $0xa0] sm:$0xff] %vm1869, %v1857
        %1891 = vst.msk [vmem:[%s226 + $0xa8] sm:$0xff] %vm1869, %v1858
        %1892 = vst.msk [vmem:[%s226 + $0xb0] sm:$0xff] %vm1869, %v1859
        %1893 = vst.msk [vmem:[%s226 + $0xb8] sm:$0xff] %vm1869, %v1860
        %1894 = vst.msk [vmem:[%s226 + $0xc0] sm:$0xff] %vm1869, %v1861
        %1895 = vst.msk [vmem:[%s226 + $0xc8] sm:$0xff] %vm1869, %v1862
        %1896 = vst.msk [vmem:[%s226 + $0xd0] sm:$0xff] %vm1869, %v1863
        %1897 = vst.msk [vmem:[%s226 + $0xd8] sm:$0xff] %vm1869, %v1864
        %1898 = vst.msk [vmem:[%s226 + $0xe0] sm:$0xff] %vm1869, %v1865
        %1899 = vst.msk [vmem:[%s226 + $0xe8] sm:$0xff] %vm1869, %v1866
        %1900 = vst.msk [vmem:[%s226 + $0xf0] sm:$0xff] %vm1869, %v1867
        %1901 = vst.msk [vmem:[%s226 + $0xf8] sm:$0xff] %vm1869, %v1868
        %vm1902 = vcmp.eq.f32.partialorder %v1002, %v1743
        %vm1903 = vcmp.eq.f32.partialorder %v1003, %v1743
        %vm1904 = vcmp.eq.f32.partialorder %v1002, %v1746
        %vm1905 = vcmp.eq.f32.partialorder %v1003, %v1746
        %vm1906 = vcmp.eq.f32.partialorder %v1002, %v1749
        %vm1907 = vcmp.eq.f32.partialorder %v1003, %v1749
        %vm1908 = vcmp.eq.f32.partialorder %v1002, %v1752
        %vm1909 = vcmp.eq.f32.partialorder %v1003, %v1752
        %vm1910 = vcmp.eq.f32.partialorder %v1002, %v1755
        %vm1911 = vcmp.eq.f32.partialorder %v1003, %v1755
        %vm1912 = vcmp.eq.f32.partialorder %v1002, %v1758
        %vm1913 = vcmp.eq.f32.partialorder %v1003, %v1758
        %vm1914 = vcmp.eq.f32.partialorder %v1002, %v1761
        %vm1915 = vcmp.eq.f32.partialorder %v1003, %v1761
        %vm1916 = vcmp.eq.f32.partialorder %v1002, %v1764
        %vm1917 = vcmp.eq.f32.partialorder %v1003, %v1764
        %vm1918 = vcmp.eq.f32.partialorder %v1002, %v1767
        %vm1919 = vcmp.eq.f32.partialorder %v1003, %v1767
        %vm1920 = vcmp.eq.f32.partialorder %v1002, %v1770
        %vm1921 = vcmp.eq.f32.partialorder %v1003, %v1770
        %vm1922 = vcmp.eq.f32.partialorder %v1002, %v1773
        %vm1923 = vcmp.eq.f32.partialorder %v1003, %v1773
        %vm1924 = vcmp.eq.f32.partialorder %v1002, %v1776
        %vm1925 = vcmp.eq.f32.partialorder %v1003, %v1776
        %vm1926 = vcmp.eq.f32.partialorder %v1002, %v1779
        %vm1927 = vcmp.eq.f32.partialorder %v1003, %v1779
        %vm1928 = vcmp.eq.f32.partialorder %v1002, %v1782
        %vm1929 = vcmp.eq.f32.partialorder %v1003, %v1782
        %vm1930 = vcmp.eq.f32.partialorder %v1002, %v1785
        %vm1931 = vcmp.eq.f32.partialorder %v1003, %v1785
        %vm1932 = vcmp.eq.f32.partialorder %v1002, %v1788
        %vm1933 = vcmp.eq.f32.partialorder %v1003, %v1788
        %vm1934 = vcmp.eq.f32.partialorder %v1002, %v1791
        %vm1935 = vcmp.eq.f32.partialorder %v1003, %v1791
        %vm1936 = vcmp.eq.f32.partialorder %v1002, %v1794
        %vm1937 = vcmp.eq.f32.partialorder %v1003, %v1794
        %vm1938 = vcmp.eq.f32.partialorder %v1002, %v1797
        %vm1939 = vcmp.eq.f32.partialorder %v1003, %v1797
        %vm1940 = vcmp.eq.f32.partialorder %v1002, %v1800
        %vm1941 = vcmp.eq.f32.partialorder %v1003, %v1800
        %vm1942 = vcmp.eq.f32.partialorder %v1002, %v1803
        %vm1943 = vcmp.eq.f32.partialorder %v1003, %v1803
        %vm1944 = vcmp.eq.f32.partialorder %v1002, %v1806
        %vm1945 = vcmp.eq.f32.partialorder %v1003, %v1806
        %vm1946 = vcmp.eq.f32.partialorder %v1002, %v1809
        %vm1947 = vcmp.eq.f32.partialorder %v1003, %v1809
        %vm1948 = vcmp.eq.f32.partialorder %v1002, %v1812
        %vm1949 = vcmp.eq.f32.partialorder %v1003, %v1812
        %vm1950 = vcmp.eq.f32.partialorder %v1002, %v1815
        %vm1951 = vcmp.eq.f32.partialorder %v1003, %v1815
        %vm1952 = vcmp.eq.f32.partialorder %v1002, %v1818
        %vm1953 = vcmp.eq.f32.partialorder %v1003, %v1818
        %vm1954 = vcmp.eq.f32.partialorder %v1002, %v1821
        %vm1955 = vcmp.eq.f32.partialorder %v1003, %v1821
        %vm1956 = vcmp.eq.f32.partialorder %v1002, %v1824
        %vm1957 = vcmp.eq.f32.partialorder %v1003, %v1824
        %vm1958 = vcmp.eq.f32.partialorder %v1002, %v1827
        %vm1959 = vcmp.eq.f32.partialorder %v1003, %v1827
        %vm1960 = vcmp.eq.f32.partialorder %v1002, %v1830
        %vm1961 = vcmp.eq.f32.partialorder %v1003, %v1830
        %vm1962 = vcmp.eq.f32.partialorder %v1002, %v1833
        %vm1963 = vcmp.eq.f32.partialorder %v1003, %v1833
        %vm1964 = vcmp.eq.f32.partialorder %v1002, %v1836
        %vm1965 = vcmp.eq.f32.partialorder %v1003, %v1836
        %v1966 = vsel %vm1902, -3e+38, %v1453
        %v1967 = vsel %vm1903, -3e+38, %v1454
        %v1968 = vsel %vm1904, -3e+38, %v1455
        %v1969 = vsel %vm1905, -3e+38, %v1456
        %v1970 = vsel %vm1906, -3e+38, %v1457
        %v1971 = vsel %vm1907, -3e+38, %v1458
        %v1972 = vsel %vm1908, -3e+38, %v1459
        %v1973 = vsel %vm1909, -3e+38, %v1460
        %v1974 = vsel %vm1910, -3e+38, %v1461
        %v1975 = vsel %vm1911, -3e+38, %v1462
        %v1976 = vsel %vm1912, -3e+38, %v1463
        %v1977 = vsel %vm1913, -3e+38, %v1464
        %v1978 = vsel %vm1914, -3e+38, %v1465
        %v1979 = vsel %vm1915, -3e+38, %v1466
        %v1980 = vsel %vm1916, -3e+38, %v1467
        %v1981 = vsel %vm1917, -3e+38, %v1468
        %v1982 = vsel %vm1918, -3e+38, %v1469
        %v1983 = vsel %vm1919, -3e+38, %v1470
        %v1984 = vsel %vm1920, -3e+38, %v1471
        %v1985 = vsel %vm1921, -3e+38, %v1472
        %v1986 = vsel %vm1922, -3e+38, %v1473
        %v1987 = vsel %vm1923, -3e+38, %v1474
        %v1988 = vsel %vm1924, -3e+38, %v1475
        %v1989 = vsel %vm1925, -3e+38, %v1476
        %v1990 = vsel %vm1926, -3e+38, %v1477
        %v1991 = vsel %vm1927, -3e+38, %v1478
        %v1992 = vsel %vm1928, -3e+38, %v1479
        %v1993 = vsel %vm1929, -3e+38, %v1480
        %v1994 = vsel %vm1930, -3e+38, %v1481
        %v1995 = vsel %vm1931, -3e+38, %v1482
        %v1996 = vsel %vm1932, -3e+38, %v1483
        %v1997 = vsel %vm1933, -3e+38, %v1484
        %v1998 = vsel %vm1934, -3e+38, %v1485
        %v1999 = vsel %vm1935, -3e+38, %v1486
        %v2000 = vsel %vm1936, -3e+38, %v1487
        %v2001 = vsel %vm1937, -3e+38, %v1488
        %v2002 = vsel %vm1938, -3e+38, %v1489
        %v2003 = vsel %vm1939, -3e+38, %v1490
        %v2004 = vsel %vm1940, -3e+38, %v1491
        %v2005 = vsel %vm1941, -3e+38, %v1492
        %v2006 = vsel %vm1942, -3e+38, %v1493
        %v2007 = vsel %vm1943, -3e+38, %v1494
        %v2008 = vsel %vm1944, -3e+38, %v1495
        %v2009 = vsel %vm1945, -3e+38, %v1496
        %v2010 = vsel %vm1946, -3e+38, %v1497
        %v2011 = vsel %vm1947, -3e+38, %v1498
        %v2012 = vsel %vm1948, -3e+38, %v1499
        %v2013 = vsel %vm1949, -3e+38, %v1500
        %v2014 = vsel %vm1950, -3e+38, %v1501
        %v2015 = vsel %vm1951, -3e+38, %v1502
        %v2016 = vsel %vm1952, -3e+38, %v1503
        %v2017 = vsel %vm1953, -3e+38, %v1504
        %v2018 = vsel %vm1954, -3e+38, %v1505
        %v2019 = vsel %vm1955, -3e+38, %v1506
        %v2020 = vsel %vm1956, -3e+38, %v1507
        %v2021 = vsel %vm1957, -3e+38, %v1508
        %v2022 = vsel %vm1958, -3e+38, %v1509
        %v2023 = vsel %vm1959, -3e+38, %v1510
        %v2024 = vsel %vm1960, -3e+38, %v1511
        %v2025 = vsel %vm1961, -3e+38, %v1512
        %v2026 = vsel %vm1962, -3e+38, %v1513
        %v2027 = vsel %vm1963, -3e+38, %v1514
        %v2028 = vsel %vm1964, -3e+38, %v1515
        %v2029 = vsel %vm1965, -3e+38, %v1516
        %v2030 = vmax.f32 %v1966, %v1967
        %2031 = vmax.xlane.f32.xlu0 %v2030
        %v2032 = vpop.xlane.xlu0 %2031
        %v2033 = vmax.f32 %v1968, %v1969
        %2034 = vmax.xlane.f32.xlu0 %v2033
        %v2035 = vpop.xlane.xlu0 %2034
        %v2036 = vmax.f32 %v1970, %v1971
        %2037 = vmax.xlane.f32.xlu0 %v2036
        %v2038 = vpop.xlane.xlu0 %2037
        %v2039 = vmax.f32 %v1972, %v1973
        %2040 = vmax.xlane.f32.xlu0 %v2039
        %v2041 = vpop.xlane.xlu0 %2040
        %v2042 = vmax.f32 %v1974, %v1975
        %2043 = vmax.xlane.f32.xlu0 %v2042
        %v2044 = vpop.xlane.xlu0 %2043
        %v2045 = vmax.f32 %v1976, %v1977
        %2046 = vmax.xlane.f32.xlu0 %v2045
        %v2047 = vpop.xlane.xlu0 %2046
        %v2048 = vmax.f32 %v1978, %v1979
        %2049 = vmax.xlane.f32.xlu0 %v2048
        %v2050 = vpop.xlane.xlu0 %2049
        %v2051 = vmax.f32 %v1980, %v1981
        %2052 = vmax.xlane.f32.xlu0 %v2051
        %v2053 = vpop.xlane.xlu0 %2052
        %v2054 = vmax.f32 %v1982, %v1983
        %2055 = vmax.xlane.f32.xlu0 %v2054
        %v2056 = vpop.xlane.xlu0 %2055
        %v2057 = vmax.f32 %v1984, %v1985
        %2058 = vmax.xlane.f32.xlu0 %v2057
        %v2059 = vpop.xlane.xlu0 %2058
        %v2060 = vmax.f32 %v1986, %v1987
        %2061 = vmax.xlane.f32.xlu0 %v2060
        %v2062 = vpop.xlane.xlu0 %2061
        %v2063 = vmax.f32 %v1988, %v1989
        %2064 = vmax.xlane.f32.xlu0 %v2063
        %v2065 = vpop.xlane.xlu0 %2064
        %v2066 = vmax.f32 %v1990, %v1991
        %2067 = vmax.xlane.f32.xlu0 %v2066
        %v2068 = vpop.xlane.xlu0 %2067
        %v2069 = vmax.f32 %v1992, %v1993
        %2070 = vmax.xlane.f32.xlu0 %v2069
        %v2071 = vpop.xlane.xlu0 %2070
        %v2072 = vmax.f32 %v1994, %v1995
        %2073 = vmax.xlane.f32.xlu0 %v2072
        %v2074 = vpop.xlane.xlu0 %2073
        %v2075 = vmax.f32 %v1996, %v1997
        %2076 = vmax.xlane.f32.xlu0 %v2075
        %v2077 = vpop.xlane.xlu0 %2076
        %v2078 = vmax.f32 %v1998, %v1999
        %2079 = vmax.xlane.f32.xlu0 %v2078
        %v2080 = vpop.xlane.xlu0 %2079
        %v2081 = vmax.f32 %v2000, %v2001
        %2082 = vmax.xlane.f32.xlu0 %v2081
        %v2083 = vpop.xlane.xlu0 %2082
        %v2084 = vmax.f32 %v2002, %v2003
        %2085 = vmax.xlane.f32.xlu0 %v2084
        %v2086 = vpop.xlane.xlu0 %2085
        %v2087 = vmax.f32 %v2004, %v2005
        %2088 = vmax.xlane.f32.xlu0 %v2087
        %v2089 = vpop.xlane.xlu0 %2088
        %v2090 = vmax.f32 %v2006, %v2007
        %2091 = vmax.xlane.f32.xlu0 %v2090
        %v2092 = vpop.xlane.xlu0 %2091
        %v2093 = vmax.f32 %v2008, %v2009
        %2094 = vmax.xlane.f32.xlu0 %v2093
        %v2095 = vpop.xlane.xlu0 %2094
        %v2096 = vmax.f32 %v2010, %v2011
        %2097 = vmax.xlane.f32.xlu0 %v2096
        %v2098 = vpop.xlane.xlu0 %2097
        %v2099 = vmax.f32 %v2012, %v2013
        %2100 = vmax.xlane.f32.xlu0 %v2099
        %v2101 = vpop.xlane.xlu0 %2100
        %v2102 = vmax.f32 %v2014, %v2015
        %2103 = vmax.xlane.f32.xlu0 %v2102
        %v2104 = vpop.xlane.xlu0 %2103
        %v2105 = vmax.f32 %v2016, %v2017
        %2106 = vmax.xlane.f32.xlu0 %v2105
        %v2107 = vpop.xlane.xlu0 %2106
        %v2108 = vmax.f32 %v2018, %v2019
        %2109 = vmax.xlane.f32.xlu0 %v2108
        %v2110 = vpop.xlane.xlu0 %2109
        %v2111 = vmax.f32 %v2020, %v2021
        %2112 = vmax.xlane.f32.xlu0 %v2111
        %v2113 = vpop.xlane.xlu0 %2112
        %v2114 = vmax.f32 %v2022, %v2023
        %2115 = vmax.xlane.f32.xlu0 %v2114
        %v2116 = vpop.xlane.xlu0 %2115
        %v2117 = vmax.f32 %v2024, %v2025
        %2118 = vmax.xlane.f32.xlu0 %v2117
        %v2119 = vpop.xlane.xlu0 %2118
        %v2120 = vmax.f32 %v2026, %v2027
        %2121 = vmax.xlane.f32.xlu0 %v2120
        %v2122 = vpop.xlane.xlu0 %2121
        %v2123 = vmax.f32 %v2028, %v2029
        %2124 = vmax.xlane.f32.xlu0 %v2123
        %v2125 = vpop.xlane.xlu0 %2124
        %vm2126 = vcmp.eq.f32.partialorder %v1966, %v2032
        %vm2127 = vcmp.eq.f32.partialorder %v1967, %v2032
        %vm2128 = vcmp.eq.f32.partialorder %v1968, %v2035
        %vm2129 = vcmp.eq.f32.partialorder %v1969, %v2035
        %vm2130 = vcmp.eq.f32.partialorder %v1970, %v2038
        %vm2131 = vcmp.eq.f32.partialorder %v1971, %v2038
        %vm2132 = vcmp.eq.f32.partialorder %v1972, %v2041
        %vm2133 = vcmp.eq.f32.partialorder %v1973, %v2041
        %vm2134 = vcmp.eq.f32.partialorder %v1974, %v2044
        %vm2135 = vcmp.eq.f32.partialorder %v1975, %v2044
        %vm2136 = vcmp.eq.f32.partialorder %v1976, %v2047
        %vm2137 = vcmp.eq.f32.partialorder %v1977, %v2047
        %vm2138 = vcmp.eq.f32.partialorder %v1978, %v2050
        %vm2139 = vcmp.eq.f32.partialorder %v1979, %v2050
        %vm2140 = vcmp.eq.f32.partialorder %v1980, %v2053
        %vm2141 = vcmp.eq.f32.partialorder %v1981, %v2053
        %vm2142 = vcmp.eq.f32.partialorder %v1982, %v2056
        %vm2143 = vcmp.eq.f32.partialorder %v1983, %v2056
        %vm2144 = vcmp.eq.f32.partialorder %v1984, %v2059
        %vm2145 = vcmp.eq.f32.partialorder %v1985, %v2059
        %vm2146 = vcmp.eq.f32.partialorder %v1986, %v2062
        %vm2147 = vcmp.eq.f32.partialorder %v1987, %v2062
        %vm2148 = vcmp.eq.f32.partialorder %v1988, %v2065
        %vm2149 = vcmp.eq.f32.partialorder %v1989, %v2065
        %vm2150 = vcmp.eq.f32.partialorder %v1990, %v2068
        %vm2151 = vcmp.eq.f32.partialorder %v1991, %v2068
        %vm2152 = vcmp.eq.f32.partialorder %v1992, %v2071
        %vm2153 = vcmp.eq.f32.partialorder %v1993, %v2071
        %vm2154 = vcmp.eq.f32.partialorder %v1994, %v2074
        %vm2155 = vcmp.eq.f32.partialorder %v1995, %v2074
        %vm2156 = vcmp.eq.f32.partialorder %v1996, %v2077
        %vm2157 = vcmp.eq.f32.partialorder %v1997, %v2077
        %vm2158 = vcmp.eq.f32.partialorder %v1998, %v2080
        %vm2159 = vcmp.eq.f32.partialorder %v1999, %v2080
        %vm2160 = vcmp.eq.f32.partialorder %v2000, %v2083
        %vm2161 = vcmp.eq.f32.partialorder %v2001, %v2083
        %vm2162 = vcmp.eq.f32.partialorder %v2002, %v2086
        %vm2163 = vcmp.eq.f32.partialorder %v2003, %v2086
        %vm2164 = vcmp.eq.f32.partialorder %v2004, %v2089
        %vm2165 = vcmp.eq.f32.partialorder %v2005, %v2089
        %vm2166 = vcmp.eq.f32.partialorder %v2006, %v2092
        %vm2167 = vcmp.eq.f32.partialorder %v2007, %v2092
        %vm2168 = vcmp.eq.f32.partialorder %v2008, %v2095
        %vm2169 = vcmp.eq.f32.partialorder %v2009, %v2095
        %vm2170 = vcmp.eq.f32.partialorder %v2010, %v2098
        %vm2171 = vcmp.eq.f32.partialorder %v2011, %v2098
        %vm2172 = vcmp.eq.f32.partialorder %v2012, %v2101
        %vm2173 = vcmp.eq.f32.partialorder %v2013, %v2101
        %vm2174 = vcmp.eq.f32.partialorder %v2014, %v2104
        %vm2175 = vcmp.eq.f32.partialorder %v2015, %v2104
        %vm2176 = vcmp.eq.f32.partialorder %v2016, %v2107
        %vm2177 = vcmp.eq.f32.partialorder %v2017, %v2107
        %vm2178 = vcmp.eq.f32.partialorder %v2018, %v2110
        %vm2179 = vcmp.eq.f32.partialorder %v2019, %v2110
        %vm2180 = vcmp.eq.f32.partialorder %v2020, %v2113
        %vm2181 = vcmp.eq.f32.partialorder %v2021, %v2113
        %vm2182 = vcmp.eq.f32.partialorder %v2022, %v2116
        %vm2183 = vcmp.eq.f32.partialorder %v2023, %v2116
        %vm2184 = vcmp.eq.f32.partialorder %v2024, %v2119
        %vm2185 = vcmp.eq.f32.partialorder %v2025, %v2119
        %vm2186 = vcmp.eq.f32.partialorder %v2026, %v2122
        %vm2187 = vcmp.eq.f32.partialorder %v2027, %v2122
        %vm2188 = vcmp.eq.f32.partialorder %v2028, %v2125
        %vm2189 = vcmp.eq.f32.partialorder %v2029, %v2125
        %v2190 = vsel %vm2126, %v1002, 256.0
        %v2191 = vsel %vm2127, %v1003, 256.0
        %v2192 = vsel %vm2128, %v1002, 256.0
        %v2193 = vsel %vm2129, %v1003, 256.0
        %v2194 = vsel %vm2130, %v1002, 256.0
        %v2195 = vsel %vm2131, %v1003, 256.0
        %v2196 = vsel %vm2132, %v1002, 256.0
        %v2197 = vsel %vm2133, %v1003, 256.0
        %v2198 = vsel %vm2134, %v1002, 256.0
        %v2199 = vsel %vm2135, %v1003, 256.0
        %v2200 = vsel %vm2136, %v1002, 256.0
        %v2201 = vsel %vm2137, %v1003, 256.0
        %v2202 = vsel %vm2138, %v1002, 256.0
        %v2203 = vsel %vm2139, %v1003, 256.0
        %v2204 = vsel %vm2140, %v1002, 256.0
        %v2205 = vsel %vm2141, %v1003, 256.0
        %v2206 = vsel %vm2142, %v1002, 256.0
        %v2207 = vsel %vm2143, %v1003, 256.0
        %v2208 = vsel %vm2144, %v1002, 256.0
        %v2209 = vsel %vm2145, %v1003, 256.0
        %v2210 = vsel %vm2146, %v1002, 256.0
        %v2211 = vsel %vm2147, %v1003, 256.0
        %v2212 = vsel %vm2148, %v1002, 256.0
        %v2213 = vsel %vm2149, %v1003, 256.0
        %v2214 = vsel %vm2150, %v1002, 256.0
        %v2215 = vsel %vm2151, %v1003, 256.0
        %v2216 = vsel %vm2152, %v1002, 256.0
        %v2217 = vsel %vm2153, %v1003, 256.0
        %v2218 = vsel %vm2154, %v1002, 256.0
        %v2219 = vsel %vm2155, %v1003, 256.0
        %v2220 = vsel %vm2156, %v1002, 256.0
        %v2221 = vsel %vm2157, %v1003, 256.0
        %v2222 = vsel %vm2158, %v1002, 256.0
        %v2223 = vsel %vm2159, %v1003, 256.0
        %v2224 = vsel %vm2160, %v1002, 256.0
        %v2225 = vsel %vm2161, %v1003, 256.0
        %v2226 = vsel %vm2162, %v1002, 256.0
        %v2227 = vsel %vm2163, %v1003, 256.0
        %v2228 = vsel %vm2164, %v1002, 256.0
        %v2229 = vsel %vm2165, %v1003, 256.0
        %v2230 = vsel %vm2166, %v1002, 256.0
        %v2231 = vsel %vm2167, %v1003, 256.0
        %v2232 = vsel %vm2168, %v1002, 256.0
        %v2233 = vsel %vm2169, %v1003, 256.0
        %v2234 = vsel %vm2170, %v1002, 256.0
        %v2235 = vsel %vm2171, %v1003, 256.0
        %v2236 = vsel %vm2172, %v1002, 256.0
        %v2237 = vsel %vm2173, %v1003, 256.0
        %v2238 = vsel %vm2174, %v1002, 256.0
        %v2239 = vsel %vm2175, %v1003, 256.0
        %v2240 = vsel %vm2176, %v1002, 256.0
        %v2241 = vsel %vm2177, %v1003, 256.0
        %v2242 = vsel %vm2178, %v1002, 256.0
        %v2243 = vsel %vm2179, %v1003, 256.0
        %v2244 = vsel %vm2180, %v1002, 256.0
        %v2245 = vsel %vm2181, %v1003, 256.0
        %v2246 = vsel %vm2182, %v1002, 256.0
        %v2247 = vsel %vm2183, %v1003, 256.0
        %v2248 = vsel %vm2184, %v1002, 256.0
        %v2249 = vsel %vm2185, %v1003, 256.0
        %v2250 = vsel %vm2186, %v1002, 256.0
        %v2251 = vsel %vm2187, %v1003, 256.0
        %v2252 = vsel %vm2188, %v1002, 256.0
        %v2253 = vsel %vm2189, %v1003, 256.0
        %v2254 = vmin.f32 %v2190, %v2191
        %2255 = vmin.xlane.f32.xlu0 %v2254
        %v2256 = vpop.xlane.xlu0 %2255
        %v2257 = vmin.f32 %v2192, %v2193
        %2258 = vmin.xlane.f32.xlu0 %v2257
        %v2259 = vpop.xlane.xlu0 %2258
        %v2260 = vmin.f32 %v2194, %v2195
        %2261 = vmin.xlane.f32.xlu0 %v2260
        %v2262 = vpop.xlane.xlu0 %2261
        %v2263 = vmin.f32 %v2196, %v2197
        %2264 = vmin.xlane.f32.xlu0 %v2263
        %v2265 = vpop.xlane.xlu0 %2264
        %v2266 = vmin.f32 %v2198, %v2199
        %2267 = vmin.xlane.f32.xlu0 %v2266
        %v2268 = vpop.xlane.xlu0 %2267
        %v2269 = vmin.f32 %v2200, %v2201
        %2270 = vmin.xlane.f32.xlu0 %v2269
        %v2271 = vpop.xlane.xlu0 %2270
        %v2272 = vmin.f32 %v2202, %v2203
        %2273 = vmin.xlane.f32.xlu0 %v2272
        %v2274 = vpop.xlane.xlu0 %2273
        %v2275 = vmin.f32 %v2204, %v2205
        %2276 = vmin.xlane.f32.xlu0 %v2275
        %v2277 = vpop.xlane.xlu0 %2276
        %v2278 = vmin.f32 %v2206, %v2207
        %2279 = vmin.xlane.f32.xlu0 %v2278
        %v2280 = vpop.xlane.xlu0 %2279
        %v2281 = vmin.f32 %v2208, %v2209
        %2282 = vmin.xlane.f32.xlu0 %v2281
        %v2283 = vpop.xlane.xlu0 %2282
        %v2284 = vmin.f32 %v2210, %v2211
        %2285 = vmin.xlane.f32.xlu0 %v2284
        %v2286 = vpop.xlane.xlu0 %2285
        %v2287 = vmin.f32 %v2212, %v2213
        %2288 = vmin.xlane.f32.xlu0 %v2287
        %v2289 = vpop.xlane.xlu0 %2288
        %v2290 = vmin.f32 %v2214, %v2215
        %2291 = vmin.xlane.f32.xlu0 %v2290
        %v2292 = vpop.xlane.xlu0 %2291
        %v2293 = vmin.f32 %v2216, %v2217
        %2294 = vmin.xlane.f32.xlu0 %v2293
        %v2295 = vpop.xlane.xlu0 %2294
        %v2296 = vmin.f32 %v2218, %v2219
        %2297 = vmin.xlane.f32.xlu0 %v2296
        %v2298 = vpop.xlane.xlu0 %2297
        %v2299 = vmin.f32 %v2220, %v2221
        %2300 = vmin.xlane.f32.xlu0 %v2299
        %v2301 = vpop.xlane.xlu0 %2300
        %v2302 = vmin.f32 %v2222, %v2223
        %2303 = vmin.xlane.f32.xlu0 %v2302
        %v2304 = vpop.xlane.xlu0 %2303
        %v2305 = vmin.f32 %v2224, %v2225
        %2306 = vmin.xlane.f32.xlu0 %v2305
        %v2307 = vpop.xlane.xlu0 %2306
        %v2308 = vmin.f32 %v2226, %v2227
        %2309 = vmin.xlane.f32.xlu0 %v2308
        %v2310 = vpop.xlane.xlu0 %2309
        %v2311 = vmin.f32 %v2228, %v2229
        %2312 = vmin.xlane.f32.xlu0 %v2311
        %v2313 = vpop.xlane.xlu0 %2312
        %v2314 = vmin.f32 %v2230, %v2231
        %2315 = vmin.xlane.f32.xlu0 %v2314
        %v2316 = vpop.xlane.xlu0 %2315
        %v2317 = vmin.f32 %v2232, %v2233
        %2318 = vmin.xlane.f32.xlu0 %v2317
        %v2319 = vpop.xlane.xlu0 %2318
        %v2320 = vmin.f32 %v2234, %v2235
        %2321 = vmin.xlane.f32.xlu0 %v2320
        %v2322 = vpop.xlane.xlu0 %2321
        %v2323 = vmin.f32 %v2236, %v2237
        %2324 = vmin.xlane.f32.xlu0 %v2323
        %v2325 = vpop.xlane.xlu0 %2324
        %v2326 = vmin.f32 %v2238, %v2239
        %2327 = vmin.xlane.f32.xlu0 %v2326
        %v2328 = vpop.xlane.xlu0 %2327
        %v2329 = vmin.f32 %v2240, %v2241
        %2330 = vmin.xlane.f32.xlu0 %v2329
        %v2331 = vpop.xlane.xlu0 %2330
        %v2332 = vmin.f32 %v2242, %v2243
        %2333 = vmin.xlane.f32.xlu0 %v2332
        %v2334 = vpop.xlane.xlu0 %2333
        %v2335 = vmin.f32 %v2244, %v2245
        %2336 = vmin.xlane.f32.xlu0 %v2335
        %v2337 = vpop.xlane.xlu0 %2336
        %v2338 = vmin.f32 %v2246, %v2247
        %2339 = vmin.xlane.f32.xlu0 %v2338
        %v2340 = vpop.xlane.xlu0 %2339
        %v2341 = vmin.f32 %v2248, %v2249
        %2342 = vmin.xlane.f32.xlu0 %v2341
        %v2343 = vpop.xlane.xlu0 %2342
        %v2344 = vmin.f32 %v2250, %v2251
        %2345 = vmin.xlane.f32.xlu0 %v2344
        %v2346 = vpop.xlane.xlu0 %2345
        %v2347 = vmin.f32 %v2252, %v2253
        %2348 = vmin.xlane.f32.xlu0 %v2347
        %v2349 = vpop.xlane.xlu0 %2348
        %v2350 = vcvt.f32.s32.to.zero.pseudo %v2256
        %v2351 = vcvt.f32.s32.to.zero.pseudo %v2259
        %v2352 = vcvt.f32.s32.to.zero.pseudo %v2262
        %v2353 = vcvt.f32.s32.to.zero.pseudo %v2265
        %v2354 = vcvt.f32.s32.to.zero.pseudo %v2268
        %v2355 = vcvt.f32.s32.to.zero.pseudo %v2271
        %v2356 = vcvt.f32.s32.to.zero.pseudo %v2274
        %v2357 = vcvt.f32.s32.to.zero.pseudo %v2277
        %v2358 = vcvt.f32.s32.to.zero.pseudo %v2280
        %v2359 = vcvt.f32.s32.to.zero.pseudo %v2283
        %v2360 = vcvt.f32.s32.to.zero.pseudo %v2286
        %v2361 = vcvt.f32.s32.to.zero.pseudo %v2289
        %v2362 = vcvt.f32.s32.to.zero.pseudo %v2292
        %v2363 = vcvt.f32.s32.to.zero.pseudo %v2295
        %v2364 = vcvt.f32.s32.to.zero.pseudo %v2298
        %v2365 = vcvt.f32.s32.to.zero.pseudo %v2301
        %v2366 = vcvt.f32.s32.to.zero.pseudo %v2304
        %v2367 = vcvt.f32.s32.to.zero.pseudo %v2307
        %v2368 = vcvt.f32.s32.to.zero.pseudo %v2310
        %v2369 = vcvt.f32.s32.to.zero.pseudo %v2313
        %v2370 = vcvt.f32.s32.to.zero.pseudo %v2316
        %v2371 = vcvt.f32.s32.to.zero.pseudo %v2319
        %v2372 = vcvt.f32.s32.to.zero.pseudo %v2322
        %v2373 = vcvt.f32.s32.to.zero.pseudo %v2325
        %v2374 = vcvt.f32.s32.to.zero.pseudo %v2328
        %v2375 = vcvt.f32.s32.to.zero.pseudo %v2331
        %v2376 = vcvt.f32.s32.to.zero.pseudo %v2334
        %v2377 = vcvt.f32.s32.to.zero.pseudo %v2337
        %v2378 = vcvt.f32.s32.to.zero.pseudo %v2340
        %v2379 = vcvt.f32.s32.to.zero.pseudo %v2343
        %v2380 = vcvt.f32.s32.to.zero.pseudo %v2346
        %v2381 = vcvt.f32.s32.to.zero.pseudo %v2349
        %vm2382 = vcmask 23568
        %2383 = vst.msk [vmem:[%s226] sm:$0xff] %vm2382, %v2350
        %2384 = vst.msk [vmem:[%s226 + $0x8] sm:$0xff] %vm2382, %v2351
        %2385 = vst.msk [vmem:[%s226 + $0x10] sm:$0xff] %vm2382, %v2352
        %2386 = vst.msk [vmem:[%s226 + $0x18] sm:$0xff] %vm2382, %v2353
        %2387 = vst.msk [vmem:[%s226 + $0x20] sm:$0xff] %vm2382, %v2354
        %2388 = vst.msk [vmem:[%s226 + $0x28] sm:$0xff] %vm2382, %v2355
        %2389 = vst.msk [vmem:[%s226 + $0x30] sm:$0xff] %vm2382, %v2356
        %2390 = vst.msk [vmem:[%s226 + $0x38] sm:$0xff] %vm2382, %v2357
        %2391 = vst.msk [vmem:[%s226 + $0x40] sm:$0xff] %vm2382, %v2358
        %2392 = vst.msk [vmem:[%s226 + $0x48] sm:$0xff] %vm2382, %v2359
        %2393 = vst.msk [vmem:[%s226 + $0x50] sm:$0xff] %vm2382, %v2360
        %2394 = vst.msk [vmem:[%s226 + $0x58] sm:$0xff] %vm2382, %v2361
        %2395 = vst.msk [vmem:[%s226 + $0x60] sm:$0xff] %vm2382, %v2362
        %2396 = vst.msk [vmem:[%s226 + $0x68] sm:$0xff] %vm2382, %v2363
        %2397 = vst.msk [vmem:[%s226 + $0x70] sm:$0xff] %vm2382, %v2364
        %2398 = vst.msk [vmem:[%s226 + $0x78] sm:$0xff] %vm2382, %v2365
        %2399 = vst.msk [vmem:[%s226 + $0x80] sm:$0xff] %vm2382, %v2366
        %2400 = vst.msk [vmem:[%s226 + $0x88] sm:$0xff] %vm2382, %v2367
        %2401 = vst.msk [vmem:[%s226 + $0x90] sm:$0xff] %vm2382, %v2368
        %2402 = vst.msk [vmem:[%s226 + $0x98] sm:$0xff] %vm2382, %v2369
        %2403 = vst.msk [vmem:[%s226 + $0xa0] sm:$0xff] %vm2382, %v2370
        %2404 = vst.msk [vmem:[%s226 + $0xa8] sm:$0xff] %vm2382, %v2371
        %2405 = vst.msk [vmem:[%s226 + $0xb0] sm:$0xff] %vm2382, %v2372
        %2406 = vst.msk [vmem:[%s226 + $0xb8] sm:$0xff] %vm2382, %v2373
        %2407 = vst.msk [vmem:[%s226 + $0xc0] sm:$0xff] %vm2382, %v2374
        %2408 = vst.msk [vmem:[%s226 + $0xc8] sm:$0xff] %vm2382, %v2375
        %2409 = vst.msk [vmem:[%s226 + $0xd0] sm:$0xff] %vm2382, %v2376
        %2410 = vst.msk [vmem:[%s226 + $0xd8] sm:$0xff] %vm2382, %v2377
        %2411 = vst.msk [vmem:[%s226 + $0xe0] sm:$0xff] %vm2382, %v2378
        %2412 = vst.msk [vmem:[%s226 + $0xe8] sm:$0xff] %vm2382, %v2379
        %2413 = vst.msk [vmem:[%s226 + $0xf0] sm:$0xff] %vm2382, %v2380
        %2414 = vst.msk [vmem:[%s226 + $0xf8] sm:$0xff] %vm2382, %v2381
        %vm2415 = vcmp.eq.f32.partialorder %v1002, %v2256
        %vm2416 = vcmp.eq.f32.partialorder %v1003, %v2256
        %vm2417 = vcmp.eq.f32.partialorder %v1002, %v2259
        %vm2418 = vcmp.eq.f32.partialorder %v1003, %v2259
        %vm2419 = vcmp.eq.f32.partialorder %v1002, %v2262
        %vm2420 = vcmp.eq.f32.partialorder %v1003, %v2262
        %vm2421 = vcmp.eq.f32.partialorder %v1002, %v2265
        %vm2422 = vcmp.eq.f32.partialorder %v1003, %v2265
        %vm2423 = vcmp.eq.f32.partialorder %v1002, %v2268
        %vm2424 = vcmp.eq.f32.partialorder %v1003, %v2268
        %vm2425 = vcmp.eq.f32.partialorder %v1002, %v2271
        %vm2426 = vcmp.eq.f32.partialorder %v1003, %v2271
        %vm2427 = vcmp.eq.f32.partialorder %v1002, %v2274
        %vm2428 = vcmp.eq.f32.partialorder %v1003, %v2274
        %vm2429 = vcmp.eq.f32.partialorder %v1002, %v2277
        %vm2430 = vcmp.eq.f32.partialorder %v1003, %v2277
        %vm2431 = vcmp.eq.f32.partialorder %v1002, %v2280
        %vm2432 = vcmp.eq.f32.partialorder %v1003, %v2280
        %vm2433 = vcmp.eq.f32.partialorder %v1002, %v2283
        %vm2434 = vcmp.eq.f32.partialorder %v1003, %v2283
        %vm2435 = vcmp.eq.f32.partialorder %v1002, %v2286
        %vm2436 = vcmp.eq.f32.partialorder %v1003, %v2286
        %vm2437 = vcmp.eq.f32.partialorder %v1002, %v2289
        %vm2438 = vcmp.eq.f32.partialorder %v1003, %v2289
        %vm2439 = vcmp.eq.f32.partialorder %v1002, %v2292
        %vm2440 = vcmp.eq.f32.partialorder %v1003, %v2292
        %vm2441 = vcmp.eq.f32.partialorder %v1002, %v2295
        %vm2442 = vcmp.eq.f32.partialorder %v1003, %v2295
        %vm2443 = vcmp.eq.f32.partialorder %v1002, %v2298
        %vm2444 = vcmp.eq.f32.partialorder %v1003, %v2298
        %vm2445 = vcmp.eq.f32.partialorder %v1002, %v2301
        %vm2446 = vcmp.eq.f32.partialorder %v1003, %v2301
        %vm2447 = vcmp.eq.f32.partialorder %v1002, %v2304
        %vm2448 = vcmp.eq.f32.partialorder %v1003, %v2304
        %vm2449 = vcmp.eq.f32.partialorder %v1002, %v2307
        %vm2450 = vcmp.eq.f32.partialorder %v1003, %v2307
        %vm2451 = vcmp.eq.f32.partialorder %v1002, %v2310
        %vm2452 = vcmp.eq.f32.partialorder %v1003, %v2310
        %vm2453 = vcmp.eq.f32.partialorder %v1002, %v2313
        %vm2454 = vcmp.eq.f32.partialorder %v1003, %v2313
        %vm2455 = vcmp.eq.f32.partialorder %v1002, %v2316
        %vm2456 = vcmp.eq.f32.partialorder %v1003, %v2316
        %vm2457 = vcmp.eq.f32.partialorder %v1002, %v2319
        %vm2458 = vcmp.eq.f32.partialorder %v1003, %v2319
        %vm2459 = vcmp.eq.f32.partialorder %v1002, %v2322
        %vm2460 = vcmp.eq.f32.partialorder %v1003, %v2322
        %vm2461 = vcmp.eq.f32.partialorder %v1002, %v2325
        %vm2462 = vcmp.eq.f32.partialorder %v1003, %v2325
        %vm2463 = vcmp.eq.f32.partialorder %v1002, %v2328
        %vm2464 = vcmp.eq.f32.partialorder %v1003, %v2328
        %vm2465 = vcmp.eq.f32.partialorder %v1002, %v2331
        %vm2466 = vcmp.eq.f32.partialorder %v1003, %v2331
        %vm2467 = vcmp.eq.f32.partialorder %v1002, %v2334
        %vm2468 = vcmp.eq.f32.partialorder %v1003, %v2334
        %vm2469 = vcmp.eq.f32.partialorder %v1002, %v2337
        %vm2470 = vcmp.eq.f32.partialorder %v1003, %v2337
        %vm2471 = vcmp.eq.f32.partialorder %v1002, %v2340
        %vm2472 = vcmp.eq.f32.partialorder %v1003, %v2340
        %vm2473 = vcmp.eq.f32.partialorder %v1002, %v2343
        %vm2474 = vcmp.eq.f32.partialorder %v1003, %v2343
        %vm2475 = vcmp.eq.f32.partialorder %v1002, %v2346
        %vm2476 = vcmp.eq.f32.partialorder %v1003, %v2346
        %vm2477 = vcmp.eq.f32.partialorder %v1002, %v2349
        %vm2478 = vcmp.eq.f32.partialorder %v1003, %v2349
        %v2479 = vsel %vm2415, -3e+38, %v1966
        %v2480 = vsel %vm2416, -3e+38, %v1967
        %v2481 = vsel %vm2417, -3e+38, %v1968
        %v2482 = vsel %vm2418, -3e+38, %v1969
        %v2483 = vsel %vm2419, -3e+38, %v1970
        %v2484 = vsel %vm2420, -3e+38, %v1971
        %v2485 = vsel %vm2421, -3e+38, %v1972
        %v2486 = vsel %vm2422, -3e+38, %v1973
        %v2487 = vsel %vm2423, -3e+38, %v1974
        %v2488 = vsel %vm2424, -3e+38, %v1975
        %v2489 = vsel %vm2425, -3e+38, %v1976
        %v2490 = vsel %vm2426, -3e+38, %v1977
        %v2491 = vsel %vm2427, -3e+38, %v1978
        %v2492 = vsel %vm2428, -3e+38, %v1979
        %v2493 = vsel %vm2429, -3e+38, %v1980
        %v2494 = vsel %vm2430, -3e+38, %v1981
        %v2495 = vsel %vm2431, -3e+38, %v1982
        %v2496 = vsel %vm2432, -3e+38, %v1983
        %v2497 = vsel %vm2433, -3e+38, %v1984
        %v2498 = vsel %vm2434, -3e+38, %v1985
        %v2499 = vsel %vm2435, -3e+38, %v1986
        %v2500 = vsel %vm2436, -3e+38, %v1987
        %v2501 = vsel %vm2437, -3e+38, %v1988
        %v2502 = vsel %vm2438, -3e+38, %v1989
        %v2503 = vsel %vm2439, -3e+38, %v1990
        %v2504 = vsel %vm2440, -3e+38, %v1991
        %v2505 = vsel %vm2441, -3e+38, %v1992
        %v2506 = vsel %vm2442, -3e+38, %v1993
        %v2507 = vsel %vm2443, -3e+38, %v1994
        %v2508 = vsel %vm2444, -3e+38, %v1995
        %v2509 = vsel %vm2445, -3e+38, %v1996
        %v2510 = vsel %vm2446, -3e+38, %v1997
        %v2511 = vsel %vm2447, -3e+38, %v1998
        %v2512 = vsel %vm2448, -3e+38, %v1999
        %v2513 = vsel %vm2449, -3e+38, %v2000
        %v2514 = vsel %vm2450, -3e+38, %v2001
        %v2515 = vsel %vm2451, -3e+38, %v2002
        %v2516 = vsel %vm2452, -3e+38, %v2003
        %v2517 = vsel %vm2453, -3e+38, %v2004
        %v2518 = vsel %vm2454, -3e+38, %v2005
        %v2519 = vsel %vm2455, -3e+38, %v2006
        %v2520 = vsel %vm2456, -3e+38, %v2007
        %v2521 = vsel %vm2457, -3e+38, %v2008
        %v2522 = vsel %vm2458, -3e+38, %v2009
        %v2523 = vsel %vm2459, -3e+38, %v2010
        %v2524 = vsel %vm2460, -3e+38, %v2011
        %v2525 = vsel %vm2461, -3e+38, %v2012
        %v2526 = vsel %vm2462, -3e+38, %v2013
        %v2527 = vsel %vm2463, -3e+38, %v2014
        %v2528 = vsel %vm2464, -3e+38, %v2015
        %v2529 = vsel %vm2465, -3e+38, %v2016
        %v2530 = vsel %vm2466, -3e+38, %v2017
        %v2531 = vsel %vm2467, -3e+38, %v2018
        %v2532 = vsel %vm2468, -3e+38, %v2019
        %v2533 = vsel %vm2469, -3e+38, %v2020
        %v2534 = vsel %vm2470, -3e+38, %v2021
        %v2535 = vsel %vm2471, -3e+38, %v2022
        %v2536 = vsel %vm2472, -3e+38, %v2023
        %v2537 = vsel %vm2473, -3e+38, %v2024
        %v2538 = vsel %vm2474, -3e+38, %v2025
        %v2539 = vsel %vm2475, -3e+38, %v2026
        %v2540 = vsel %vm2476, -3e+38, %v2027
        %v2541 = vsel %vm2477, -3e+38, %v2028
        %v2542 = vsel %vm2478, -3e+38, %v2029
        %v2543 = vmax.f32 %v2479, %v2480
        %2544 = vmax.xlane.f32.xlu0 %v2543
        %v2545 = vpop.xlane.xlu0 %2544
        %v2546 = vmax.f32 %v2481, %v2482
        %2547 = vmax.xlane.f32.xlu0 %v2546
        %v2548 = vpop.xlane.xlu0 %2547
        %v2549 = vmax.f32 %v2483, %v2484
        %2550 = vmax.xlane.f32.xlu0 %v2549
        %v2551 = vpop.xlane.xlu0 %2550
        %v2552 = vmax.f32 %v2485, %v2486
        %2553 = vmax.xlane.f32.xlu0 %v2552
        %v2554 = vpop.xlane.xlu0 %2553
        %v2555 = vmax.f32 %v2487, %v2488
        %2556 = vmax.xlane.f32.xlu0 %v2555
        %v2557 = vpop.xlane.xlu0 %2556
        %v2558 = vmax.f32 %v2489, %v2490
        %2559 = vmax.xlane.f32.xlu0 %v2558
        %v2560 = vpop.xlane.xlu0 %2559
        %v2561 = vmax.f32 %v2491, %v2492
        %2562 = vmax.xlane.f32.xlu0 %v2561
        %v2563 = vpop.xlane.xlu0 %2562
        %v2564 = vmax.f32 %v2493, %v2494
        %2565 = vmax.xlane.f32.xlu0 %v2564
        %v2566 = vpop.xlane.xlu0 %2565
        %v2567 = vmax.f32 %v2495, %v2496
        %2568 = vmax.xlane.f32.xlu0 %v2567
        %v2569 = vpop.xlane.xlu0 %2568
        %v2570 = vmax.f32 %v2497, %v2498
        %2571 = vmax.xlane.f32.xlu0 %v2570
        %v2572 = vpop.xlane.xlu0 %2571
        %v2573 = vmax.f32 %v2499, %v2500
        %2574 = vmax.xlane.f32.xlu0 %v2573
        %v2575 = vpop.xlane.xlu0 %2574
        %v2576 = vmax.f32 %v2501, %v2502
        %2577 = vmax.xlane.f32.xlu0 %v2576
        %v2578 = vpop.xlane.xlu0 %2577
        %v2579 = vmax.f32 %v2503, %v2504
        %2580 = vmax.xlane.f32.xlu0 %v2579
        %v2581 = vpop.xlane.xlu0 %2580
        %v2582 = vmax.f32 %v2505, %v2506
        %2583 = vmax.xlane.f32.xlu0 %v2582
        %v2584 = vpop.xlane.xlu0 %2583
        %v2585 = vmax.f32 %v2507, %v2508
        %2586 = vmax.xlane.f32.xlu0 %v2585
        %v2587 = vpop.xlane.xlu0 %2586
        %v2588 = vmax.f32 %v2509, %v2510
        %2589 = vmax.xlane.f32.xlu0 %v2588
        %v2590 = vpop.xlane.xlu0 %2589
        %v2591 = vmax.f32 %v2511, %v2512
        %2592 = vmax.xlane.f32.xlu0 %v2591
        %v2593 = vpop.xlane.xlu0 %2592
        %v2594 = vmax.f32 %v2513, %v2514
        %2595 = vmax.xlane.f32.xlu0 %v2594
        %v2596 = vpop.xlane.xlu0 %2595
        %v2597 = vmax.f32 %v2515, %v2516
        %2598 = vmax.xlane.f32.xlu0 %v2597
        %v2599 = vpop.xlane.xlu0 %2598
        %v2600 = vmax.f32 %v2517, %v2518
        %2601 = vmax.xlane.f32.xlu0 %v2600
        %v2602 = vpop.xlane.xlu0 %2601
        %v2603 = vmax.f32 %v2519, %v2520
        %2604 = vmax.xlane.f32.xlu0 %v2603
        %v2605 = vpop.xlane.xlu0 %2604
        %v2606 = vmax.f32 %v2521, %v2522
        %2607 = vmax.xlane.f32.xlu0 %v2606
        %v2608 = vpop.xlane.xlu0 %2607
        %v2609 = vmax.f32 %v2523, %v2524
        %2610 = vmax.xlane.f32.xlu0 %v2609
        %v2611 = vpop.xlane.xlu0 %2610
        %v2612 = vmax.f32 %v2525, %v2526
        %2613 = vmax.xlane.f32.xlu0 %v2612
        %v2614 = vpop.xlane.xlu0 %2613
        %v2615 = vmax.f32 %v2527, %v2528
        %2616 = vmax.xlane.f32.xlu0 %v2615
        %v2617 = vpop.xlane.xlu0 %2616
        %v2618 = vmax.f32 %v2529, %v2530
        %2619 = vmax.xlane.f32.xlu0 %v2618
        %v2620 = vpop.xlane.xlu0 %2619
        %v2621 = vmax.f32 %v2531, %v2532
        %2622 = vmax.xlane.f32.xlu0 %v2621
        %v2623 = vpop.xlane.xlu0 %2622
        %v2624 = vmax.f32 %v2533, %v2534
        %2625 = vmax.xlane.f32.xlu0 %v2624
        %v2626 = vpop.xlane.xlu0 %2625
        %v2627 = vmax.f32 %v2535, %v2536
        %2628 = vmax.xlane.f32.xlu0 %v2627
        %v2629 = vpop.xlane.xlu0 %2628
        %v2630 = vmax.f32 %v2537, %v2538
        %2631 = vmax.xlane.f32.xlu0 %v2630
        %v2632 = vpop.xlane.xlu0 %2631
        %v2633 = vmax.f32 %v2539, %v2540
        %2634 = vmax.xlane.f32.xlu0 %v2633
        %v2635 = vpop.xlane.xlu0 %2634
        %v2636 = vmax.f32 %v2541, %v2542
        %2637 = vmax.xlane.f32.xlu0 %v2636
        %v2638 = vpop.xlane.xlu0 %2637
        %vm2639 = vcmp.eq.f32.partialorder %v2479, %v2545
        %vm2640 = vcmp.eq.f32.partialorder %v2480, %v2545
        %vm2641 = vcmp.eq.f32.partialorder %v2481, %v2548
        %vm2642 = vcmp.eq.f32.partialorder %v2482, %v2548
        %vm2643 = vcmp.eq.f32.partialorder %v2483, %v2551
        %vm2644 = vcmp.eq.f32.partialorder %v2484, %v2551
        %vm2645 = vcmp.eq.f32.partialorder %v2485, %v2554
        %vm2646 = vcmp.eq.f32.partialorder %v2486, %v2554
        %vm2647 = vcmp.eq.f32.partialorder %v2487, %v2557
        %vm2648 = vcmp.eq.f32.partialorder %v2488, %v2557
        %vm2649 = vcmp.eq.f32.partialorder %v2489, %v2560
        %vm2650 = vcmp.eq.f32.partialorder %v2490, %v2560
        %vm2651 = vcmp.eq.f32.partialorder %v2491, %v2563
        %vm2652 = vcmp.eq.f32.partialorder %v2492, %v2563
        %vm2653 = vcmp.eq.f32.partialorder %v2493, %v2566
        %vm2654 = vcmp.eq.f32.partialorder %v2494, %v2566
        %vm2655 = vcmp.eq.f32.partialorder %v2495, %v2569
        %vm2656 = vcmp.eq.f32.partialorder %v2496, %v2569
        %vm2657 = vcmp.eq.f32.partialorder %v2497, %v2572
        %vm2658 = vcmp.eq.f32.partialorder %v2498, %v2572
        %vm2659 = vcmp.eq.f32.partialorder %v2499, %v2575
        %vm2660 = vcmp.eq.f32.partialorder %v2500, %v2575
        %vm2661 = vcmp.eq.f32.partialorder %v2501, %v2578
        %vm2662 = vcmp.eq.f32.partialorder %v2502, %v2578
        %vm2663 = vcmp.eq.f32.partialorder %v2503, %v2581
        %vm2664 = vcmp.eq.f32.partialorder %v2504, %v2581
        %vm2665 = vcmp.eq.f32.partialorder %v2505, %v2584
        %vm2666 = vcmp.eq.f32.partialorder %v2506, %v2584
        %vm2667 = vcmp.eq.f32.partialorder %v2507, %v2587
        %vm2668 = vcmp.eq.f32.partialorder %v2508, %v2587
        %vm2669 = vcmp.eq.f32.partialorder %v2509, %v2590
        %vm2670 = vcmp.eq.f32.partialorder %v2510, %v2590
        %vm2671 = vcmp.eq.f32.partialorder %v2511, %v2593
        %vm2672 = vcmp.eq.f32.partialorder %v2512, %v2593
        %vm2673 = vcmp.eq.f32.partialorder %v2513, %v2596
        %vm2674 = vcmp.eq.f32.partialorder %v2514, %v2596
        %vm2675 = vcmp.eq.f32.partialorder %v2515, %v2599
        %vm2676 = vcmp.eq.f32.partialorder %v2516, %v2599
        %vm2677 = vcmp.eq.f32.partialorder %v2517, %v2602
        %vm2678 = vcmp.eq.f32.partialorder %v2518, %v2602
        %vm2679 = vcmp.eq.f32.partialorder %v2519, %v2605
        %vm2680 = vcmp.eq.f32.partialorder %v2520, %v2605
        %vm2681 = vcmp.eq.f32.partialorder %v2521, %v2608
        %vm2682 = vcmp.eq.f32.partialorder %v2522, %v2608
        %vm2683 = vcmp.eq.f32.partialorder %v2523, %v2611
        %vm2684 = vcmp.eq.f32.partialorder %v2524, %v2611
        %vm2685 = vcmp.eq.f32.partialorder %v2525, %v2614
        %vm2686 = vcmp.eq.f32.partialorder %v2526, %v2614
        %vm2687 = vcmp.eq.f32.partialorder %v2527, %v2617
        %vm2688 = vcmp.eq.f32.partialorder %v2528, %v2617
        %vm2689 = vcmp.eq.f32.partialorder %v2529, %v2620
        %vm2690 = vcmp.eq.f32.partialorder %v2530, %v2620
        %vm2691 = vcmp.eq.f32.partialorder %v2531, %v2623
        %vm2692 = vcmp.eq.f32.partialorder %v2532, %v2623
        %vm2693 = vcmp.eq.f32.partialorder %v2533, %v2626
        %vm2694 = vcmp.eq.f32.partialorder %v2534, %v2626
        %vm2695 = vcmp.eq.f32.partialorder %v2535, %v2629
        %vm2696 = vcmp.eq.f32.partialorder %v2536, %v2629
        %vm2697 = vcmp.eq.f32.partialorder %v2537, %v2632
        %vm2698 = vcmp.eq.f32.partialorder %v2538, %v2632
        %vm2699 = vcmp.eq.f32.partialorder %v2539, %v2635
        %vm2700 = vcmp.eq.f32.partialorder %v2540, %v2635
        %vm2701 = vcmp.eq.f32.partialorder %v2541, %v2638
        %vm2702 = vcmp.eq.f32.partialorder %v2542, %v2638
        %v2703 = vsel %vm2639, %v1002, 256.0
        %v2704 = vsel %vm2640, %v1003, 256.0
        %v2705 = vsel %vm2641, %v1002, 256.0
        %v2706 = vsel %vm2642, %v1003, 256.0
        %v2707 = vsel %vm2643, %v1002, 256.0
        %v2708 = vsel %vm2644, %v1003, 256.0
        %v2709 = vsel %vm2645, %v1002, 256.0
        %v2710 = vsel %vm2646, %v1003, 256.0
        %v2711 = vsel %vm2647, %v1002, 256.0
        %v2712 = vsel %vm2648, %v1003, 256.0
        %v2713 = vsel %vm2649, %v1002, 256.0
        %v2714 = vsel %vm2650, %v1003, 256.0
        %v2715 = vsel %vm2651, %v1002, 256.0
        %v2716 = vsel %vm2652, %v1003, 256.0
        %v2717 = vsel %vm2653, %v1002, 256.0
        %v2718 = vsel %vm2654, %v1003, 256.0
        %v2719 = vsel %vm2655, %v1002, 256.0
        %v2720 = vsel %vm2656, %v1003, 256.0
        %v2721 = vsel %vm2657, %v1002, 256.0
        %v2722 = vsel %vm2658, %v1003, 256.0
        %v2723 = vsel %vm2659, %v1002, 256.0
        %v2724 = vsel %vm2660, %v1003, 256.0
        %v2725 = vsel %vm2661, %v1002, 256.0
        %v2726 = vsel %vm2662, %v1003, 256.0
        %v2727 = vsel %vm2663, %v1002, 256.0
        %v2728 = vsel %vm2664, %v1003, 256.0
        %v2729 = vsel %vm2665, %v1002, 256.0
        %v2730 = vsel %vm2666, %v1003, 256.0
        %v2731 = vsel %vm2667, %v1002, 256.0
        %v2732 = vsel %vm2668, %v1003, 256.0
        %v2733 = vsel %vm2669, %v1002, 256.0
        %v2734 = vsel %vm2670, %v1003, 256.0
        %v2735 = vsel %vm2671, %v1002, 256.0
        %v2736 = vsel %vm2672, %v1003, 256.0
        %v2737 = vsel %vm2673, %v1002, 256.0
        %v2738 = vsel %vm2674, %v1003, 256.0
        %v2739 = vsel %vm2675, %v1002, 256.0
        %v2740 = vsel %vm2676, %v1003, 256.0
        %v2741 = vsel %vm2677, %v1002, 256.0
        %v2742 = vsel %vm2678, %v1003, 256.0
        %v2743 = vsel %vm2679, %v1002, 256.0
        %v2744 = vsel %vm2680, %v1003, 256.0
        %v2745 = vsel %vm2681, %v1002, 256.0
        %v2746 = vsel %vm2682, %v1003, 256.0
        %v2747 = vsel %vm2683, %v1002, 256.0
        %v2748 = vsel %vm2684, %v1003, 256.0
        %v2749 = vsel %vm2685, %v1002, 256.0
        %v2750 = vsel %vm2686, %v1003, 256.0
        %v2751 = vsel %vm2687, %v1002, 256.0
        %v2752 = vsel %vm2688, %v1003, 256.0
        %v2753 = vsel %vm2689, %v1002, 256.0
        %v2754 = vsel %vm2690, %v1003, 256.0
        %v2755 = vsel %vm2691, %v1002, 256.0
        %v2756 = vsel %vm2692, %v1003, 256.0
        %v2757 = vsel %vm2693, %v1002, 256.0
        %v2758 = vsel %vm2694, %v1003, 256.0
        %v2759 = vsel %vm2695, %v1002, 256.0
        %v2760 = vsel %vm2696, %v1003, 256.0
        %v2761 = vsel %vm2697, %v1002, 256.0
        %v2762 = vsel %vm2698, %v1003, 256.0
        %v2763 = vsel %vm2699, %v1002, 256.0
        %v2764 = vsel %vm2700, %v1003, 256.0
        %v2765 = vsel %vm2701, %v1002, 256.0
        %v2766 = vsel %vm2702, %v1003, 256.0
        %v2767 = vmin.f32 %v2703, %v2704
        %2768 = vmin.xlane.f32.xlu0 %v2767
        %v2769 = vpop.xlane.xlu0 %2768
        %v2770 = vmin.f32 %v2705, %v2706
        %2771 = vmin.xlane.f32.xlu0 %v2770
        %v2772 = vpop.xlane.xlu0 %2771
        %v2773 = vmin.f32 %v2707, %v2708
        %2774 = vmin.xlane.f32.xlu0 %v2773
        %v2775 = vpop.xlane.xlu0 %2774
        %v2776 = vmin.f32 %v2709, %v2710
        %2777 = vmin.xlane.f32.xlu0 %v2776
        %v2778 = vpop.xlane.xlu0 %2777
        %v2779 = vmin.f32 %v2711, %v2712
        %2780 = vmin.xlane.f32.xlu0 %v2779
        %v2781 = vpop.xlane.xlu0 %2780
        %v2782 = vmin.f32 %v2713, %v2714
        %2783 = vmin.xlane.f32.xlu0 %v2782
        %v2784 = vpop.xlane.xlu0 %2783
        %v2785 = vmin.f32 %v2715, %v2716
        %2786 = vmin.xlane.f32.xlu0 %v2785
        %v2787 = vpop.xlane.xlu0 %2786
        %v2788 = vmin.f32 %v2717, %v2718
        %2789 = vmin.xlane.f32.xlu0 %v2788
        %v2790 = vpop.xlane.xlu0 %2789
        %v2791 = vmin.f32 %v2719, %v2720
        %2792 = vmin.xlane.f32.xlu0 %v2791
        %v2793 = vpop.xlane.xlu0 %2792
        %v2794 = vmin.f32 %v2721, %v2722
        %2795 = vmin.xlane.f32.xlu0 %v2794
        %v2796 = vpop.xlane.xlu0 %2795
        %v2797 = vmin.f32 %v2723, %v2724
        %2798 = vmin.xlane.f32.xlu0 %v2797
        %v2799 = vpop.xlane.xlu0 %2798
        %v2800 = vmin.f32 %v2725, %v2726
        %2801 = vmin.xlane.f32.xlu0 %v2800
        %v2802 = vpop.xlane.xlu0 %2801
        %v2803 = vmin.f32 %v2727, %v2728
        %2804 = vmin.xlane.f32.xlu0 %v2803
        %v2805 = vpop.xlane.xlu0 %2804
        %v2806 = vmin.f32 %v2729, %v2730
        %2807 = vmin.xlane.f32.xlu0 %v2806
        %v2808 = vpop.xlane.xlu0 %2807
        %v2809 = vmin.f32 %v2731, %v2732
        %2810 = vmin.xlane.f32.xlu0 %v2809
        %v2811 = vpop.xlane.xlu0 %2810
        %v2812 = vmin.f32 %v2733, %v2734
        %2813 = vmin.xlane.f32.xlu0 %v2812
        %v2814 = vpop.xlane.xlu0 %2813
        %v2815 = vmin.f32 %v2735, %v2736
        %2816 = vmin.xlane.f32.xlu0 %v2815
        %v2817 = vpop.xlane.xlu0 %2816
        %v2818 = vmin.f32 %v2737, %v2738
        %2819 = vmin.xlane.f32.xlu0 %v2818
        %v2820 = vpop.xlane.xlu0 %2819
        %v2821 = vmin.f32 %v2739, %v2740
        %2822 = vmin.xlane.f32.xlu0 %v2821
        %v2823 = vpop.xlane.xlu0 %2822
        %v2824 = vmin.f32 %v2741, %v2742
        %2825 = vmin.xlane.f32.xlu0 %v2824
        %v2826 = vpop.xlane.xlu0 %2825
        %v2827 = vmin.f32 %v2743, %v2744
        %2828 = vmin.xlane.f32.xlu0 %v2827
        %v2829 = vpop.xlane.xlu0 %2828
        %v2830 = vmin.f32 %v2745, %v2746
        %2831 = vmin.xlane.f32.xlu0 %v2830
        %v2832 = vpop.xlane.xlu0 %2831
        %v2833 = vmin.f32 %v2747, %v2748
        %2834 = vmin.xlane.f32.xlu0 %v2833
        %v2835 = vpop.xlane.xlu0 %2834
        %v2836 = vmin.f32 %v2749, %v2750
        %2837 = vmin.xlane.f32.xlu0 %v2836
        %v2838 = vpop.xlane.xlu0 %2837
        %v2839 = vmin.f32 %v2751, %v2752
        %2840 = vmin.xlane.f32.xlu0 %v2839
        %v2841 = vpop.xlane.xlu0 %2840
        %v2842 = vmin.f32 %v2753, %v2754
        %2843 = vmin.xlane.f32.xlu0 %v2842
        %v2844 = vpop.xlane.xlu0 %2843
        %v2845 = vmin.f32 %v2755, %v2756
        %2846 = vmin.xlane.f32.xlu0 %v2845
        %v2847 = vpop.xlane.xlu0 %2846
        %v2848 = vmin.f32 %v2757, %v2758
        %2849 = vmin.xlane.f32.xlu0 %v2848
        %v2850 = vpop.xlane.xlu0 %2849
        %v2851 = vmin.f32 %v2759, %v2760
        %2852 = vmin.xlane.f32.xlu0 %v2851
        %v2853 = vpop.xlane.xlu0 %2852
        %v2854 = vmin.f32 %v2761, %v2762
        %2855 = vmin.xlane.f32.xlu0 %v2854
        %v2856 = vpop.xlane.xlu0 %2855
        %v2857 = vmin.f32 %v2763, %v2764
        %2858 = vmin.xlane.f32.xlu0 %v2857
        %v2859 = vpop.xlane.xlu0 %2858
        %v2860 = vmin.f32 %v2765, %v2766
        %2861 = vmin.xlane.f32.xlu0 %v2860
        %v2862 = vpop.xlane.xlu0 %2861
        %v2863 = vcvt.f32.s32.to.zero.pseudo %v2769
        %v2864 = vcvt.f32.s32.to.zero.pseudo %v2772
        %v2865 = vcvt.f32.s32.to.zero.pseudo %v2775
        %v2866 = vcvt.f32.s32.to.zero.pseudo %v2778
        %v2867 = vcvt.f32.s32.to.zero.pseudo %v2781
        %v2868 = vcvt.f32.s32.to.zero.pseudo %v2784
        %v2869 = vcvt.f32.s32.to.zero.pseudo %v2787
        %v2870 = vcvt.f32.s32.to.zero.pseudo %v2790
        %v2871 = vcvt.f32.s32.to.zero.pseudo %v2793
        %v2872 = vcvt.f32.s32.to.zero.pseudo %v2796
        %v2873 = vcvt.f32.s32.to.zero.pseudo %v2799
        %v2874 = vcvt.f32.s32.to.zero.pseudo %v2802
        %v2875 = vcvt.f32.s32.to.zero.pseudo %v2805
        %v2876 = vcvt.f32.s32.to.zero.pseudo %v2808
        %v2877 = vcvt.f32.s32.to.zero.pseudo %v2811
        %v2878 = vcvt.f32.s32.to.zero.pseudo %v2814
        %v2879 = vcvt.f32.s32.to.zero.pseudo %v2817
        %v2880 = vcvt.f32.s32.to.zero.pseudo %v2820
        %v2881 = vcvt.f32.s32.to.zero.pseudo %v2823
        %v2882 = vcvt.f32.s32.to.zero.pseudo %v2826
        %v2883 = vcvt.f32.s32.to.zero.pseudo %v2829
        %v2884 = vcvt.f32.s32.to.zero.pseudo %v2832
        %v2885 = vcvt.f32.s32.to.zero.pseudo %v2835
        %v2886 = vcvt.f32.s32.to.zero.pseudo %v2838
        %v2887 = vcvt.f32.s32.to.zero.pseudo %v2841
        %v2888 = vcvt.f32.s32.to.zero.pseudo %v2844
        %v2889 = vcvt.f32.s32.to.zero.pseudo %v2847
        %v2890 = vcvt.f32.s32.to.zero.pseudo %v2850
        %v2891 = vcvt.f32.s32.to.zero.pseudo %v2853
        %v2892 = vcvt.f32.s32.to.zero.pseudo %v2856
        %v2893 = vcvt.f32.s32.to.zero.pseudo %v2859
        %v2894 = vcvt.f32.s32.to.zero.pseudo %v2862
        %vm2895 = vcmask 31768
        %2896 = vst.msk [vmem:[%s226] sm:$0xff] %vm2895, %v2863
        %2897 = vst.msk [vmem:[%s226 + $0x8] sm:$0xff] %vm2895, %v2864
        %2898 = vst.msk [vmem:[%s226 + $0x10] sm:$0xff] %vm2895, %v2865
        %2899 = vst.msk [vmem:[%s226 + $0x18] sm:$0xff] %vm2895, %v2866
        %2900 = vst.msk [vmem:[%s226 + $0x20] sm:$0xff] %vm2895, %v2867
        %2901 = vst.msk [vmem:[%s226 + $0x28] sm:$0xff] %vm2895, %v2868
        %2902 = vst.msk [vmem:[%s226 + $0x30] sm:$0xff] %vm2895, %v2869
        %2903 = vst.msk [vmem:[%s226 + $0x38] sm:$0xff] %vm2895, %v2870
        %2904 = vst.msk [vmem:[%s226 + $0x40] sm:$0xff] %vm2895, %v2871
        %2905 = vst.msk [vmem:[%s226 + $0x48] sm:$0xff] %vm2895, %v2872
        %2906 = vst.msk [vmem:[%s226 + $0x50] sm:$0xff] %vm2895, %v2873
        %2907 = vst.msk [vmem:[%s226 + $0x58] sm:$0xff] %vm2895, %v2874
        %2908 = vst.msk [vmem:[%s226 + $0x60] sm:$0xff] %vm2895, %v2875
        %2909 = vst.msk [vmem:[%s226 + $0x68] sm:$0xff] %vm2895, %v2876
        %2910 = vst.msk [vmem:[%s226 + $0x70] sm:$0xff] %vm2895, %v2877
        %2911 = vst.msk [vmem:[%s226 + $0x78] sm:$0xff] %vm2895, %v2878
        %2912 = vst.msk [vmem:[%s226 + $0x80] sm:$0xff] %vm2895, %v2879
        %2913 = vst.msk [vmem:[%s226 + $0x88] sm:$0xff] %vm2895, %v2880
        %2914 = vst.msk [vmem:[%s226 + $0x90] sm:$0xff] %vm2895, %v2881
        %2915 = vst.msk [vmem:[%s226 + $0x98] sm:$0xff] %vm2895, %v2882
        %2916 = vst.msk [vmem:[%s226 + $0xa0] sm:$0xff] %vm2895, %v2883
        %2917 = vst.msk [vmem:[%s226 + $0xa8] sm:$0xff] %vm2895, %v2884
        %2918 = vst.msk [vmem:[%s226 + $0xb0] sm:$0xff] %vm2895, %v2885
        %2919 = vst.msk [vmem:[%s226 + $0xb8] sm:$0xff] %vm2895, %v2886
        %2920 = vst.msk [vmem:[%s226 + $0xc0] sm:$0xff] %vm2895, %v2887
        %2921 = vst.msk [vmem:[%s226 + $0xc8] sm:$0xff] %vm2895, %v2888
        %2922 = vst.msk [vmem:[%s226 + $0xd0] sm:$0xff] %vm2895, %v2889
        %2923 = vst.msk [vmem:[%s226 + $0xd8] sm:$0xff] %vm2895, %v2890
        %2924 = vst.msk [vmem:[%s226 + $0xe0] sm:$0xff] %vm2895, %v2891
        %2925 = vst.msk [vmem:[%s226 + $0xe8] sm:$0xff] %vm2895, %v2892
        %2926 = vst.msk [vmem:[%s226 + $0xf0] sm:$0xff] %vm2895, %v2893
        %2927 = vst.msk [vmem:[%s226 + $0xf8] sm:$0xff] %vm2895, %v2894
        %vm2928 = vcmp.eq.f32.partialorder %v1002, %v2769
        %vm2929 = vcmp.eq.f32.partialorder %v1003, %v2769
        %vm2930 = vcmp.eq.f32.partialorder %v1002, %v2772
        %vm2931 = vcmp.eq.f32.partialorder %v1003, %v2772
        %vm2932 = vcmp.eq.f32.partialorder %v1002, %v2775
        %vm2933 = vcmp.eq.f32.partialorder %v1003, %v2775
        %vm2934 = vcmp.eq.f32.partialorder %v1002, %v2778
        %vm2935 = vcmp.eq.f32.partialorder %v1003, %v2778
        %vm2936 = vcmp.eq.f32.partialorder %v1002, %v2781
        %vm2937 = vcmp.eq.f32.partialorder %v1003, %v2781
        %vm2938 = vcmp.eq.f32.partialorder %v1002, %v2784
        %vm2939 = vcmp.eq.f32.partialorder %v1003, %v2784
        %vm2940 = vcmp.eq.f32.partialorder %v1002, %v2787
        %vm2941 = vcmp.eq.f32.partialorder %v1003, %v2787
        %vm2942 = vcmp.eq.f32.partialorder %v1002, %v2790
        %vm2943 = vcmp.eq.f32.partialorder %v1003, %v2790
        %vm2944 = vcmp.eq.f32.partialorder %v1002, %v2793
        %vm2945 = vcmp.eq.f32.partialorder %v1003, %v2793
        %vm2946 = vcmp.eq.f32.partialorder %v1002, %v2796
        %vm2947 = vcmp.eq.f32.partialorder %v1003, %v2796
        %vm2948 = vcmp.eq.f32.partialorder %v1002, %v2799
        %vm2949 = vcmp.eq.f32.partialorder %v1003, %v2799
        %vm2950 = vcmp.eq.f32.partialorder %v1002, %v2802
        %vm2951 = vcmp.eq.f32.partialorder %v1003, %v2802
        %vm2952 = vcmp.eq.f32.partialorder %v1002, %v2805
        %vm2953 = vcmp.eq.f32.partialorder %v1003, %v2805
        %vm2954 = vcmp.eq.f32.partialorder %v1002, %v2808
        %vm2955 = vcmp.eq.f32.partialorder %v1003, %v2808
        %vm2956 = vcmp.eq.f32.partialorder %v1002, %v2811
        %vm2957 = vcmp.eq.f32.partialorder %v1003, %v2811
        %vm2958 = vcmp.eq.f32.partialorder %v1002, %v2814
        %vm2959 = vcmp.eq.f32.partialorder %v1003, %v2814
        %vm2960 = vcmp.eq.f32.partialorder %v1002, %v2817
        %vm2961 = vcmp.eq.f32.partialorder %v1003, %v2817
        %vm2962 = vcmp.eq.f32.partialorder %v1002, %v2820
        %vm2963 = vcmp.eq.f32.partialorder %v1003, %v2820
        %vm2964 = vcmp.eq.f32.partialorder %v1002, %v2823
        %vm2965 = vcmp.eq.f32.partialorder %v1003, %v2823
        %vm2966 = vcmp.eq.f32.partialorder %v1002, %v2826
        %vm2967 = vcmp.eq.f32.partialorder %v1003, %v2826
        %vm2968 = vcmp.eq.f32.partialorder %v1002, %v2829
        %vm2969 = vcmp.eq.f32.partialorder %v1003, %v2829
        %vm2970 = vcmp.eq.f32.partialorder %v1002, %v2832
        %vm2971 = vcmp.eq.f32.partialorder %v1003, %v2832
        %vm2972 = vcmp.eq.f32.partialorder %v1002, %v2835
        %vm2973 = vcmp.eq.f32.partialorder %v1003, %v2835
        %vm2974 = vcmp.eq.f32.partialorder %v1002, %v2838
        %vm2975 = vcmp.eq.f32.partialorder %v1003, %v2838
        %vm2976 = vcmp.eq.f32.partialorder %v1002, %v2841
        %vm2977 = vcmp.eq.f32.partialorder %v1003, %v2841
        %vm2978 = vcmp.eq.f32.partialorder %v1002, %v2844
        %vm2979 = vcmp.eq.f32.partialorder %v1003, %v2844
        %vm2980 = vcmp.eq.f32.partialorder %v1002, %v2847
        %vm2981 = vcmp.eq.f32.partialorder %v1003, %v2847
        %vm2982 = vcmp.eq.f32.partialorder %v1002, %v2850
        %vm2983 = vcmp.eq.f32.partialorder %v1003, %v2850
        %vm2984 = vcmp.eq.f32.partialorder %v1002, %v2853
        %vm2985 = vcmp.eq.f32.partialorder %v1003, %v2853
        %vm2986 = vcmp.eq.f32.partialorder %v1002, %v2856
        %vm2987 = vcmp.eq.f32.partialorder %v1003, %v2856
        %vm2988 = vcmp.eq.f32.partialorder %v1002, %v2859
        %vm2989 = vcmp.eq.f32.partialorder %v1003, %v2859
        %vm2990 = vcmp.eq.f32.partialorder %v1002, %v2862
        %vm2991 = vcmp.eq.f32.partialorder %v1003, %v2862
        %v2992 = vsel %vm2928, -3e+38, %v2479
        %v2993 = vsel %vm2929, -3e+38, %v2480
        %v2994 = vsel %vm2930, -3e+38, %v2481
        %v2995 = vsel %vm2931, -3e+38, %v2482
        %v2996 = vsel %vm2932, -3e+38, %v2483
        %v2997 = vsel %vm2933, -3e+38, %v2484
        %v2998 = vsel %vm2934, -3e+38, %v2485
        %v2999 = vsel %vm2935, -3e+38, %v2486
        %v3000 = vsel %vm2936, -3e+38, %v2487
        %v3001 = vsel %vm2937, -3e+38, %v2488
        %v3002 = vsel %vm2938, -3e+38, %v2489
        %v3003 = vsel %vm2939, -3e+38, %v2490
        %v3004 = vsel %vm2940, -3e+38, %v2491
        %v3005 = vsel %vm2941, -3e+38, %v2492
        %v3006 = vsel %vm2942, -3e+38, %v2493
        %v3007 = vsel %vm2943, -3e+38, %v2494
        %v3008 = vsel %vm2944, -3e+38, %v2495
        %v3009 = vsel %vm2945, -3e+38, %v2496
        %v3010 = vsel %vm2946, -3e+38, %v2497
        %v3011 = vsel %vm2947, -3e+38, %v2498
        %v3012 = vsel %vm2948, -3e+38, %v2499
        %v3013 = vsel %vm2949, -3e+38, %v2500
        %v3014 = vsel %vm2950, -3e+38, %v2501
        %v3015 = vsel %vm2951, -3e+38, %v2502
        %v3016 = vsel %vm2952, -3e+38, %v2503
        %v3017 = vsel %vm2953, -3e+38, %v2504
        %v3018 = vsel %vm2954, -3e+38, %v2505
        %v3019 = vsel %vm2955, -3e+38, %v2506
        %v3020 = vsel %vm2956, -3e+38, %v2507
        %v3021 = vsel %vm2957, -3e+38, %v2508
        %v3022 = vsel %vm2958, -3e+38, %v2509
        %v3023 = vsel %vm2959, -3e+38, %v2510
        %v3024 = vsel %vm2960, -3e+38, %v2511
        %v3025 = vsel %vm2961, -3e+38, %v2512
        %v3026 = vsel %vm2962, -3e+38, %v2513
        %v3027 = vsel %vm2963, -3e+38, %v2514
        %v3028 = vsel %vm2964, -3e+38, %v2515
        %v3029 = vsel %vm2965, -3e+38, %v2516
        %v3030 = vsel %vm2966, -3e+38, %v2517
        %v3031 = vsel %vm2967, -3e+38, %v2518
        %v3032 = vsel %vm2968, -3e+38, %v2519
        %v3033 = vsel %vm2969, -3e+38, %v2520
        %v3034 = vsel %vm2970, -3e+38, %v2521
        %v3035 = vsel %vm2971, -3e+38, %v2522
        %v3036 = vsel %vm2972, -3e+38, %v2523
        %v3037 = vsel %vm2973, -3e+38, %v2524
        %v3038 = vsel %vm2974, -3e+38, %v2525
        %v3039 = vsel %vm2975, -3e+38, %v2526
        %v3040 = vsel %vm2976, -3e+38, %v2527
        %v3041 = vsel %vm2977, -3e+38, %v2528
        %v3042 = vsel %vm2978, -3e+38, %v2529
        %v3043 = vsel %vm2979, -3e+38, %v2530
        %v3044 = vsel %vm2980, -3e+38, %v2531
        %v3045 = vsel %vm2981, -3e+38, %v2532
        %v3046 = vsel %vm2982, -3e+38, %v2533
        %v3047 = vsel %vm2983, -3e+38, %v2534
        %v3048 = vsel %vm2984, -3e+38, %v2535
        %v3049 = vsel %vm2985, -3e+38, %v2536
        %v3050 = vsel %vm2986, -3e+38, %v2537
        %v3051 = vsel %vm2987, -3e+38, %v2538
        %v3052 = vsel %vm2988, -3e+38, %v2539
        %v3053 = vsel %vm2989, -3e+38, %v2540
        %v3054 = vsel %vm2990, -3e+38, %v2541
        %v3055 = vsel %vm2991, -3e+38, %v2542
        %v3056 = vmax.f32 %v2992, %v2993
        %3057 = vmax.xlane.f32.xlu0 %v3056
        %v3058 = vpop.xlane.xlu0 %3057
        %v3059 = vmax.f32 %v2994, %v2995
        %3060 = vmax.xlane.f32.xlu0 %v3059
        %v3061 = vpop.xlane.xlu0 %3060
        %v3062 = vmax.f32 %v2996, %v2997
        %3063 = vmax.xlane.f32.xlu0 %v3062
        %v3064 = vpop.xlane.xlu0 %3063
        %v3065 = vmax.f32 %v2998, %v2999
        %3066 = vmax.xlane.f32.xlu0 %v3065
        %v3067 = vpop.xlane.xlu0 %3066
        %v3068 = vmax.f32 %v3000, %v3001
        %3069 = vmax.xlane.f32.xlu0 %v3068
        %v3070 = vpop.xlane.xlu0 %3069
        %v3071 = vmax.f32 %v3002, %v3003
        %3072 = vmax.xlane.f32.xlu0 %v3071
        %v3073 = vpop.xlane.xlu0 %3072
        %v3074 = vmax.f32 %v3004, %v3005
        %3075 = vmax.xlane.f32.xlu0 %v3074
        %v3076 = vpop.xlane.xlu0 %3075
        %v3077 = vmax.f32 %v3006, %v3007
        %3078 = vmax.xlane.f32.xlu0 %v3077
        %v3079 = vpop.xlane.xlu0 %3078
        %v3080 = vmax.f32 %v3008, %v3009
        %3081 = vmax.xlane.f32.xlu0 %v3080
        %v3082 = vpop.xlane.xlu0 %3081
        %v3083 = vmax.f32 %v3010, %v3011
        %3084 = vmax.xlane.f32.xlu0 %v3083
        %v3085 = vpop.xlane.xlu0 %3084
        %v3086 = vmax.f32 %v3012, %v3013
        %3087 = vmax.xlane.f32.xlu0 %v3086
        %v3088 = vpop.xlane.xlu0 %3087
        %v3089 = vmax.f32 %v3014, %v3015
        %3090 = vmax.xlane.f32.xlu0 %v3089
        %v3091 = vpop.xlane.xlu0 %3090
        %v3092 = vmax.f32 %v3016, %v3017
        %3093 = vmax.xlane.f32.xlu0 %v3092
        %v3094 = vpop.xlane.xlu0 %3093
        %v3095 = vmax.f32 %v3018, %v3019
        %3096 = vmax.xlane.f32.xlu0 %v3095
        %v3097 = vpop.xlane.xlu0 %3096
        %v3098 = vmax.f32 %v3020, %v3021
        %3099 = vmax.xlane.f32.xlu0 %v3098
        %v3100 = vpop.xlane.xlu0 %3099
        %v3101 = vmax.f32 %v3022, %v3023
        %3102 = vmax.xlane.f32.xlu0 %v3101
        %v3103 = vpop.xlane.xlu0 %3102
        %v3104 = vmax.f32 %v3024, %v3025
        %3105 = vmax.xlane.f32.xlu0 %v3104
        %v3106 = vpop.xlane.xlu0 %3105
        %v3107 = vmax.f32 %v3026, %v3027
        %3108 = vmax.xlane.f32.xlu0 %v3107
        %v3109 = vpop.xlane.xlu0 %3108
        %v3110 = vmax.f32 %v3028, %v3029
        %3111 = vmax.xlane.f32.xlu0 %v3110
        %v3112 = vpop.xlane.xlu0 %3111
        %v3113 = vmax.f32 %v3030, %v3031
        %3114 = vmax.xlane.f32.xlu0 %v3113
        %v3115 = vpop.xlane.xlu0 %3114
        %v3116 = vmax.f32 %v3032, %v3033
        %3117 = vmax.xlane.f32.xlu0 %v3116
        %v3118 = vpop.xlane.xlu0 %3117
        %v3119 = vmax.f32 %v3034, %v3035
        %3120 = vmax.xlane.f32.xlu0 %v3119
        %v3121 = vpop.xlane.xlu0 %3120
        %v3122 = vmax.f32 %v3036, %v3037
        %3123 = vmax.xlane.f32.xlu0 %v3122
        %v3124 = vpop.xlane.xlu0 %3123
        %v3125 = vmax.f32 %v3038, %v3039
        %3126 = vmax.xlane.f32.xlu0 %v3125
        %v3127 = vpop.xlane.xlu0 %3126
        %v3128 = vmax.f32 %v3040, %v3041
        %3129 = vmax.xlane.f32.xlu0 %v3128
        %v3130 = vpop.xlane.xlu0 %3129
        %v3131 = vmax.f32 %v3042, %v3043
        %3132 = vmax.xlane.f32.xlu0 %v3131
        %v3133 = vpop.xlane.xlu0 %3132
        %v3134 = vmax.f32 %v3044, %v3045
        %3135 = vmax.xlane.f32.xlu0 %v3134
        %v3136 = vpop.xlane.xlu0 %3135
        %v3137 = vmax.f32 %v3046, %v3047
        %3138 = vmax.xlane.f32.xlu0 %v3137
        %v3139 = vpop.xlane.xlu0 %3138
        %v3140 = vmax.f32 %v3048, %v3049
        %3141 = vmax.xlane.f32.xlu0 %v3140
        %v3142 = vpop.xlane.xlu0 %3141
        %v3143 = vmax.f32 %v3050, %v3051
        %3144 = vmax.xlane.f32.xlu0 %v3143
        %v3145 = vpop.xlane.xlu0 %3144
        %v3146 = vmax.f32 %v3052, %v3053
        %3147 = vmax.xlane.f32.xlu0 %v3146
        %v3148 = vpop.xlane.xlu0 %3147
        %v3149 = vmax.f32 %v3054, %v3055
        %3150 = vmax.xlane.f32.xlu0 %v3149
        %v3151 = vpop.xlane.xlu0 %3150
        %vm3152 = vcmp.eq.f32.partialorder %v2992, %v3058
        %vm3153 = vcmp.eq.f32.partialorder %v2993, %v3058
        %vm3154 = vcmp.eq.f32.partialorder %v2994, %v3061
        %vm3155 = vcmp.eq.f32.partialorder %v2995, %v3061
        %vm3156 = vcmp.eq.f32.partialorder %v2996, %v3064
        %vm3157 = vcmp.eq.f32.partialorder %v2997, %v3064
        %vm3158 = vcmp.eq.f32.partialorder %v2998, %v3067
        %vm3159 = vcmp.eq.f32.partialorder %v2999, %v3067
        %vm3160 = vcmp.eq.f32.partialorder %v3000, %v3070
        %vm3161 = vcmp.eq.f32.partialorder %v3001, %v3070
        %vm3162 = vcmp.eq.f32.partialorder %v3002, %v3073
        %vm3163 = vcmp.eq.f32.partialorder %v3003, %v3073
        %vm3164 = vcmp.eq.f32.partialorder %v3004, %v3076
        %vm3165 = vcmp.eq.f32.partialorder %v3005, %v3076
        %vm3166 = vcmp.eq.f32.partialorder %v3006, %v3079
        %vm3167 = vcmp.eq.f32.partialorder %v3007, %v3079
        %vm3168 = vcmp.eq.f32.partialorder %v3008, %v3082
        %vm3169 = vcmp.eq.f32.partialorder %v3009, %v3082
        %vm3170 = vcmp.eq.f32.partialorder %v3010, %v3085
        %vm3171 = vcmp.eq.f32.partialorder %v3011, %v3085
        %vm3172 = vcmp.eq.f32.partialorder %v3012, %v3088
        %vm3173 = vcmp.eq.f32.partialorder %v3013, %v3088
        %vm3174 = vcmp.eq.f32.partialorder %v3014, %v3091
        %vm3175 = vcmp.eq.f32.partialorder %v3015, %v3091
        %vm3176 = vcmp.eq.f32.partialorder %v3016, %v3094
        %vm3177 = vcmp.eq.f32.partialorder %v3017, %v3094
        %vm3178 = vcmp.eq.f32.partialorder %v3018, %v3097
        %vm3179 = vcmp.eq.f32.partialorder %v3019, %v3097
        %vm3180 = vcmp.eq.f32.partialorder %v3020, %v3100
        %vm3181 = vcmp.eq.f32.partialorder %v3021, %v3100
        %vm3182 = vcmp.eq.f32.partialorder %v3022, %v3103
        %vm3183 = vcmp.eq.f32.partialorder %v3023, %v3103
        %vm3184 = vcmp.eq.f32.partialorder %v3024, %v3106
        %vm3185 = vcmp.eq.f32.partialorder %v3025, %v3106
        %vm3186 = vcmp.eq.f32.partialorder %v3026, %v3109
        %vm3187 = vcmp.eq.f32.partialorder %v3027, %v3109
        %vm3188 = vcmp.eq.f32.partialorder %v3028, %v3112
        %vm3189 = vcmp.eq.f32.partialorder %v3029, %v3112
        %vm3190 = vcmp.eq.f32.partialorder %v3030, %v3115
        %vm3191 = vcmp.eq.f32.partialorder %v3031, %v3115
        %vm3192 = vcmp.eq.f32.partialorder %v3032, %v3118
        %vm3193 = vcmp.eq.f32.partialorder %v3033, %v3118
        %vm3194 = vcmp.eq.f32.partialorder %v3034, %v3121
        %vm3195 = vcmp.eq.f32.partialorder %v3035, %v3121
        %vm3196 = vcmp.eq.f32.partialorder %v3036, %v3124
        %vm3197 = vcmp.eq.f32.partialorder %v3037, %v3124
        %vm3198 = vcmp.eq.f32.partialorder %v3038, %v3127
        %vm3199 = vcmp.eq.f32.partialorder %v3039, %v3127
        %vm3200 = vcmp.eq.f32.partialorder %v3040, %v3130
        %vm3201 = vcmp.eq.f32.partialorder %v3041, %v3130
        %vm3202 = vcmp.eq.f32.partialorder %v3042, %v3133
        %vm3203 = vcmp.eq.f32.partialorder %v3043, %v3133
        %vm3204 = vcmp.eq.f32.partialorder %v3044, %v3136
        %vm3205 = vcmp.eq.f32.partialorder %v3045, %v3136
        %vm3206 = vcmp.eq.f32.partialorder %v3046, %v3139
        %vm3207 = vcmp.eq.f32.partialorder %v3047, %v3139
        %vm3208 = vcmp.eq.f32.partialorder %v3048, %v3142
        %vm3209 = vcmp.eq.f32.partialorder %v3049, %v3142
        %vm3210 = vcmp.eq.f32.partialorder %v3050, %v3145
        %vm3211 = vcmp.eq.f32.partialorder %v3051, %v3145
        %vm3212 = vcmp.eq.f32.partialorder %v3052, %v3148
        %vm3213 = vcmp.eq.f32.partialorder %v3053, %v3148
        %vm3214 = vcmp.eq.f32.partialorder %v3054, %v3151
        %vm3215 = vcmp.eq.f32.partialorder %v3055, %v3151
        %v3216 = vsel %vm3152, %v1002, 256.0
        %v3217 = vsel %vm3153, %v1003, 256.0
        %v3218 = vsel %vm3154, %v1002, 256.0
        %v3219 = vsel %vm3155, %v1003, 256.0
        %v3220 = vsel %vm3156, %v1002, 256.0
        %v3221 = vsel %vm3157, %v1003, 256.0
        %v3222 = vsel %vm3158, %v1002, 256.0
        %v3223 = vsel %vm3159, %v1003, 256.0
        %v3224 = vsel %vm3160, %v1002, 256.0
        %v3225 = vsel %vm3161, %v1003, 256.0
        %v3226 = vsel %vm3162, %v1002, 256.0
        %v3227 = vsel %vm3163, %v1003, 256.0
        %v3228 = vsel %vm3164, %v1002, 256.0
        %v3229 = vsel %vm3165, %v1003, 256.0
        %v3230 = vsel %vm3166, %v1002, 256.0
        %v3231 = vsel %vm3167, %v1003, 256.0
        %v3232 = vsel %vm3168, %v1002, 256.0
        %v3233 = vsel %vm3169, %v1003, 256.0
        %v3234 = vsel %vm3170, %v1002, 256.0
        %v3235 = vsel %vm3171, %v1003, 256.0
        %v3236 = vsel %vm3172, %v1002, 256.0
        %v3237 = vsel %vm3173, %v1003, 256.0
        %v3238 = vsel %vm3174, %v1002, 256.0
        %v3239 = vsel %vm3175, %v1003, 256.0
        %v3240 = vsel %vm3176, %v1002, 256.0
        %v3241 = vsel %vm3177, %v1003, 256.0
        %v3242 = vsel %vm3178, %v1002, 256.0
        %v3243 = vsel %vm3179, %v1003, 256.0
        %v3244 = vsel %vm3180, %v1002, 256.0
        %v3245 = vsel %vm3181, %v1003, 256.0
        %v3246 = vsel %vm3182, %v1002, 256.0
        %v3247 = vsel %vm3183, %v1003, 256.0
        %v3248 = vsel %vm3184, %v1002, 256.0
        %v3249 = vsel %vm3185, %v1003, 256.0
        %v3250 = vsel %vm3186, %v1002, 256.0
        %v3251 = vsel %vm3187, %v1003, 256.0
        %v3252 = vsel %vm3188, %v1002, 256.0
        %v3253 = vsel %vm3189, %v1003, 256.0
        %v3254 = vsel %vm3190, %v1002, 256.0
        %v3255 = vsel %vm3191, %v1003, 256.0
        %v3256 = vsel %vm3192, %v1002, 256.0
        %v3257 = vsel %vm3193, %v1003, 256.0
        %v3258 = vsel %vm3194, %v1002, 256.0
        %v3259 = vsel %vm3195, %v1003, 256.0
        %v3260 = vsel %vm3196, %v1002, 256.0
        %v3261 = vsel %vm3197, %v1003, 256.0
        %v3262 = vsel %vm3198, %v1002, 256.0
        %v3263 = vsel %vm3199, %v1003, 256.0
        %v3264 = vsel %vm3200, %v1002, 256.0
        %v3265 = vsel %vm3201, %v1003, 256.0
        %v3266 = vsel %vm3202, %v1002, 256.0
        %v3267 = vsel %vm3203, %v1003, 256.0
        %v3268 = vsel %vm3204, %v1002, 256.0
        %v3269 = vsel %vm3205, %v1003, 256.0
        %v3270 = vsel %vm3206, %v1002, 256.0
        %v3271 = vsel %vm3207, %v1003, 256.0
        %v3272 = vsel %vm3208, %v1002, 256.0
        %v3273 = vsel %vm3209, %v1003, 256.0
        %v3274 = vsel %vm3210, %v1002, 256.0
        %v3275 = vsel %vm3211, %v1003, 256.0
        %v3276 = vsel %vm3212, %v1002, 256.0
        %v3277 = vsel %vm3213, %v1003, 256.0
        %v3278 = vsel %vm3214, %v1002, 256.0
        %v3279 = vsel %vm3215, %v1003, 256.0
        %v3280 = vmin.f32 %v3216, %v3217
        %3281 = vmin.xlane.f32.xlu0 %v3280
        %v3282 = vpop.xlane.xlu0 %3281
        %v3283 = vmin.f32 %v3218, %v3219
        %3284 = vmin.xlane.f32.xlu0 %v3283
        %v3285 = vpop.xlane.xlu0 %3284
        %v3286 = vmin.f32 %v3220, %v3221
        %3287 = vmin.xlane.f32.xlu0 %v3286
        %v3288 = vpop.xlane.xlu0 %3287
        %v3289 = vmin.f32 %v3222, %v3223
        %3290 = vmin.xlane.f32.xlu0 %v3289
        %v3291 = vpop.xlane.xlu0 %3290
        %v3292 = vmin.f32 %v3224, %v3225
        %3293 = vmin.xlane.f32.xlu0 %v3292
        %v3294 = vpop.xlane.xlu0 %3293
        %v3295 = vmin.f32 %v3226, %v3227
        %3296 = vmin.xlane.f32.xlu0 %v3295
        %v3297 = vpop.xlane.xlu0 %3296
        %v3298 = vmin.f32 %v3228, %v3229
        %3299 = vmin.xlane.f32.xlu0 %v3298
        %v3300 = vpop.xlane.xlu0 %3299
        %v3301 = vmin.f32 %v3230, %v3231
        %3302 = vmin.xlane.f32.xlu0 %v3301
        %v3303 = vpop.xlane.xlu0 %3302
        %v3304 = vmin.f32 %v3232, %v3233
        %3305 = vmin.xlane.f32.xlu0 %v3304
        %v3306 = vpop.xlane.xlu0 %3305
        %v3307 = vmin.f32 %v3234, %v3235
        %3308 = vmin.xlane.f32.xlu0 %v3307
        %v3309 = vpop.xlane.xlu0 %3308
        %v3310 = vmin.f32 %v3236, %v3237
        %3311 = vmin.xlane.f32.xlu0 %v3310
        %v3312 = vpop.xlane.xlu0 %3311
        %v3313 = vmin.f32 %v3238, %v3239
        %3314 = vmin.xlane.f32.xlu0 %v3313
        %v3315 = vpop.xlane.xlu0 %3314
        %v3316 = vmin.f32 %v3240, %v3241
        %3317 = vmin.xlane.f32.xlu0 %v3316
        %v3318 = vpop.xlane.xlu0 %3317
        %v3319 = vmin.f32 %v3242, %v3243
        %3320 = vmin.xlane.f32.xlu0 %v3319
        %v3321 = vpop.xlane.xlu0 %3320
        %v3322 = vmin.f32 %v3244, %v3245
        %3323 = vmin.xlane.f32.xlu0 %v3322
        %v3324 = vpop.xlane.xlu0 %3323
        %v3325 = vmin.f32 %v3246, %v3247
        %3326 = vmin.xlane.f32.xlu0 %v3325
        %v3327 = vpop.xlane.xlu0 %3326
        %v3328 = vmin.f32 %v3248, %v3249
        %3329 = vmin.xlane.f32.xlu0 %v3328
        %v3330 = vpop.xlane.xlu0 %3329
        %v3331 = vmin.f32 %v3250, %v3251
        %3332 = vmin.xlane.f32.xlu0 %v3331
        %v3333 = vpop.xlane.xlu0 %3332
        %v3334 = vmin.f32 %v3252, %v3253
        %3335 = vmin.xlane.f32.xlu0 %v3334
        %v3336 = vpop.xlane.xlu0 %3335
        %v3337 = vmin.f32 %v3254, %v3255
        %3338 = vmin.xlane.f32.xlu0 %v3337
        %v3339 = vpop.xlane.xlu0 %3338
        %v3340 = vmin.f32 %v3256, %v3257
        %3341 = vmin.xlane.f32.xlu0 %v3340
        %v3342 = vpop.xlane.xlu0 %3341
        %v3343 = vmin.f32 %v3258, %v3259
        %3344 = vmin.xlane.f32.xlu0 %v3343
        %v3345 = vpop.xlane.xlu0 %3344
        %v3346 = vmin.f32 %v3260, %v3261
        %3347 = vmin.xlane.f32.xlu0 %v3346
        %v3348 = vpop.xlane.xlu0 %3347
        %v3349 = vmin.f32 %v3262, %v3263
        %3350 = vmin.xlane.f32.xlu0 %v3349
        %v3351 = vpop.xlane.xlu0 %3350
        %v3352 = vmin.f32 %v3264, %v3265
        %3353 = vmin.xlane.f32.xlu0 %v3352
        %v3354 = vpop.xlane.xlu0 %3353
        %v3355 = vmin.f32 %v3266, %v3267
        %3356 = vmin.xlane.f32.xlu0 %v3355
        %v3357 = vpop.xlane.xlu0 %3356
        %v3358 = vmin.f32 %v3268, %v3269
        %3359 = vmin.xlane.f32.xlu0 %v3358
        %v3360 = vpop.xlane.xlu0 %3359
        %v3361 = vmin.f32 %v3270, %v3271
        %3362 = vmin.xlane.f32.xlu0 %v3361
        %v3363 = vpop.xlane.xlu0 %3362
        %v3364 = vmin.f32 %v3272, %v3273
        %3365 = vmin.xlane.f32.xlu0 %v3364
        %v3366 = vpop.xlane.xlu0 %3365
        %v3367 = vmin.f32 %v3274, %v3275
        %3368 = vmin.xlane.f32.xlu0 %v3367
        %v3369 = vpop.xlane.xlu0 %3368
        %v3370 = vmin.f32 %v3276, %v3277
        %3371 = vmin.xlane.f32.xlu0 %v3370
        %v3372 = vpop.xlane.xlu0 %3371
        %v3373 = vmin.f32 %v3278, %v3279
        %3374 = vmin.xlane.f32.xlu0 %v3373
        %v3375 = vpop.xlane.xlu0 %3374
        %v3376 = vcvt.f32.s32.to.zero.pseudo %v3282
        %v3377 = vcvt.f32.s32.to.zero.pseudo %v3285
        %v3378 = vcvt.f32.s32.to.zero.pseudo %v3288
        %v3379 = vcvt.f32.s32.to.zero.pseudo %v3291
        %v3380 = vcvt.f32.s32.to.zero.pseudo %v3294
        %v3381 = vcvt.f32.s32.to.zero.pseudo %v3297
        %v3382 = vcvt.f32.s32.to.zero.pseudo %v3300
        %v3383 = vcvt.f32.s32.to.zero.pseudo %v3303
        %v3384 = vcvt.f32.s32.to.zero.pseudo %v3306
        %v3385 = vcvt.f32.s32.to.zero.pseudo %v3309
        %v3386 = vcvt.f32.s32.to.zero.pseudo %v3312
        %v3387 = vcvt.f32.s32.to.zero.pseudo %v3315
        %v3388 = vcvt.f32.s32.to.zero.pseudo %v3318
        %v3389 = vcvt.f32.s32.to.zero.pseudo %v3321
        %v3390 = vcvt.f32.s32.to.zero.pseudo %v3324
        %v3391 = vcvt.f32.s32.to.zero.pseudo %v3327
        %v3392 = vcvt.f32.s32.to.zero.pseudo %v3330
        %v3393 = vcvt.f32.s32.to.zero.pseudo %v3333
        %v3394 = vcvt.f32.s32.to.zero.pseudo %v3336
        %v3395 = vcvt.f32.s32.to.zero.pseudo %v3339
        %v3396 = vcvt.f32.s32.to.zero.pseudo %v3342
        %v3397 = vcvt.f32.s32.to.zero.pseudo %v3345
        %v3398 = vcvt.f32.s32.to.zero.pseudo %v3348
        %v3399 = vcvt.f32.s32.to.zero.pseudo %v3351
        %v3400 = vcvt.f32.s32.to.zero.pseudo %v3354
        %v3401 = vcvt.f32.s32.to.zero.pseudo %v3357
        %v3402 = vcvt.f32.s32.to.zero.pseudo %v3360
        %v3403 = vcvt.f32.s32.to.zero.pseudo %v3363
        %v3404 = vcvt.f32.s32.to.zero.pseudo %v3366
        %v3405 = vcvt.f32.s32.to.zero.pseudo %v3369
        %v3406 = vcvt.f32.s32.to.zero.pseudo %v3372
        %v3407 = vcvt.f32.s32.to.zero.pseudo %v3375
        %vm3408 = vcmask 39968
        %3409 = vst.msk [vmem:[%s226] sm:$0xff] %vm3408, %v3376
        %3410 = vst.msk [vmem:[%s226 + $0x8] sm:$0xff] %vm3408, %v3377
        %3411 = vst.msk [vmem:[%s226 + $0x10] sm:$0xff] %vm3408, %v3378
        %3412 = vst.msk [vmem:[%s226 + $0x18] sm:$0xff] %vm3408, %v3379
        %3413 = vst.msk [vmem:[%s226 + $0x20] sm:$0xff] %vm3408, %v3380
        %3414 = vst.msk [vmem:[%s226 + $0x28] sm:$0xff] %vm3408, %v3381
        %3415 = vst.msk [vmem:[%s226 + $0x30] sm:$0xff] %vm3408, %v3382
        %3416 = vst.msk [vmem:[%s226 + $0x38] sm:$0xff] %vm3408, %v3383
        %3417 = vst.msk [vmem:[%s226 + $0x40] sm:$0xff] %vm3408, %v3384
        %3418 = vst.msk [vmem:[%s226 + $0x48] sm:$0xff] %vm3408, %v3385
        %3419 = vst.msk [vmem:[%s226 + $0x50] sm:$0xff] %vm3408, %v3386
        %3420 = vst.msk [vmem:[%s226 + $0x58] sm:$0xff] %vm3408, %v3387
        %3421 = vst.msk [vmem:[%s226 + $0x60] sm:$0xff] %vm3408, %v3388
        %3422 = vst.msk [vmem:[%s226 + $0x68] sm:$0xff] %vm3408, %v3389
        %3423 = vst.msk [vmem:[%s226 + $0x70] sm:$0xff] %vm3408, %v3390
        %3424 = vst.msk [vmem:[%s226 + $0x78] sm:$0xff] %vm3408, %v3391
        %3425 = vst.msk [vmem:[%s226 + $0x80] sm:$0xff] %vm3408, %v3392
        %3426 = vst.msk [vmem:[%s226 + $0x88] sm:$0xff] %vm3408, %v3393
        %3427 = vst.msk [vmem:[%s226 + $0x90] sm:$0xff] %vm3408, %v3394
        %3428 = vst.msk [vmem:[%s226 + $0x98] sm:$0xff] %vm3408, %v3395
        %3429 = vst.msk [vmem:[%s226 + $0xa0] sm:$0xff] %vm3408, %v3396
        %3430 = vst.msk [vmem:[%s226 + $0xa8] sm:$0xff] %vm3408, %v3397
        %3431 = vst.msk [vmem:[%s226 + $0xb0] sm:$0xff] %vm3408, %v3398
        %3432 = vst.msk [vmem:[%s226 + $0xb8] sm:$0xff] %vm3408, %v3399
        %3433 = vst.msk [vmem:[%s226 + $0xc0] sm:$0xff] %vm3408, %v3400
        %3434 = vst.msk [vmem:[%s226 + $0xc8] sm:$0xff] %vm3408, %v3401
        %3435 = vst.msk [vmem:[%s226 + $0xd0] sm:$0xff] %vm3408, %v3402
        %3436 = vst.msk [vmem:[%s226 + $0xd8] sm:$0xff] %vm3408, %v3403
        %3437 = vst.msk [vmem:[%s226 + $0xe0] sm:$0xff] %vm3408, %v3404
        %3438 = vst.msk [vmem:[%s226 + $0xe8] sm:$0xff] %vm3408, %v3405
        %3439 = vst.msk [vmem:[%s226 + $0xf0] sm:$0xff] %vm3408, %v3406
        %3440 = vst.msk [vmem:[%s226 + $0xf8] sm:$0xff] %vm3408, %v3407
        %vm3441 = vcmp.eq.f32.partialorder %v1002, %v3282
        %vm3442 = vcmp.eq.f32.partialorder %v1003, %v3282
        %vm3443 = vcmp.eq.f32.partialorder %v1002, %v3285
        %vm3444 = vcmp.eq.f32.partialorder %v1003, %v3285
        %vm3445 = vcmp.eq.f32.partialorder %v1002, %v3288
        %vm3446 = vcmp.eq.f32.partialorder %v1003, %v3288
        %vm3447 = vcmp.eq.f32.partialorder %v1002, %v3291
        %vm3448 = vcmp.eq.f32.partialorder %v1003, %v3291
        %vm3449 = vcmp.eq.f32.partialorder %v1002, %v3294
        %vm3450 = vcmp.eq.f32.partialorder %v1003, %v3294
        %vm3451 = vcmp.eq.f32.partialorder %v1002, %v3297
        %vm3452 = vcmp.eq.f32.partialorder %v1003, %v3297
        %vm3453 = vcmp.eq.f32.partialorder %v1002, %v3300
        %vm3454 = vcmp.eq.f32.partialorder %v1003, %v3300
        %vm3455 = vcmp.eq.f32.partialorder %v1002, %v3303
        %vm3456 = vcmp.eq.f32.partialorder %v1003, %v3303
        %vm3457 = vcmp.eq.f32.partialorder %v1002, %v3306
        %vm3458 = vcmp.eq.f32.partialorder %v1003, %v3306
        %vm3459 = vcmp.eq.f32.partialorder %v1002, %v3309
        %vm3460 = vcmp.eq.f32.partialorder %v1003, %v3309
        %vm3461 = vcmp.eq.f32.partialorder %v1002, %v3312
        %vm3462 = vcmp.eq.f32.partialorder %v1003, %v3312
        %vm3463 = vcmp.eq.f32.partialorder %v1002, %v3315
        %vm3464 = vcmp.eq.f32.partialorder %v1003, %v3315
        %vm3465 = vcmp.eq.f32.partialorder %v1002, %v3318
        %vm3466 = vcmp.eq.f32.partialorder %v1003, %v3318
        %vm3467 = vcmp.eq.f32.partialorder %v1002, %v3321
        %vm3468 = vcmp.eq.f32.partialorder %v1003, %v3321
        %vm3469 = vcmp.eq.f32.partialorder %v1002, %v3324
        %vm3470 = vcmp.eq.f32.partialorder %v1003, %v3324
        %vm3471 = vcmp.eq.f32.partialorder %v1002, %v3327
        %vm3472 = vcmp.eq.f32.partialorder %v1003, %v3327
        %vm3473 = vcmp.eq.f32.partialorder %v1002, %v3330
        %vm3474 = vcmp.eq.f32.partialorder %v1003, %v3330
        %vm3475 = vcmp.eq.f32.partialorder %v1002, %v3333
        %vm3476 = vcmp.eq.f32.partialorder %v1003, %v3333
        %vm3477 = vcmp.eq.f32.partialorder %v1002, %v3336
        %vm3478 = vcmp.eq.f32.partialorder %v1003, %v3336
        %vm3479 = vcmp.eq.f32.partialorder %v1002, %v3339
        %vm3480 = vcmp.eq.f32.partialorder %v1003, %v3339
        %vm3481 = vcmp.eq.f32.partialorder %v1002, %v3342
        %vm3482 = vcmp.eq.f32.partialorder %v1003, %v3342
        %vm3483 = vcmp.eq.f32.partialorder %v1002, %v3345
        %vm3484 = vcmp.eq.f32.partialorder %v1003, %v3345
        %vm3485 = vcmp.eq.f32.partialorder %v1002, %v3348
        %vm3486 = vcmp.eq.f32.partialorder %v1003, %v3348
        %vm3487 = vcmp.eq.f32.partialorder %v1002, %v3351
        %vm3488 = vcmp.eq.f32.partialorder %v1003, %v3351
        %vm3489 = vcmp.eq.f32.partialorder %v1002, %v3354
        %vm3490 = vcmp.eq.f32.partialorder %v1003, %v3354
        %vm3491 = vcmp.eq.f32.partialorder %v1002, %v3357
        %vm3492 = vcmp.eq.f32.partialorder %v1003, %v3357
        %vm3493 = vcmp.eq.f32.partialorder %v1002, %v3360
        %vm3494 = vcmp.eq.f32.partialorder %v1003, %v3360
        %vm3495 = vcmp.eq.f32.partialorder %v1002, %v3363
        %vm3496 = vcmp.eq.f32.partialorder %v1003, %v3363
        %vm3497 = vcmp.eq.f32.partialorder %v1002, %v3366
        %vm3498 = vcmp.eq.f32.partialorder %v1003, %v3366
        %vm3499 = vcmp.eq.f32.partialorder %v1002, %v3369
        %vm3500 = vcmp.eq.f32.partialorder %v1003, %v3369
        %vm3501 = vcmp.eq.f32.partialorder %v1002, %v3372
        %vm3502 = vcmp.eq.f32.partialorder %v1003, %v3372
        %vm3503 = vcmp.eq.f32.partialorder %v1002, %v3375
        %vm3504 = vcmp.eq.f32.partialorder %v1003, %v3375
        %v3505 = vsel %vm3441, -3e+38, %v2992
        %v3506 = vsel %vm3442, -3e+38, %v2993
        %v3507 = vsel %vm3443, -3e+38, %v2994
        %v3508 = vsel %vm3444, -3e+38, %v2995
        %v3509 = vsel %vm3445, -3e+38, %v2996
        %v3510 = vsel %vm3446, -3e+38, %v2997
        %v3511 = vsel %vm3447, -3e+38, %v2998
        %v3512 = vsel %vm3448, -3e+38, %v2999
        %v3513 = vsel %vm3449, -3e+38, %v3000
        %v3514 = vsel %vm3450, -3e+38, %v3001
        %v3515 = vsel %vm3451, -3e+38, %v3002
        %v3516 = vsel %vm3452, -3e+38, %v3003
        %v3517 = vsel %vm3453, -3e+38, %v3004
        %v3518 = vsel %vm3454, -3e+38, %v3005
        %v3519 = vsel %vm3455, -3e+38, %v3006
        %v3520 = vsel %vm3456, -3e+38, %v3007
        %v3521 = vsel %vm3457, -3e+38, %v3008
        %v3522 = vsel %vm3458, -3e+38, %v3009
        %v3523 = vsel %vm3459, -3e+38, %v3010
        %v3524 = vsel %vm3460, -3e+38, %v3011
        %v3525 = vsel %vm3461, -3e+38, %v3012
        %v3526 = vsel %vm3462, -3e+38, %v3013
        %v3527 = vsel %vm3463, -3e+38, %v3014
        %v3528 = vsel %vm3464, -3e+38, %v3015
        %v3529 = vsel %vm3465, -3e+38, %v3016
        %v3530 = vsel %vm3466, -3e+38, %v3017
        %v3531 = vsel %vm3467, -3e+38, %v3018
        %v3532 = vsel %vm3468, -3e+38, %v3019
        %v3533 = vsel %vm3469, -3e+38, %v3020
        %v3534 = vsel %vm3470, -3e+38, %v3021
        %v3535 = vsel %vm3471, -3e+38, %v3022
        %v3536 = vsel %vm3472, -3e+38, %v3023
        %v3537 = vsel %vm3473, -3e+38, %v3024
        %v3538 = vsel %vm3474, -3e+38, %v3025
        %v3539 = vsel %vm3475, -3e+38, %v3026
        %v3540 = vsel %vm3476, -3e+38, %v3027
        %v3541 = vsel %vm3477, -3e+38, %v3028
        %v3542 = vsel %vm3478, -3e+38, %v3029
        %v3543 = vsel %vm3479, -3e+38, %v3030
        %v3544 = vsel %vm3480, -3e+38, %v3031
        %v3545 = vsel %vm3481, -3e+38, %v3032
        %v3546 = vsel %vm3482, -3e+38, %v3033
        %v3547 = vsel %vm3483, -3e+38, %v3034
        %v3548 = vsel %vm3484, -3e+38, %v3035
        %v3549 = vsel %vm3485, -3e+38, %v3036
        %v3550 = vsel %vm3486, -3e+38, %v3037
        %v3551 = vsel %vm3487, -3e+38, %v3038
        %v3552 = vsel %vm3488, -3e+38, %v3039
        %v3553 = vsel %vm3489, -3e+38, %v3040
        %v3554 = vsel %vm3490, -3e+38, %v3041
        %v3555 = vsel %vm3491, -3e+38, %v3042
        %v3556 = vsel %vm3492, -3e+38, %v3043
        %v3557 = vsel %vm3493, -3e+38, %v3044
        %v3558 = vsel %vm3494, -3e+38, %v3045
        %v3559 = vsel %vm3495, -3e+38, %v3046
        %v3560 = vsel %vm3496, -3e+38, %v3047
        %v3561 = vsel %vm3497, -3e+38, %v3048
        %v3562 = vsel %vm3498, -3e+38, %v3049
        %v3563 = vsel %vm3499, -3e+38, %v3050
        %v3564 = vsel %vm3500, -3e+38, %v3051
        %v3565 = vsel %vm3501, -3e+38, %v3052
        %v3566 = vsel %vm3502, -3e+38, %v3053
        %v3567 = vsel %vm3503, -3e+38, %v3054
        %v3568 = vsel %vm3504, -3e+38, %v3055
        %v3569 = vmax.f32 %v3505, %v3506
        %3570 = vmax.xlane.f32.xlu0 %v3569
        %v3571 = vpop.xlane.xlu0 %3570
        %v3572 = vmax.f32 %v3507, %v3508
        %3573 = vmax.xlane.f32.xlu0 %v3572
        %v3574 = vpop.xlane.xlu0 %3573
        %v3575 = vmax.f32 %v3509, %v3510
        %3576 = vmax.xlane.f32.xlu0 %v3575
        %v3577 = vpop.xlane.xlu0 %3576
        %v3578 = vmax.f32 %v3511, %v3512
        %3579 = vmax.xlane.f32.xlu0 %v3578
        %v3580 = vpop.xlane.xlu0 %3579
        %v3581 = vmax.f32 %v3513, %v3514
        %3582 = vmax.xlane.f32.xlu0 %v3581
        %v3583 = vpop.xlane.xlu0 %3582
        %v3584 = vmax.f32 %v3515, %v3516
        %3585 = vmax.xlane.f32.xlu0 %v3584
        %v3586 = vpop.xlane.xlu0 %3585
        %v3587 = vmax.f32 %v3517, %v3518
        %3588 = vmax.xlane.f32.xlu0 %v3587
        %v3589 = vpop.xlane.xlu0 %3588
        %v3590 = vmax.f32 %v3519, %v3520
        %3591 = vmax.xlane.f32.xlu0 %v3590
        %v3592 = vpop.xlane.xlu0 %3591
        %v3593 = vmax.f32 %v3521, %v3522
        %3594 = vmax.xlane.f32.xlu0 %v3593
        %v3595 = vpop.xlane.xlu0 %3594
        %v3596 = vmax.f32 %v3523, %v3524
        %3597 = vmax.xlane.f32.xlu0 %v3596
        %v3598 = vpop.xlane.xlu0 %3597
        %v3599 = vmax.f32 %v3525, %v3526
        %3600 = vmax.xlane.f32.xlu0 %v3599
        %v3601 = vpop.xlane.xlu0 %3600
        %v3602 = vmax.f32 %v3527, %v3528
        %3603 = vmax.xlane.f32.xlu0 %v3602
        %v3604 = vpop.xlane.xlu0 %3603
        %v3605 = vmax.f32 %v3529, %v3530
        %3606 = vmax.xlane.f32.xlu0 %v3605
        %v3607 = vpop.xlane.xlu0 %3606
        %v3608 = vmax.f32 %v3531, %v3532
        %3609 = vmax.xlane.f32.xlu0 %v3608
        %v3610 = vpop.xlane.xlu0 %3609
        %v3611 = vmax.f32 %v3533, %v3534
        %3612 = vmax.xlane.f32.xlu0 %v3611
        %v3613 = vpop.xlane.xlu0 %3612
        %v3614 = vmax.f32 %v3535, %v3536
        %3615 = vmax.xlane.f32.xlu0 %v3614
        %v3616 = vpop.xlane.xlu0 %3615
        %v3617 = vmax.f32 %v3537, %v3538
        %3618 = vmax.xlane.f32.xlu0 %v3617
        %v3619 = vpop.xlane.xlu0 %3618
        %v3620 = vmax.f32 %v3539, %v3540
        %3621 = vmax.xlane.f32.xlu0 %v3620
        %v3622 = vpop.xlane.xlu0 %3621
        %v3623 = vmax.f32 %v3541, %v3542
        %3624 = vmax.xlane.f32.xlu0 %v3623
        %v3625 = vpop.xlane.xlu0 %3624
        %v3626 = vmax.f32 %v3543, %v3544
        %3627 = vmax.xlane.f32.xlu0 %v3626
        %v3628 = vpop.xlane.xlu0 %3627
        %v3629 = vmax.f32 %v3545, %v3546
        %3630 = vmax.xlane.f32.xlu0 %v3629
        %v3631 = vpop.xlane.xlu0 %3630
        %v3632 = vmax.f32 %v3547, %v3548
        %3633 = vmax.xlane.f32.xlu0 %v3632
        %v3634 = vpop.xlane.xlu0 %3633
        %v3635 = vmax.f32 %v3549, %v3550
        %3636 = vmax.xlane.f32.xlu0 %v3635
        %v3637 = vpop.xlane.xlu0 %3636
        %v3638 = vmax.f32 %v3551, %v3552
        %3639 = vmax.xlane.f32.xlu0 %v3638
        %v3640 = vpop.xlane.xlu0 %3639
        %v3641 = vmax.f32 %v3553, %v3554
        %3642 = vmax.xlane.f32.xlu0 %v3641
        %v3643 = vpop.xlane.xlu0 %3642
        %v3644 = vmax.f32 %v3555, %v3556
        %3645 = vmax.xlane.f32.xlu0 %v3644
        %v3646 = vpop.xlane.xlu0 %3645
        %v3647 = vmax.f32 %v3557, %v3558
        %3648 = vmax.xlane.f32.xlu0 %v3647
        %v3649 = vpop.xlane.xlu0 %3648
        %v3650 = vmax.f32 %v3559, %v3560
        %3651 = vmax.xlane.f32.xlu0 %v3650
        %v3652 = vpop.xlane.xlu0 %3651
        %v3653 = vmax.f32 %v3561, %v3562
        %3654 = vmax.xlane.f32.xlu0 %v3653
        %v3655 = vpop.xlane.xlu0 %3654
        %v3656 = vmax.f32 %v3563, %v3564
        %3657 = vmax.xlane.f32.xlu0 %v3656
        %v3658 = vpop.xlane.xlu0 %3657
        %v3659 = vmax.f32 %v3565, %v3566
        %3660 = vmax.xlane.f32.xlu0 %v3659
        %v3661 = vpop.xlane.xlu0 %3660
        %v3662 = vmax.f32 %v3567, %v3568
        %3663 = vmax.xlane.f32.xlu0 %v3662
        %v3664 = vpop.xlane.xlu0 %3663
        %vm3665 = vcmp.eq.f32.partialorder %v3505, %v3571
        %vm3666 = vcmp.eq.f32.partialorder %v3506, %v3571
        %vm3667 = vcmp.eq.f32.partialorder %v3507, %v3574
        %vm3668 = vcmp.eq.f32.partialorder %v3508, %v3574
        %vm3669 = vcmp.eq.f32.partialorder %v3509, %v3577
        %vm3670 = vcmp.eq.f32.partialorder %v3510, %v3577
        %vm3671 = vcmp.eq.f32.partialorder %v3511, %v3580
        %vm3672 = vcmp.eq.f32.partialorder %v3512, %v3580
        %vm3673 = vcmp.eq.f32.partialorder %v3513, %v3583
        %vm3674 = vcmp.eq.f32.partialorder %v3514, %v3583
        %vm3675 = vcmp.eq.f32.partialorder %v3515, %v3586
        %vm3676 = vcmp.eq.f32.partialorder %v3516, %v3586
        %vm3677 = vcmp.eq.f32.partialorder %v3517, %v3589
        %vm3678 = vcmp.eq.f32.partialorder %v3518, %v3589
        %vm3679 = vcmp.eq.f32.partialorder %v3519, %v3592
        %vm3680 = vcmp.eq.f32.partialorder %v3520, %v3592
        %vm3681 = vcmp.eq.f32.partialorder %v3521, %v3595
        %vm3682 = vcmp.eq.f32.partialorder %v3522, %v3595
        %vm3683 = vcmp.eq.f32.partialorder %v3523, %v3598
        %vm3684 = vcmp.eq.f32.partialorder %v3524, %v3598
        %vm3685 = vcmp.eq.f32.partialorder %v3525, %v3601
        %vm3686 = vcmp.eq.f32.partialorder %v3526, %v3601
        %vm3687 = vcmp.eq.f32.partialorder %v3527, %v3604
        %vm3688 = vcmp.eq.f32.partialorder %v3528, %v3604
        %vm3689 = vcmp.eq.f32.partialorder %v3529, %v3607
        %vm3690 = vcmp.eq.f32.partialorder %v3530, %v3607
        %vm3691 = vcmp.eq.f32.partialorder %v3531, %v3610
        %vm3692 = vcmp.eq.f32.partialorder %v3532, %v3610
        %vm3693 = vcmp.eq.f32.partialorder %v3533, %v3613
        %vm3694 = vcmp.eq.f32.partialorder %v3534, %v3613
        %vm3695 = vcmp.eq.f32.partialorder %v3535, %v3616
        %vm3696 = vcmp.eq.f32.partialorder %v3536, %v3616
        %vm3697 = vcmp.eq.f32.partialorder %v3537, %v3619
        %vm3698 = vcmp.eq.f32.partialorder %v3538, %v3619
        %vm3699 = vcmp.eq.f32.partialorder %v3539, %v3622
        %vm3700 = vcmp.eq.f32.partialorder %v3540, %v3622
        %vm3701 = vcmp.eq.f32.partialorder %v3541, %v3625
        %vm3702 = vcmp.eq.f32.partialorder %v3542, %v3625
        %vm3703 = vcmp.eq.f32.partialorder %v3543, %v3628
        %vm3704 = vcmp.eq.f32.partialorder %v3544, %v3628
        %vm3705 = vcmp.eq.f32.partialorder %v3545, %v3631
        %vm3706 = vcmp.eq.f32.partialorder %v3546, %v3631
        %vm3707 = vcmp.eq.f32.partialorder %v3547, %v3634
        %vm3708 = vcmp.eq.f32.partialorder %v3548, %v3634
        %vm3709 = vcmp.eq.f32.partialorder %v3549, %v3637
        %vm3710 = vcmp.eq.f32.partialorder %v3550, %v3637
        %vm3711 = vcmp.eq.f32.partialorder %v3551, %v3640
        %vm3712 = vcmp.eq.f32.partialorder %v3552, %v3640
        %vm3713 = vcmp.eq.f32.partialorder %v3553, %v3643
        %vm3714 = vcmp.eq.f32.partialorder %v3554, %v3643
        %vm3715 = vcmp.eq.f32.partialorder %v3555, %v3646
        %vm3716 = vcmp.eq.f32.partialorder %v3556, %v3646
        %vm3717 = vcmp.eq.f32.partialorder %v3557, %v3649
        %vm3718 = vcmp.eq.f32.partialorder %v3558, %v3649
        %vm3719 = vcmp.eq.f32.partialorder %v3559, %v3652
        %vm3720 = vcmp.eq.f32.partialorder %v3560, %v3652
        %vm3721 = vcmp.eq.f32.partialorder %v3561, %v3655
        %vm3722 = vcmp.eq.f32.partialorder %v3562, %v3655
        %vm3723 = vcmp.eq.f32.partialorder %v3563, %v3658
        %vm3724 = vcmp.eq.f32.partialorder %v3564, %v3658
        %vm3725 = vcmp.eq.f32.partialorder %v3565, %v3661
        %vm3726 = vcmp.eq.f32.partialorder %v3566, %v3661
        %vm3727 = vcmp.eq.f32.partialorder %v3567, %v3664
        %vm3728 = vcmp.eq.f32.partialorder %v3568, %v3664
        %v3729 = vsel %vm3665, %v1002, 256.0
        %v3730 = vsel %vm3666, %v1003, 256.0
        %v3731 = vsel %vm3667, %v1002, 256.0
        %v3732 = vsel %vm3668, %v1003, 256.0
        %v3733 = vsel %vm3669, %v1002, 256.0
        %v3734 = vsel %vm3670, %v1003, 256.0
        %v3735 = vsel %vm3671, %v1002, 256.0
        %v3736 = vsel %vm3672, %v1003, 256.0
        %v3737 = vsel %vm3673, %v1002, 256.0
        %v3738 = vsel %vm3674, %v1003, 256.0
        %v3739 = vsel %vm3675, %v1002, 256.0
        %v3740 = vsel %vm3676, %v1003, 256.0
        %v3741 = vsel %vm3677, %v1002, 256.0
        %v3742 = vsel %vm3678, %v1003, 256.0
        %v3743 = vsel %vm3679, %v1002, 256.0
        %v3744 = vsel %vm3680, %v1003, 256.0
        %v3745 = vsel %vm3681, %v1002, 256.0
        %v3746 = vsel %vm3682, %v1003, 256.0
        %v3747 = vsel %vm3683, %v1002, 256.0
        %v3748 = vsel %vm3684, %v1003, 256.0
        %v3749 = vsel %vm3685, %v1002, 256.0
        %v3750 = vsel %vm3686, %v1003, 256.0
        %v3751 = vsel %vm3687, %v1002, 256.0
        %v3752 = vsel %vm3688, %v1003, 256.0
        %v3753 = vsel %vm3689, %v1002, 256.0
        %v3754 = vsel %vm3690, %v1003, 256.0
        %v3755 = vsel %vm3691, %v1002, 256.0
        %v3756 = vsel %vm3692, %v1003, 256.0
        %v3757 = vsel %vm3693, %v1002, 256.0
        %v3758 = vsel %vm3694, %v1003, 256.0
        %v3759 = vsel %vm3695, %v1002, 256.0
        %v3760 = vsel %vm3696, %v1003, 256.0
        %v3761 = vsel %vm3697, %v1002, 256.0
        %v3762 = vsel %vm3698, %v1003, 256.0
        %v3763 = vsel %vm3699, %v1002, 256.0
        %v3764 = vsel %vm3700, %v1003, 256.0
        %v3765 = vsel %vm3701, %v1002, 256.0
        %v3766 = vsel %vm3702, %v1003, 256.0
        %v3767 = vsel %vm3703, %v1002, 256.0
        %v3768 = vsel %vm3704, %v1003, 256.0
        %v3769 = vsel %vm3705, %v1002, 256.0
        %v3770 = vsel %vm3706, %v1003, 256.0
        %v3771 = vsel %vm3707, %v1002, 256.0
        %v3772 = vsel %vm3708, %v1003, 256.0
        %v3773 = vsel %vm3709, %v1002, 256.0
        %v3774 = vsel %vm3710, %v1003, 256.0
        %v3775 = vsel %vm3711, %v1002, 256.0
        %v3776 = vsel %vm3712, %v1003, 256.0
        %v3777 = vsel %vm3713, %v1002, 256.0
        %v3778 = vsel %vm3714, %v1003, 256.0
        %v3779 = vsel %vm3715, %v1002, 256.0
        %v3780 = vsel %vm3716, %v1003, 256.0
        %v3781 = vsel %vm3717, %v1002, 256.0
        %v3782 = vsel %vm3718, %v1003, 256.0
        %v3783 = vsel %vm3719, %v1002, 256.0
        %v3784 = vsel %vm3720, %v1003, 256.0
        %v3785 = vsel %vm3721, %v1002, 256.0
        %v3786 = vsel %vm3722, %v1003, 256.0
        %v3787 = vsel %vm3723, %v1002, 256.0
        %v3788 = vsel %vm3724, %v1003, 256.0
        %v3789 = vsel %vm3725, %v1002, 256.0
        %v3790 = vsel %vm3726, %v1003, 256.0
        %v3791 = vsel %vm3727, %v1002, 256.0
        %v3792 = vsel %vm3728, %v1003, 256.0
        %v3793 = vmin.f32 %v3729, %v3730
        %3794 = vmin.xlane.f32.xlu0 %v3793
        %v3795 = vpop.xlane.xlu0 %3794
        %v3796 = vmin.f32 %v3731, %v3732
        %3797 = vmin.xlane.f32.xlu0 %v3796
        %v3798 = vpop.xlane.xlu0 %3797
        %v3799 = vmin.f32 %v3733, %v3734
        %3800 = vmin.xlane.f32.xlu0 %v3799
        %v3801 = vpop.xlane.xlu0 %3800
        %v3802 = vmin.f32 %v3735, %v3736
        %3803 = vmin.xlane.f32.xlu0 %v3802
        %v3804 = vpop.xlane.xlu0 %3803
        %v3805 = vmin.f32 %v3737, %v3738
        %3806 = vmin.xlane.f32.xlu0 %v3805
        %v3807 = vpop.xlane.xlu0 %3806
        %v3808 = vmin.f32 %v3739, %v3740
        %3809 = vmin.xlane.f32.xlu0 %v3808
        %v3810 = vpop.xlane.xlu0 %3809
        %v3811 = vmin.f32 %v3741, %v3742
        %3812 = vmin.xlane.f32.xlu0 %v3811
        %v3813 = vpop.xlane.xlu0 %3812
        %v3814 = vmin.f32 %v3743, %v3744
        %3815 = vmin.xlane.f32.xlu0 %v3814
        %v3816 = vpop.xlane.xlu0 %3815
        %v3817 = vmin.f32 %v3745, %v3746
        %3818 = vmin.xlane.f32.xlu0 %v3817
        %v3819 = vpop.xlane.xlu0 %3818
        %v3820 = vmin.f32 %v3747, %v3748
        %3821 = vmin.xlane.f32.xlu0 %v3820
        %v3822 = vpop.xlane.xlu0 %3821
        %v3823 = vmin.f32 %v3749, %v3750
        %3824 = vmin.xlane.f32.xlu0 %v3823
        %v3825 = vpop.xlane.xlu0 %3824
        %v3826 = vmin.f32 %v3751, %v3752
        %3827 = vmin.xlane.f32.xlu0 %v3826
        %v3828 = vpop.xlane.xlu0 %3827
        %v3829 = vmin.f32 %v3753, %v3754
        %3830 = vmin.xlane.f32.xlu0 %v3829
        %v3831 = vpop.xlane.xlu0 %3830
        %v3832 = vmin.f32 %v3755, %v3756
        %3833 = vmin.xlane.f32.xlu0 %v3832
        %v3834 = vpop.xlane.xlu0 %3833
        %v3835 = vmin.f32 %v3757, %v3758
        %3836 = vmin.xlane.f32.xlu0 %v3835
        %v3837 = vpop.xlane.xlu0 %3836
        %v3838 = vmin.f32 %v3759, %v3760
        %3839 = vmin.xlane.f32.xlu0 %v3838
        %v3840 = vpop.xlane.xlu0 %3839
        %v3841 = vmin.f32 %v3761, %v3762
        %3842 = vmin.xlane.f32.xlu0 %v3841
        %v3843 = vpop.xlane.xlu0 %3842
        %v3844 = vmin.f32 %v3763, %v3764
        %3845 = vmin.xlane.f32.xlu0 %v3844
        %v3846 = vpop.xlane.xlu0 %3845
        %v3847 = vmin.f32 %v3765, %v3766
        %3848 = vmin.xlane.f32.xlu0 %v3847
        %v3849 = vpop.xlane.xlu0 %3848
        %v3850 = vmin.f32 %v3767, %v3768
        %3851 = vmin.xlane.f32.xlu0 %v3850
        %v3852 = vpop.xlane.xlu0 %3851
        %v3853 = vmin.f32 %v3769, %v3770
        %3854 = vmin.xlane.f32.xlu0 %v3853
        %v3855 = vpop.xlane.xlu0 %3854
        %v3856 = vmin.f32 %v3771, %v3772
        %3857 = vmin.xlane.f32.xlu0 %v3856
        %v3858 = vpop.xlane.xlu0 %3857
        %v3859 = vmin.f32 %v3773, %v3774
        %3860 = vmin.xlane.f32.xlu0 %v3859
        %v3861 = vpop.xlane.xlu0 %3860
        %v3862 = vmin.f32 %v3775, %v3776
        %3863 = vmin.xlane.f32.xlu0 %v3862
        %v3864 = vpop.xlane.xlu0 %3863
        %v3865 = vmin.f32 %v3777, %v3778
        %3866 = vmin.xlane.f32.xlu0 %v3865
        %v3867 = vpop.xlane.xlu0 %3866
        %v3868 = vmin.f32 %v3779, %v3780
        %3869 = vmin.xlane.f32.xlu0 %v3868
        %v3870 = vpop.xlane.xlu0 %3869
        %v3871 = vmin.f32 %v3781, %v3782
        %3872 = vmin.xlane.f32.xlu0 %v3871
        %v3873 = vpop.xlane.xlu0 %3872
        %v3874 = vmin.f32 %v3783, %v3784
        %3875 = vmin.xlane.f32.xlu0 %v3874
        %v3876 = vpop.xlane.xlu0 %3875
        %v3877 = vmin.f32 %v3785, %v3786
        %3878 = vmin.xlane.f32.xlu0 %v3877
        %v3879 = vpop.xlane.xlu0 %3878
        %v3880 = vmin.f32 %v3787, %v3788
        %3881 = vmin.xlane.f32.xlu0 %v3880
        %v3882 = vpop.xlane.xlu0 %3881
        %v3883 = vmin.f32 %v3789, %v3790
        %3884 = vmin.xlane.f32.xlu0 %v3883
        %v3885 = vpop.xlane.xlu0 %3884
        %v3886 = vmin.f32 %v3791, %v3792
        %3887 = vmin.xlane.f32.xlu0 %v3886
        %v3888 = vpop.xlane.xlu0 %3887
        %v3889 = vcvt.f32.s32.to.zero.pseudo %v3795
        %v3890 = vcvt.f32.s32.to.zero.pseudo %v3798
        %v3891 = vcvt.f32.s32.to.zero.pseudo %v3801
        %v3892 = vcvt.f32.s32.to.zero.pseudo %v3804
        %v3893 = vcvt.f32.s32.to.zero.pseudo %v3807
        %v3894 = vcvt.f32.s32.to.zero.pseudo %v3810
        %v3895 = vcvt.f32.s32.to.zero.pseudo %v3813
        %v3896 = vcvt.f32.s32.to.zero.pseudo %v3816
        %v3897 = vcvt.f32.s32.to.zero.pseudo %v3819
        %v3898 = vcvt.f32.s32.to.zero.pseudo %v3822
        %v3899 = vcvt.f32.s32.to.zero.pseudo %v3825
        %v3900 = vcvt.f32.s32.to.zero.pseudo %v3828
        %v3901 = vcvt.f32.s32.to.zero.pseudo %v3831
        %v3902 = vcvt.f32.s32.to.zero.pseudo %v3834
        %v3903 = vcvt.f32.s32.to.zero.pseudo %v3837
        %v3904 = vcvt.f32.s32.to.zero.pseudo %v3840
        %v3905 = vcvt.f32.s32.to.zero.pseudo %v3843
        %v3906 = vcvt.f32.s32.to.zero.pseudo %v3846
        %v3907 = vcvt.f32.s32.to.zero.pseudo %v3849
        %v3908 = vcvt.f32.s32.to.zero.pseudo %v3852
        %v3909 = vcvt.f32.s32.to.zero.pseudo %v3855
        %v3910 = vcvt.f32.s32.to.zero.pseudo %v3858
        %v3911 = vcvt.f32.s32.to.zero.pseudo %v3861
        %v3912 = vcvt.f32.s32.to.zero.pseudo %v3864
        %v3913 = vcvt.f32.s32.to.zero.pseudo %v3867
        %v3914 = vcvt.f32.s32.to.zero.pseudo %v3870
        %v3915 = vcvt.f32.s32.to.zero.pseudo %v3873
        %v3916 = vcvt.f32.s32.to.zero.pseudo %v3876
        %v3917 = vcvt.f32.s32.to.zero.pseudo %v3879
        %v3918 = vcvt.f32.s32.to.zero.pseudo %v3882
        %v3919 = vcvt.f32.s32.to.zero.pseudo %v3885
        %v3920 = vcvt.f32.s32.to.zero.pseudo %v3888
        %vm3921 = vcmask 48168
        %3922 = vst.msk [vmem:[%s226] sm:$0xff] %vm3921, %v3889
        %3923 = vst.msk [vmem:[%s226 + $0x8] sm:$0xff] %vm3921, %v3890
        %3924 = vst.msk [vmem:[%s226 + $0x10] sm:$0xff] %vm3921, %v3891
        %3925 = vst.msk [vmem:[%s226 + $0x18] sm:$0xff] %vm3921, %v3892
        %3926 = vst.msk [vmem:[%s226 + $0x20] sm:$0xff] %vm3921, %v3893
        %3927 = vst.msk [vmem:[%s226 + $0x28] sm:$0xff] %vm3921, %v3894
        %3928 = vst.msk [vmem:[%s226 + $0x30] sm:$0xff] %vm3921, %v3895
        %3929 = vst.msk [vmem:[%s226 + $0x38] sm:$0xff] %vm3921, %v3896
        %3930 = vst.msk [vmem:[%s226 + $0x40] sm:$0xff] %vm3921, %v3897
        %3931 = vst.msk [vmem:[%s226 + $0x48] sm:$0xff] %vm3921, %v3898
        %3932 = vst.msk [vmem:[%s226 + $0x50] sm:$0xff] %vm3921, %v3899
        %3933 = vst.msk [vmem:[%s226 + $0x58] sm:$0xff] %vm3921, %v3900
        %3934 = vst.msk [vmem:[%s226 + $0x60] sm:$0xff] %vm3921, %v3901
        %3935 = vst.msk [vmem:[%s226 + $0x68] sm:$0xff] %vm3921, %v3902
        %3936 = vst.msk [vmem:[%s226 + $0x70] sm:$0xff] %vm3921, %v3903
        %3937 = vst.msk [vmem:[%s226 + $0x78] sm:$0xff] %vm3921, %v3904
        %3938 = vst.msk [vmem:[%s226 + $0x80] sm:$0xff] %vm3921, %v3905
        %3939 = vst.msk [vmem:[%s226 + $0x88] sm:$0xff] %vm3921, %v3906
        %3940 = vst.msk [vmem:[%s226 + $0x90] sm:$0xff] %vm3921, %v3907
        %3941 = vst.msk [vmem:[%s226 + $0x98] sm:$0xff] %vm3921, %v3908
        %3942 = vst.msk [vmem:[%s226 + $0xa0] sm:$0xff] %vm3921, %v3909
        %3943 = vst.msk [vmem:[%s226 + $0xa8] sm:$0xff] %vm3921, %v3910
        %3944 = vst.msk [vmem:[%s226 + $0xb0] sm:$0xff] %vm3921, %v3911
        %3945 = vst.msk [vmem:[%s226 + $0xb8] sm:$0xff] %vm3921, %v3912
        %3946 = vst.msk [vmem:[%s226 + $0xc0] sm:$0xff] %vm3921, %v3913
        %3947 = vst.msk [vmem:[%s226 + $0xc8] sm:$0xff] %vm3921, %v3914
        %3948 = vst.msk [vmem:[%s226 + $0xd0] sm:$0xff] %vm3921, %v3915
        %3949 = vst.msk [vmem:[%s226 + $0xd8] sm:$0xff] %vm3921, %v3916
        %3950 = vst.msk [vmem:[%s226 + $0xe0] sm:$0xff] %vm3921, %v3917
        %3951 = vst.msk [vmem:[%s226 + $0xe8] sm:$0xff] %vm3921, %v3918
        %3952 = vst.msk [vmem:[%s226 + $0xf0] sm:$0xff] %vm3921, %v3919
        %3953 = vst.msk [vmem:[%s226 + $0xf8] sm:$0xff] %vm3921, %v3920
        %vm3954 = vcmp.eq.f32.partialorder %v1002, %v3795
        %vm3955 = vcmp.eq.f32.partialorder %v1003, %v3795
        %vm3956 = vcmp.eq.f32.partialorder %v1002, %v3798
        %vm3957 = vcmp.eq.f32.partialorder %v1003, %v3798
        %vm3958 = vcmp.eq.f32.partialorder %v1002, %v3801
        %vm3959 = vcmp.eq.f32.partialorder %v1003, %v3801
        %vm3960 = vcmp.eq.f32.partialorder %v1002, %v3804
        %vm3961 = vcmp.eq.f32.partialorder %v1003, %v3804
        %vm3962 = vcmp.eq.f32.partialorder %v1002, %v3807
        %vm3963 = vcmp.eq.f32.partialorder %v1003, %v3807
        %vm3964 = vcmp.eq.f32.partialorder %v1002, %v3810
        %vm3965 = vcmp.eq.f32.partialorder %v1003, %v3810
        %vm3966 = vcmp.eq.f32.partialorder %v1002, %v3813
        %vm3967 = vcmp.eq.f32.partialorder %v1003, %v3813
        %vm3968 = vcmp.eq.f32.partialorder %v1002, %v3816
        %vm3969 = vcmp.eq.f32.partialorder %v1003, %v3816
        %vm3970 = vcmp.eq.f32.partialorder %v1002, %v3819
        %vm3971 = vcmp.eq.f32.partialorder %v1003, %v3819
        %vm3972 = vcmp.eq.f32.partialorder %v1002, %v3822
        %vm3973 = vcmp.eq.f32.partialorder %v1003, %v3822
        %vm3974 = vcmp.eq.f32.partialorder %v1002, %v3825
        %vm3975 = vcmp.eq.f32.partialorder %v1003, %v3825
        %vm3976 = vcmp.eq.f32.partialorder %v1002, %v3828
        %vm3977 = vcmp.eq.f32.partialorder %v1003, %v3828
        %vm3978 = vcmp.eq.f32.partialorder %v1002, %v3831
        %vm3979 = vcmp.eq.f32.partialorder %v1003, %v3831
        %vm3980 = vcmp.eq.f32.partialorder %v1002, %v3834
        %vm3981 = vcmp.eq.f32.partialorder %v1003, %v3834
        %vm3982 = vcmp.eq.f32.partialorder %v1002, %v3837
        %vm3983 = vcmp.eq.f32.partialorder %v1003, %v3837
        %vm3984 = vcmp.eq.f32.partialorder %v1002, %v3840
        %vm3985 = vcmp.eq.f32.partialorder %v1003, %v3840
        %vm3986 = vcmp.eq.f32.partialorder %v1002, %v3843
        %vm3987 = vcmp.eq.f32.partialorder %v1003, %v3843
        %vm3988 = vcmp.eq.f32.partialorder %v1002, %v3846
        %vm3989 = vcmp.eq.f32.partialorder %v1003, %v3846
        %vm3990 = vcmp.eq.f32.partialorder %v1002, %v3849
        %vm3991 = vcmp.eq.f32.partialorder %v1003, %v3849
        %vm3992 = vcmp.eq.f32.partialorder %v1002, %v3852
        %vm3993 = vcmp.eq.f32.partialorder %v1003, %v3852
        %vm3994 = vcmp.eq.f32.partialorder %v1002, %v3855
        %vm3995 = vcmp.eq.f32.partialorder %v1003, %v3855
        %vm3996 = vcmp.eq.f32.partialorder %v1002, %v3858
        %vm3997 = vcmp.eq.f32.partialorder %v1003, %v3858
        %vm3998 = vcmp.eq.f32.partialorder %v1002, %v3861
        %vm3999 = vcmp.eq.f32.partialorder %v1003, %v3861
        %vm4000 = vcmp.eq.f32.partialorder %v1002, %v3864
        %vm4001 = vcmp.eq.f32.partialorder %v1003, %v3864
        %vm4002 = vcmp.eq.f32.partialorder %v1002, %v3867
        %vm4003 = vcmp.eq.f32.partialorder %v1003, %v3867
        %vm4004 = vcmp.eq.f32.partialorder %v1002, %v3870
        %vm4005 = vcmp.eq.f32.partialorder %v1003, %v3870
        %vm4006 = vcmp.eq.f32.partialorder %v1002, %v3873
        %vm4007 = vcmp.eq.f32.partialorder %v1003, %v3873
        %vm4008 = vcmp.eq.f32.partialorder %v1002, %v3876
        %vm4009 = vcmp.eq.f32.partialorder %v1003, %v3876
        %vm4010 = vcmp.eq.f32.partialorder %v1002, %v3879
        %vm4011 = vcmp.eq.f32.partialorder %v1003, %v3879
        %vm4012 = vcmp.eq.f32.partialorder %v1002, %v3882
        %vm4013 = vcmp.eq.f32.partialorder %v1003, %v3882
        %vm4014 = vcmp.eq.f32.partialorder %v1002, %v3885
        %vm4015 = vcmp.eq.f32.partialorder %v1003, %v3885
        %vm4016 = vcmp.eq.f32.partialorder %v1002, %v3888
        %vm4017 = vcmp.eq.f32.partialorder %v1003, %v3888
        %v4018 = vsel %vm3954, -3e+38, %v3505
        %v4019 = vsel %vm3955, -3e+38, %v3506
        %v4020 = vsel %vm3956, -3e+38, %v3507
        %v4021 = vsel %vm3957, -3e+38, %v3508
        %v4022 = vsel %vm3958, -3e+38, %v3509
        %v4023 = vsel %vm3959, -3e+38, %v3510
        %v4024 = vsel %vm3960, -3e+38, %v3511
        %v4025 = vsel %vm3961, -3e+38, %v3512
        %v4026 = vsel %vm3962, -3e+38, %v3513
        %v4027 = vsel %vm3963, -3e+38, %v3514
        %v4028 = vsel %vm3964, -3e+38, %v3515
        %v4029 = vsel %vm3965, -3e+38, %v3516
        %v4030 = vsel %vm3966, -3e+38, %v3517
        %v4031 = vsel %vm3967, -3e+38, %v3518
        %v4032 = vsel %vm3968, -3e+38, %v3519
        %v4033 = vsel %vm3969, -3e+38, %v3520
        %v4034 = vsel %vm3970, -3e+38, %v3521
        %v4035 = vsel %vm3971, -3e+38, %v3522
        %v4036 = vsel %vm3972, -3e+38, %v3523
        %v4037 = vsel %vm3973, -3e+38, %v3524
        %v4038 = vsel %vm3974, -3e+38, %v3525
        %v4039 = vsel %vm3975, -3e+38, %v3526
        %v4040 = vsel %vm3976, -3e+38, %v3527
        %v4041 = vsel %vm3977, -3e+38, %v3528
        %v4042 = vsel %vm3978, -3e+38, %v3529
        %v4043 = vsel %vm3979, -3e+38, %v3530
        %v4044 = vsel %vm3980, -3e+38, %v3531
        %v4045 = vsel %vm3981, -3e+38, %v3532
        %v4046 = vsel %vm3982, -3e+38, %v3533
        %v4047 = vsel %vm3983, -3e+38, %v3534
        %v4048 = vsel %vm3984, -3e+38, %v3535
        %v4049 = vsel %vm3985, -3e+38, %v3536
        %v4050 = vsel %vm3986, -3e+38, %v3537
        %v4051 = vsel %vm3987, -3e+38, %v3538
        %v4052 = vsel %vm3988, -3e+38, %v3539
        %v4053 = vsel %vm3989, -3e+38, %v3540
        %v4054 = vsel %vm3990, -3e+38, %v3541
        %v4055 = vsel %vm3991, -3e+38, %v3542
        %v4056 = vsel %vm3992, -3e+38, %v3543
        %v4057 = vsel %vm3993, -3e+38, %v3544
        %v4058 = vsel %vm3994, -3e+38, %v3545
        %v4059 = vsel %vm3995, -3e+38, %v3546
        %v4060 = vsel %vm3996, -3e+38, %v3547
        %v4061 = vsel %vm3997, -3e+38, %v3548
        %v4062 = vsel %vm3998, -3e+38, %v3549
        %v4063 = vsel %vm3999, -3e+38, %v3550
        %v4064 = vsel %vm4000, -3e+38, %v3551
        %v4065 = vsel %vm4001, -3e+38, %v3552
        %v4066 = vsel %vm4002, -3e+38, %v3553
        %v4067 = vsel %vm4003, -3e+38, %v3554
        %v4068 = vsel %vm4004, -3e+38, %v3555
        %v4069 = vsel %vm4005, -3e+38, %v3556
        %v4070 = vsel %vm4006, -3e+38, %v3557
        %v4071 = vsel %vm4007, -3e+38, %v3558
        %v4072 = vsel %vm4008, -3e+38, %v3559
        %v4073 = vsel %vm4009, -3e+38, %v3560
        %v4074 = vsel %vm4010, -3e+38, %v3561
        %v4075 = vsel %vm4011, -3e+38, %v3562
        %v4076 = vsel %vm4012, -3e+38, %v3563
        %v4077 = vsel %vm4013, -3e+38, %v3564
        %v4078 = vsel %vm4014, -3e+38, %v3565
        %v4079 = vsel %vm4015, -3e+38, %v3566
        %v4080 = vsel %vm4016, -3e+38, %v3567
        %v4081 = vsel %vm4017, -3e+38, %v3568
        %v4082 = vmax.f32 %v4018, %v4019
        %4083 = vmax.xlane.f32.xlu0 %v4082
        %v4084 = vpop.xlane.xlu0 %4083
        %v4085 = vmax.f32 %v4020, %v4021
        %4086 = vmax.xlane.f32.xlu0 %v4085
        %v4087 = vpop.xlane.xlu0 %4086
        %v4088 = vmax.f32 %v4022, %v4023
        %4089 = vmax.xlane.f32.xlu0 %v4088
        %v4090 = vpop.xlane.xlu0 %4089
        %v4091 = vmax.f32 %v4024, %v4025
        %4092 = vmax.xlane.f32.xlu0 %v4091
        %v4093 = vpop.xlane.xlu0 %4092
        %v4094 = vmax.f32 %v4026, %v4027
        %4095 = vmax.xlane.f32.xlu0 %v4094
        %v4096 = vpop.xlane.xlu0 %4095
        %v4097 = vmax.f32 %v4028, %v4029
        %4098 = vmax.xlane.f32.xlu0 %v4097
        %v4099 = vpop.xlane.xlu0 %4098
        %v4100 = vmax.f32 %v4030, %v4031
        %4101 = vmax.xlane.f32.xlu0 %v4100
        %v4102 = vpop.xlane.xlu0 %4101
        %v4103 = vmax.f32 %v4032, %v4033
        %4104 = vmax.xlane.f32.xlu0 %v4103
        %v4105 = vpop.xlane.xlu0 %4104
        %v4106 = vmax.f32 %v4034, %v4035
        %4107 = vmax.xlane.f32.xlu0 %v4106
        %v4108 = vpop.xlane.xlu0 %4107
        %v4109 = vmax.f32 %v4036, %v4037
        %4110 = vmax.xlane.f32.xlu0 %v4109
        %v4111 = vpop.xlane.xlu0 %4110
        %v4112 = vmax.f32 %v4038, %v4039
        %4113 = vmax.xlane.f32.xlu0 %v4112
        %v4114 = vpop.xlane.xlu0 %4113
        %v4115 = vmax.f32 %v4040, %v4041
        %4116 = vmax.xlane.f32.xlu0 %v4115
        %v4117 = vpop.xlane.xlu0 %4116
        %v4118 = vmax.f32 %v4042, %v4043
        %4119 = vmax.xlane.f32.xlu0 %v4118
        %v4120 = vpop.xlane.xlu0 %4119
        %v4121 = vmax.f32 %v4044, %v4045
        %4122 = vmax.xlane.f32.xlu0 %v4121
        %v4123 = vpop.xlane.xlu0 %4122
        %v4124 = vmax.f32 %v4046, %v4047
        %4125 = vmax.xlane.f32.xlu0 %v4124
        %v4126 = vpop.xlane.xlu0 %4125
        %v4127 = vmax.f32 %v4048, %v4049
        %4128 = vmax.xlane.f32.xlu0 %v4127
        %v4129 = vpop.xlane.xlu0 %4128
        %v4130 = vmax.f32 %v4050, %v4051
        %4131 = vmax.xlane.f32.xlu0 %v4130
        %v4132 = vpop.xlane.xlu0 %4131
        %v4133 = vmax.f32 %v4052, %v4053
        %4134 = vmax.xlane.f32.xlu0 %v4133
        %v4135 = vpop.xlane.xlu0 %4134
        %v4136 = vmax.f32 %v4054, %v4055
        %4137 = vmax.xlane.f32.xlu0 %v4136
        %v4138 = vpop.xlane.xlu0 %4137
        %v4139 = vmax.f32 %v4056, %v4057
        %4140 = vmax.xlane.f32.xlu0 %v4139
        %v4141 = vpop.xlane.xlu0 %4140
        %v4142 = vmax.f32 %v4058, %v4059
        %4143 = vmax.xlane.f32.xlu0 %v4142
        %v4144 = vpop.xlane.xlu0 %4143
        %v4145 = vmax.f32 %v4060, %v4061
        %4146 = vmax.xlane.f32.xlu0 %v4145
        %v4147 = vpop.xlane.xlu0 %4146
        %v4148 = vmax.f32 %v4062, %v4063
        %4149 = vmax.xlane.f32.xlu0 %v4148
        %v4150 = vpop.xlane.xlu0 %4149
        %v4151 = vmax.f32 %v4064, %v4065
        %4152 = vmax.xlane.f32.xlu0 %v4151
        %v4153 = vpop.xlane.xlu0 %4152
        %v4154 = vmax.f32 %v4066, %v4067
        %4155 = vmax.xlane.f32.xlu0 %v4154
        %v4156 = vpop.xlane.xlu0 %4155
        %v4157 = vmax.f32 %v4068, %v4069
        %4158 = vmax.xlane.f32.xlu0 %v4157
        %v4159 = vpop.xlane.xlu0 %4158
        %v4160 = vmax.f32 %v4070, %v4071
        %4161 = vmax.xlane.f32.xlu0 %v4160
        %v4162 = vpop.xlane.xlu0 %4161
        %v4163 = vmax.f32 %v4072, %v4073
        %4164 = vmax.xlane.f32.xlu0 %v4163
        %v4165 = vpop.xlane.xlu0 %4164
        %v4166 = vmax.f32 %v4074, %v4075
        %4167 = vmax.xlane.f32.xlu0 %v4166
        %v4168 = vpop.xlane.xlu0 %4167
        %v4169 = vmax.f32 %v4076, %v4077
        %4170 = vmax.xlane.f32.xlu0 %v4169
        %v4171 = vpop.xlane.xlu0 %4170
        %v4172 = vmax.f32 %v4078, %v4079
        %4173 = vmax.xlane.f32.xlu0 %v4172
        %v4174 = vpop.xlane.xlu0 %4173
        %v4175 = vmax.f32 %v4080, %v4081
        %4176 = vmax.xlane.f32.xlu0 %v4175
        %v4177 = vpop.xlane.xlu0 %4176
        %vm4178 = vcmp.eq.f32.partialorder %v4018, %v4084
        %vm4179 = vcmp.eq.f32.partialorder %v4019, %v4084
        %vm4180 = vcmp.eq.f32.partialorder %v4020, %v4087
        %vm4181 = vcmp.eq.f32.partialorder %v4021, %v4087
        %vm4182 = vcmp.eq.f32.partialorder %v4022, %v4090
        %vm4183 = vcmp.eq.f32.partialorder %v4023, %v4090
        %vm4184 = vcmp.eq.f32.partialorder %v4024, %v4093
        %vm4185 = vcmp.eq.f32.partialorder %v4025, %v4093
        %vm4186 = vcmp.eq.f32.partialorder %v4026, %v4096
        %vm4187 = vcmp.eq.f32.partialorder %v4027, %v4096
        %vm4188 = vcmp.eq.f32.partialorder %v4028, %v4099
        %vm4189 = vcmp.eq.f32.partialorder %v4029, %v4099
        %vm4190 = vcmp.eq.f32.partialorder %v4030, %v4102
        %vm4191 = vcmp.eq.f32.partialorder %v4031, %v4102
        %vm4192 = vcmp.eq.f32.partialorder %v4032, %v4105
        %vm4193 = vcmp.eq.f32.partialorder %v4033, %v4105
        %vm4194 = vcmp.eq.f32.partialorder %v4034, %v4108
        %vm4195 = vcmp.eq.f32.partialorder %v4035, %v4108
        %vm4196 = vcmp.eq.f32.partialorder %v4036, %v4111
        %vm4197 = vcmp.eq.f32.partialorder %v4037, %v4111
        %vm4198 = vcmp.eq.f32.partialorder %v4038, %v4114
        %vm4199 = vcmp.eq.f32.partialorder %v4039, %v4114
        %vm4200 = vcmp.eq.f32.partialorder %v4040, %v4117
        %vm4201 = vcmp.eq.f32.partialorder %v4041, %v4117
        %vm4202 = vcmp.eq.f32.partialorder %v4042, %v4120
        %vm4203 = vcmp.eq.f32.partialorder %v4043, %v4120
        %vm4204 = vcmp.eq.f32.partialorder %v4044, %v4123
        %vm4205 = vcmp.eq.f32.partialorder %v4045, %v4123
        %vm4206 = vcmp.eq.f32.partialorder %v4046, %v4126
        %vm4207 = vcmp.eq.f32.partialorder %v4047, %v4126
        %vm4208 = vcmp.eq.f32.partialorder %v4048, %v4129
        %vm4209 = vcmp.eq.f32.partialorder %v4049, %v4129
        %vm4210 = vcmp.eq.f32.partialorder %v4050, %v4132
        %vm4211 = vcmp.eq.f32.partialorder %v4051, %v4132
        %vm4212 = vcmp.eq.f32.partialorder %v4052, %v4135
        %vm4213 = vcmp.eq.f32.partialorder %v4053, %v4135
        %vm4214 = vcmp.eq.f32.partialorder %v4054, %v4138
        %vm4215 = vcmp.eq.f32.partialorder %v4055, %v4138
        %vm4216 = vcmp.eq.f32.partialorder %v4056, %v4141
        %vm4217 = vcmp.eq.f32.partialorder %v4057, %v4141
        %vm4218 = vcmp.eq.f32.partialorder %v4058, %v4144
        %vm4219 = vcmp.eq.f32.partialorder %v4059, %v4144
        %vm4220 = vcmp.eq.f32.partialorder %v4060, %v4147
        %vm4221 = vcmp.eq.f32.partialorder %v4061, %v4147
        %vm4222 = vcmp.eq.f32.partialorder %v4062, %v4150
        %vm4223 = vcmp.eq.f32.partialorder %v4063, %v4150
        %vm4224 = vcmp.eq.f32.partialorder %v4064, %v4153
        %vm4225 = vcmp.eq.f32.partialorder %v4065, %v4153
        %vm4226 = vcmp.eq.f32.partialorder %v4066, %v4156
        %vm4227 = vcmp.eq.f32.partialorder %v4067, %v4156
        %vm4228 = vcmp.eq.f32.partialorder %v4068, %v4159
        %vm4229 = vcmp.eq.f32.partialorder %v4069, %v4159
        %vm4230 = vcmp.eq.f32.partialorder %v4070, %v4162
        %vm4231 = vcmp.eq.f32.partialorder %v4071, %v4162
        %vm4232 = vcmp.eq.f32.partialorder %v4072, %v4165
        %vm4233 = vcmp.eq.f32.partialorder %v4073, %v4165
        %vm4234 = vcmp.eq.f32.partialorder %v4074, %v4168
        %vm4235 = vcmp.eq.f32.partialorder %v4075, %v4168
        %vm4236 = vcmp.eq.f32.partialorder %v4076, %v4171
        %vm4237 = vcmp.eq.f32.partialorder %v4077, %v4171
        %vm4238 = vcmp.eq.f32.partialorder %v4078, %v4174
        %vm4239 = vcmp.eq.f32.partialorder %v4079, %v4174
        %vm4240 = vcmp.eq.f32.partialorder %v4080, %v4177
        %vm4241 = vcmp.eq.f32.partialorder %v4081, %v4177
        %v4242 = vsel %vm4178, %v1002, 256.0
        %v4243 = vsel %vm4179, %v1003, 256.0
        %v4244 = vsel %vm4180, %v1002, 256.0
        %v4245 = vsel %vm4181, %v1003, 256.0
        %v4246 = vsel %vm4182, %v1002, 256.0
        %v4247 = vsel %vm4183, %v1003, 256.0
        %v4248 = vsel %vm4184, %v1002, 256.0
        %v4249 = vsel %vm4185, %v1003, 256.0
        %v4250 = vsel %vm4186, %v1002, 256.0
        %v4251 = vsel %vm4187, %v1003, 256.0
        %v4252 = vsel %vm4188, %v1002, 256.0
        %v4253 = vsel %vm4189, %v1003, 256.0
        %v4254 = vsel %vm4190, %v1002, 256.0
        %v4255 = vsel %vm4191, %v1003, 256.0
        %v4256 = vsel %vm4192, %v1002, 256.0
        %v4257 = vsel %vm4193, %v1003, 256.0
        %v4258 = vsel %vm4194, %v1002, 256.0
        %v4259 = vsel %vm4195, %v1003, 256.0
        %v4260 = vsel %vm4196, %v1002, 256.0
        %v4261 = vsel %vm4197, %v1003, 256.0
        %v4262 = vsel %vm4198, %v1002, 256.0
        %v4263 = vsel %vm4199, %v1003, 256.0
        %v4264 = vsel %vm4200, %v1002, 256.0
        %v4265 = vsel %vm4201, %v1003, 256.0
        %v4266 = vsel %vm4202, %v1002, 256.0
        %v4267 = vsel %vm4203, %v1003, 256.0
        %v4268 = vsel %vm4204, %v1002, 256.0
        %v4269 = vsel %vm4205, %v1003, 256.0
        %v4270 = vsel %vm4206, %v1002, 256.0
        %v4271 = vsel %vm4207, %v1003, 256.0
        %v4272 = vsel %vm4208, %v1002, 256.0
        %v4273 = vsel %vm4209, %v1003, 256.0
        %v4274 = vsel %vm4210, %v1002, 256.0
        %v4275 = vsel %vm4211, %v1003, 256.0
        %v4276 = vsel %vm4212, %v1002, 256.0
        %v4277 = vsel %vm4213, %v1003, 256.0
        %v4278 = vsel %vm4214, %v1002, 256.0
        %v4279 = vsel %vm4215, %v1003, 256.0
        %v4280 = vsel %vm4216, %v1002, 256.0
        %v4281 = vsel %vm4217, %v1003, 256.0
        %v4282 = vsel %vm4218, %v1002, 256.0
        %v4283 = vsel %vm4219, %v1003, 256.0
        %v4284 = vsel %vm4220, %v1002, 256.0
        %v4285 = vsel %vm4221, %v1003, 256.0
        %v4286 = vsel %vm4222, %v1002, 256.0
        %v4287 = vsel %vm4223, %v1003, 256.0
        %v4288 = vsel %vm4224, %v1002, 256.0
        %v4289 = vsel %vm4225, %v1003, 256.0
        %v4290 = vsel %vm4226, %v1002, 256.0
        %v4291 = vsel %vm4227, %v1003, 256.0
        %v4292 = vsel %vm4228, %v1002, 256.0
        %v4293 = vsel %vm4229, %v1003, 256.0
        %v4294 = vsel %vm4230, %v1002, 256.0
        %v4295 = vsel %vm4231, %v1003, 256.0
        %v4296 = vsel %vm4232, %v1002, 256.0
        %v4297 = vsel %vm4233, %v1003, 256.0
        %v4298 = vsel %vm4234, %v1002, 256.0
        %v4299 = vsel %vm4235, %v1003, 256.0
        %v4300 = vsel %vm4236, %v1002, 256.0
        %v4301 = vsel %vm4237, %v1003, 256.0
        %v4302 = vsel %vm4238, %v1002, 256.0
        %v4303 = vsel %vm4239, %v1003, 256.0
        %v4304 = vsel %vm4240, %v1002, 256.0
        %v4305 = vsel %vm4241, %v1003, 256.0
        %v4306 = vmin.f32 %v4242, %v4243
        %4307 = vmin.xlane.f32.xlu0 %v4306
        %v4308 = vpop.xlane.xlu0 %4307
        %v4309 = vmin.f32 %v4244, %v4245
        %4310 = vmin.xlane.f32.xlu0 %v4309
        %v4311 = vpop.xlane.xlu0 %4310
        %v4312 = vmin.f32 %v4246, %v4247
        %4313 = vmin.xlane.f32.xlu0 %v4312
        %v4314 = vpop.xlane.xlu0 %4313
        %v4315 = vmin.f32 %v4248, %v4249
        %4316 = vmin.xlane.f32.xlu0 %v4315
        %v4317 = vpop.xlane.xlu0 %4316
        %v4318 = vmin.f32 %v4250, %v4251
        %4319 = vmin.xlane.f32.xlu0 %v4318
        %v4320 = vpop.xlane.xlu0 %4319
        %v4321 = vmin.f32 %v4252, %v4253
        %4322 = vmin.xlane.f32.xlu0 %v4321
        %v4323 = vpop.xlane.xlu0 %4322
        %v4324 = vmin.f32 %v4254, %v4255
        %4325 = vmin.xlane.f32.xlu0 %v4324
        %v4326 = vpop.xlane.xlu0 %4325
        %v4327 = vmin.f32 %v4256, %v4257
        %4328 = vmin.xlane.f32.xlu0 %v4327
        %v4329 = vpop.xlane.xlu0 %4328
        %v4330 = vmin.f32 %v4258, %v4259
        %4331 = vmin.xlane.f32.xlu0 %v4330
        %v4332 = vpop.xlane.xlu0 %4331
        %v4333 = vmin.f32 %v4260, %v4261
        %4334 = vmin.xlane.f32.xlu0 %v4333
        %v4335 = vpop.xlane.xlu0 %4334
        %v4336 = vmin.f32 %v4262, %v4263
        %4337 = vmin.xlane.f32.xlu0 %v4336
        %v4338 = vpop.xlane.xlu0 %4337
        %v4339 = vmin.f32 %v4264, %v4265
        %4340 = vmin.xlane.f32.xlu0 %v4339
        %v4341 = vpop.xlane.xlu0 %4340
        %v4342 = vmin.f32 %v4266, %v4267
        %4343 = vmin.xlane.f32.xlu0 %v4342
        %v4344 = vpop.xlane.xlu0 %4343
        %v4345 = vmin.f32 %v4268, %v4269
        %4346 = vmin.xlane.f32.xlu0 %v4345
        %v4347 = vpop.xlane.xlu0 %4346
        %v4348 = vmin.f32 %v4270, %v4271
        %4349 = vmin.xlane.f32.xlu0 %v4348
        %v4350 = vpop.xlane.xlu0 %4349
        %v4351 = vmin.f32 %v4272, %v4273
        %4352 = vmin.xlane.f32.xlu0 %v4351
        %v4353 = vpop.xlane.xlu0 %4352
        %v4354 = vmin.f32 %v4274, %v4275
        %4355 = vmin.xlane.f32.xlu0 %v4354
        %v4356 = vpop.xlane.xlu0 %4355
        %v4357 = vmin.f32 %v4276, %v4277
        %4358 = vmin.xlane.f32.xlu0 %v4357
        %v4359 = vpop.xlane.xlu0 %4358
        %v4360 = vmin.f32 %v4278, %v4279
        %4361 = vmin.xlane.f32.xlu0 %v4360
        %v4362 = vpop.xlane.xlu0 %4361
        %v4363 = vmin.f32 %v4280, %v4281
        %4364 = vmin.xlane.f32.xlu0 %v4363
        %v4365 = vpop.xlane.xlu0 %4364
        %v4366 = vmin.f32 %v4282, %v4283
        %4367 = vmin.xlane.f32.xlu0 %v4366
        %v4368 = vpop.xlane.xlu0 %4367
        %v4369 = vmin.f32 %v4284, %v4285
        %4370 = vmin.xlane.f32.xlu0 %v4369
        %v4371 = vpop.xlane.xlu0 %4370
        %v4372 = vmin.f32 %v4286, %v4287
        %4373 = vmin.xlane.f32.xlu0 %v4372
        %v4374 = vpop.xlane.xlu0 %4373
        %v4375 = vmin.f32 %v4288, %v4289
        %4376 = vmin.xlane.f32.xlu0 %v4375
        %v4377 = vpop.xlane.xlu0 %4376
        %v4378 = vmin.f32 %v4290, %v4291
        %4379 = vmin.xlane.f32.xlu0 %v4378
        %v4380 = vpop.xlane.xlu0 %4379
        %v4381 = vmin.f32 %v4292, %v4293
        %4382 = vmin.xlane.f32.xlu0 %v4381
        %v4383 = vpop.xlane.xlu0 %4382
        %v4384 = vmin.f32 %v4294, %v4295
        %4385 = vmin.xlane.f32.xlu0 %v4384
        %v4386 = vpop.xlane.xlu0 %4385
        %v4387 = vmin.f32 %v4296, %v4297
        %4388 = vmin.xlane.f32.xlu0 %v4387
        %v4389 = vpop.xlane.xlu0 %4388
        %v4390 = vmin.f32 %v4298, %v4299
        %4391 = vmin.xlane.f32.xlu0 %v4390
        %v4392 = vpop.xlane.xlu0 %4391
        %v4393 = vmin.f32 %v4300, %v4301
        %4394 = vmin.xlane.f32.xlu0 %v4393
        %v4395 = vpop.xlane.xlu0 %4394
        %v4396 = vmin.f32 %v4302, %v4303
        %4397 = vmin.xlane.f32.xlu0 %v4396
        %v4398 = vpop.xlane.xlu0 %4397
        %v4399 = vmin.f32 %v4304, %v4305
        %4400 = vmin.xlane.f32.xlu0 %v4399
        %v4401 = vpop.xlane.xlu0 %4400
        %v4402 = vcvt.f32.s32.to.zero.pseudo %v4308
        %v4403 = vcvt.f32.s32.to.zero.pseudo %v4311
        %v4404 = vcvt.f32.s32.to.zero.pseudo %v4314
        %v4405 = vcvt.f32.s32.to.zero.pseudo %v4317
        %v4406 = vcvt.f32.s32.to.zero.pseudo %v4320
        %v4407 = vcvt.f32.s32.to.zero.pseudo %v4323
        %v4408 = vcvt.f32.s32.to.zero.pseudo %v4326
        %v4409 = vcvt.f32.s32.to.zero.pseudo %v4329
        %v4410 = vcvt.f32.s32.to.zero.pseudo %v4332
        %v4411 = vcvt.f32.s32.to.zero.pseudo %v4335
        %v4412 = vcvt.f32.s32.to.zero.pseudo %v4338
        %v4413 = vcvt.f32.s32.to.zero.pseudo %v4341
        %v4414 = vcvt.f32.s32.to.zero.pseudo %v4344
        %v4415 = vcvt.f32.s32.to.zero.pseudo %v4347
        %v4416 = vcvt.f32.s32.to.zero.pseudo %v4350
        %v4417 = vcvt.f32.s32.to.zero.pseudo %v4353
        %v4418 = vcvt.f32.s32.to.zero.pseudo %v4356
        %v4419 = vcvt.f32.s32.to.zero.pseudo %v4359
        %v4420 = vcvt.f32.s32.to.zero.pseudo %v4362
        %v4421 = vcvt.f32.s32.to.zero.pseudo %v4365
        %v4422 = vcvt.f32.s32.to.zero.pseudo %v4368
        %v4423 = vcvt.f32.s32.to.zero.pseudo %v4371
        %v4424 = vcvt.f32.s32.to.zero.pseudo %v4374
        %v4425 = vcvt.f32.s32.to.zero.pseudo %v4377
        %v4426 = vcvt.f32.s32.to.zero.pseudo %v4380
        %v4427 = vcvt.f32.s32.to.zero.pseudo %v4383
        %v4428 = vcvt.f32.s32.to.zero.pseudo %v4386
        %v4429 = vcvt.f32.s32.to.zero.pseudo %v4389
        %v4430 = vcvt.f32.s32.to.zero.pseudo %v4392
        %v4431 = vcvt.f32.s32.to.zero.pseudo %v4395
        %v4432 = vcvt.f32.s32.to.zero.pseudo %v4398
        %v4433 = vcvt.f32.s32.to.zero.pseudo %v4401
        %vm4434 = vcmask 56368
        %4435 = vst.msk [vmem:[%s226] sm:$0xff] %vm4434, %v4402
        %4436 = vst.msk [vmem:[%s226 + $0x8] sm:$0xff] %vm4434, %v4403
        %4437 = vst.msk [vmem:[%s226 + $0x10] sm:$0xff] %vm4434, %v4404
        %4438 = vst.msk [vmem:[%s226 + $0x18] sm:$0xff] %vm4434, %v4405
        %4439 = vst.msk [vmem:[%s226 + $0x20] sm:$0xff] %vm4434, %v4406
        %4440 = vst.msk [vmem:[%s226 + $0x28] sm:$0xff] %vm4434, %v4407
        %4441 = vst.msk [vmem:[%s226 + $0x30] sm:$0xff] %vm4434, %v4408
        %4442 = vst.msk [vmem:[%s226 + $0x38] sm:$0xff] %vm4434, %v4409
        %4443 = vst.msk [vmem:[%s226 + $0x40] sm:$0xff] %vm4434, %v4410
        %4444 = vst.msk [vmem:[%s226 + $0x48] sm:$0xff] %vm4434, %v4411
        %4445 = vst.msk [vmem:[%s226 + $0x50] sm:$0xff] %vm4434, %v4412
        %4446 = vst.msk [vmem:[%s226 + $0x58] sm:$0xff] %vm4434, %v4413
        %4447 = vst.msk [vmem:[%s226 + $0x60] sm:$0xff] %vm4434, %v4414
        %4448 = vst.msk [vmem:[%s226 + $0x68] sm:$0xff] %vm4434, %v4415
        %4449 = vst.msk [vmem:[%s226 + $0x70] sm:$0xff] %vm4434, %v4416
        %4450 = vst.msk [vmem:[%s226 + $0x78] sm:$0xff] %vm4434, %v4417
        %4451 = vst.msk [vmem:[%s226 + $0x80] sm:$0xff] %vm4434, %v4418
        %4452 = vst.msk [vmem:[%s226 + $0x88] sm:$0xff] %vm4434, %v4419
        %4453 = vst.msk [vmem:[%s226 + $0x90] sm:$0xff] %vm4434, %v4420
        %4454 = vst.msk [vmem:[%s226 + $0x98] sm:$0xff] %vm4434, %v4421
        %4455 = vst.msk [vmem:[%s226 + $0xa0] sm:$0xff] %vm4434, %v4422
        %4456 = vst.msk [vmem:[%s226 + $0xa8] sm:$0xff] %vm4434, %v4423
        %4457 = vst.msk [vmem:[%s226 + $0xb0] sm:$0xff] %vm4434, %v4424
        %4458 = vst.msk [vmem:[%s226 + $0xb8] sm:$0xff] %vm4434, %v4425
        %4459 = vst.msk [vmem:[%s226 + $0xc0] sm:$0xff] %vm4434, %v4426
        %4460 = vst.msk [vmem:[%s226 + $0xc8] sm:$0xff] %vm4434, %v4427
        %4461 = vst.msk [vmem:[%s226 + $0xd0] sm:$0xff] %vm4434, %v4428
        %4462 = vst.msk [vmem:[%s226 + $0xd8] sm:$0xff] %vm4434, %v4429
        %4463 = vst.msk [vmem:[%s226 + $0xe0] sm:$0xff] %vm4434, %v4430
        %4464 = vst.msk [vmem:[%s226 + $0xe8] sm:$0xff] %vm4434, %v4431
        %4465 = vst.msk [vmem:[%s226 + $0xf0] sm:$0xff] %vm4434, %v4432
        %4466 = vst.msk [vmem:[%s226 + $0xf8] sm:$0xff] %vm4434, %v4433
        %vm4467 = vcmp.eq.f32.partialorder %v1002, %v4308
        %vm4468 = vcmp.eq.f32.partialorder %v1003, %v4308
        %vm4469 = vcmp.eq.f32.partialorder %v1002, %v4311
        %vm4470 = vcmp.eq.f32.partialorder %v1003, %v4311
        %vm4471 = vcmp.eq.f32.partialorder %v1002, %v4314
        %vm4472 = vcmp.eq.f32.partialorder %v1003, %v4314
        %vm4473 = vcmp.eq.f32.partialorder %v1002, %v4317
        %vm4474 = vcmp.eq.f32.partialorder %v1003, %v4317
        %vm4475 = vcmp.eq.f32.partialorder %v1002, %v4320
        %vm4476 = vcmp.eq.f32.partialorder %v1003, %v4320
        %vm4477 = vcmp.eq.f32.partialorder %v1002, %v4323
        %vm4478 = vcmp.eq.f32.partialorder %v1003, %v4323
        %vm4479 = vcmp.eq.f32.partialorder %v1002, %v4326
        %vm4480 = vcmp.eq.f32.partialorder %v1003, %v4326
        %vm4481 = vcmp.eq.f32.partialorder %v1002, %v4329
        %vm4482 = vcmp.eq.f32.partialorder %v1003, %v4329
        %vm4483 = vcmp.eq.f32.partialorder %v1002, %v4332
        %vm4484 = vcmp.eq.f32.partialorder %v1003, %v4332
        %vm4485 = vcmp.eq.f32.partialorder %v1002, %v4335
        %vm4486 = vcmp.eq.f32.partialorder %v1003, %v4335
        %vm4487 = vcmp.eq.f32.partialorder %v1002, %v4338
        %vm4488 = vcmp.eq.f32.partialorder %v1003, %v4338
        %vm4489 = vcmp.eq.f32.partialorder %v1002, %v4341
        %vm4490 = vcmp.eq.f32.partialorder %v1003, %v4341
        %vm4491 = vcmp.eq.f32.partialorder %v1002, %v4344
        %vm4492 = vcmp.eq.f32.partialorder %v1003, %v4344
        %vm4493 = vcmp.eq.f32.partialorder %v1002, %v4347
        %vm4494 = vcmp.eq.f32.partialorder %v1003, %v4347
        %vm4495 = vcmp.eq.f32.partialorder %v1002, %v4350
        %vm4496 = vcmp.eq.f32.partialorder %v1003, %v4350
        %vm4497 = vcmp.eq.f32.partialorder %v1002, %v4353
        %vm4498 = vcmp.eq.f32.partialorder %v1003, %v4353
        %vm4499 = vcmp.eq.f32.partialorder %v1002, %v4356
        %vm4500 = vcmp.eq.f32.partialorder %v1003, %v4356
        %vm4501 = vcmp.eq.f32.partialorder %v1002, %v4359
        %vm4502 = vcmp.eq.f32.partialorder %v1003, %v4359
        %vm4503 = vcmp.eq.f32.partialorder %v1002, %v4362
        %vm4504 = vcmp.eq.f32.partialorder %v1003, %v4362
        %vm4505 = vcmp.eq.f32.partialorder %v1002, %v4365
        %vm4506 = vcmp.eq.f32.partialorder %v1003, %v4365
        %vm4507 = vcmp.eq.f32.partialorder %v1002, %v4368
        %vm4508 = vcmp.eq.f32.partialorder %v1003, %v4368
        %vm4509 = vcmp.eq.f32.partialorder %v1002, %v4371
        %vm4510 = vcmp.eq.f32.partialorder %v1003, %v4371
        %vm4511 = vcmp.eq.f32.partialorder %v1002, %v4374
        %vm4512 = vcmp.eq.f32.partialorder %v1003, %v4374
        %vm4513 = vcmp.eq.f32.partialorder %v1002, %v4377
        %vm4514 = vcmp.eq.f32.partialorder %v1003, %v4377
        %vm4515 = vcmp.eq.f32.partialorder %v1002, %v4380
        %vm4516 = vcmp.eq.f32.partialorder %v1003, %v4380
        %vm4517 = vcmp.eq.f32.partialorder %v1002, %v4383
        %vm4518 = vcmp.eq.f32.partialorder %v1003, %v4383
        %vm4519 = vcmp.eq.f32.partialorder %v1002, %v4386
        %vm4520 = vcmp.eq.f32.partialorder %v1003, %v4386
        %vm4521 = vcmp.eq.f32.partialorder %v1002, %v4389
        %vm4522 = vcmp.eq.f32.partialorder %v1003, %v4389
        %vm4523 = vcmp.eq.f32.partialorder %v1002, %v4392
        %vm4524 = vcmp.eq.f32.partialorder %v1003, %v4392
        %vm4525 = vcmp.eq.f32.partialorder %v1002, %v4395
        %vm4526 = vcmp.eq.f32.partialorder %v1003, %v4395
        %vm4527 = vcmp.eq.f32.partialorder %v1002, %v4398
        %vm4528 = vcmp.eq.f32.partialorder %v1003, %v4398
        %vm4529 = vcmp.eq.f32.partialorder %v1002, %v4401
        %vm4530 = vcmp.eq.f32.partialorder %v1003, %v4401
        %v4531 = vsel %vm4467, -3e+38, %v4018
        %v4532 = vsel %vm4468, -3e+38, %v4019
        %v4533 = vsel %vm4469, -3e+38, %v4020
        %v4534 = vsel %vm4470, -3e+38, %v4021
        %v4535 = vsel %vm4471, -3e+38, %v4022
        %v4536 = vsel %vm4472, -3e+38, %v4023
        %v4537 = vsel %vm4473, -3e+38, %v4024
        %v4538 = vsel %vm4474, -3e+38, %v4025
        %v4539 = vsel %vm4475, -3e+38, %v4026
        %v4540 = vsel %vm4476, -3e+38, %v4027
        %v4541 = vsel %vm4477, -3e+38, %v4028
        %v4542 = vsel %vm4478, -3e+38, %v4029
        %v4543 = vsel %vm4479, -3e+38, %v4030
        %v4544 = vsel %vm4480, -3e+38, %v4031
        %v4545 = vsel %vm4481, -3e+38, %v4032
        %v4546 = vsel %vm4482, -3e+38, %v4033
        %v4547 = vsel %vm4483, -3e+38, %v4034
        %v4548 = vsel %vm4484, -3e+38, %v4035
        %v4549 = vsel %vm4485, -3e+38, %v4036
        %v4550 = vsel %vm4486, -3e+38, %v4037
        %v4551 = vsel %vm4487, -3e+38, %v4038
        %v4552 = vsel %vm4488, -3e+38, %v4039
        %v4553 = vsel %vm4489, -3e+38, %v4040
        %v4554 = vsel %vm4490, -3e+38, %v4041
        %v4555 = vsel %vm4491, -3e+38, %v4042
        %v4556 = vsel %vm4492, -3e+38, %v4043
        %v4557 = vsel %vm4493, -3e+38, %v4044
        %v4558 = vsel %vm4494, -3e+38, %v4045
        %v4559 = vsel %vm4495, -3e+38, %v4046
        %v4560 = vsel %vm4496, -3e+38, %v4047
        %v4561 = vsel %vm4497, -3e+38, %v4048
        %v4562 = vsel %vm4498, -3e+38, %v4049
        %v4563 = vsel %vm4499, -3e+38, %v4050
        %v4564 = vsel %vm4500, -3e+38, %v4051
        %v4565 = vsel %vm4501, -3e+38, %v4052
        %v4566 = vsel %vm4502, -3e+38, %v4053
        %v4567 = vsel %vm4503, -3e+38, %v4054
        %v4568 = vsel %vm4504, -3e+38, %v4055
        %v4569 = vsel %vm4505, -3e+38, %v4056
        %v4570 = vsel %vm4506, -3e+38, %v4057
        %v4571 = vsel %vm4507, -3e+38, %v4058
        %v4572 = vsel %vm4508, -3e+38, %v4059
        %v4573 = vsel %vm4509, -3e+38, %v4060
        %v4574 = vsel %vm4510, -3e+38, %v4061
        %v4575 = vsel %vm4511, -3e+38, %v4062
        %v4576 = vsel %vm4512, -3e+38, %v4063
        %v4577 = vsel %vm4513, -3e+38, %v4064
        %v4578 = vsel %vm4514, -3e+38, %v4065
        %v4579 = vsel %vm4515, -3e+38, %v4066
        %v4580 = vsel %vm4516, -3e+38, %v4067
        %v4581 = vsel %vm4517, -3e+38, %v4068
        %v4582 = vsel %vm4518, -3e+38, %v4069
        %v4583 = vsel %vm4519, -3e+38, %v4070
        %v4584 = vsel %vm4520, -3e+38, %v4071
        %v4585 = vsel %vm4521, -3e+38, %v4072
        %v4586 = vsel %vm4522, -3e+38, %v4073
        %v4587 = vsel %vm4523, -3e+38, %v4074
        %v4588 = vsel %vm4524, -3e+38, %v4075
        %v4589 = vsel %vm4525, -3e+38, %v4076
        %v4590 = vsel %vm4526, -3e+38, %v4077
        %v4591 = vsel %vm4527, -3e+38, %v4078
        %v4592 = vsel %vm4528, -3e+38, %v4079
        %v4593 = vsel %vm4529, -3e+38, %v4080
        %v4594 = vsel %vm4530, -3e+38, %v4081
        %v4595 = vmax.f32 %v4531, %v4532
        %4596 = vmax.xlane.f32.xlu0 %v4595
        %v4597 = vpop.xlane.xlu0 %4596
        %v4598 = vmax.f32 %v4533, %v4534
        %4599 = vmax.xlane.f32.xlu0 %v4598
        %v4600 = vpop.xlane.xlu0 %4599
        %v4601 = vmax.f32 %v4535, %v4536
        %4602 = vmax.xlane.f32.xlu0 %v4601
        %v4603 = vpop.xlane.xlu0 %4602
        %v4604 = vmax.f32 %v4537, %v4538
        %4605 = vmax.xlane.f32.xlu0 %v4604
        %v4606 = vpop.xlane.xlu0 %4605
        %v4607 = vmax.f32 %v4539, %v4540
        %4608 = vmax.xlane.f32.xlu0 %v4607
        %v4609 = vpop.xlane.xlu0 %4608
        %v4610 = vmax.f32 %v4541, %v4542
        %4611 = vmax.xlane.f32.xlu0 %v4610
        %v4612 = vpop.xlane.xlu0 %4611
        %v4613 = vmax.f32 %v4543, %v4544
        %4614 = vmax.xlane.f32.xlu0 %v4613
        %v4615 = vpop.xlane.xlu0 %4614
        %v4616 = vmax.f32 %v4545, %v4546
        %4617 = vmax.xlane.f32.xlu0 %v4616
        %v4618 = vpop.xlane.xlu0 %4617
        %v4619 = vmax.f32 %v4547, %v4548
        %4620 = vmax.xlane.f32.xlu0 %v4619
        %v4621 = vpop.xlane.xlu0 %4620
        %v4622 = vmax.f32 %v4549, %v4550
        %4623 = vmax.xlane.f32.xlu0 %v4622
        %v4624 = vpop.xlane.xlu0 %4623
        %v4625 = vmax.f32 %v4551, %v4552
        %4626 = vmax.xlane.f32.xlu0 %v4625
        %v4627 = vpop.xlane.xlu0 %4626
        %v4628 = vmax.f32 %v4553, %v4554
        %4629 = vmax.xlane.f32.xlu0 %v4628
        %v4630 = vpop.xlane.xlu0 %4629
        %v4631 = vmax.f32 %v4555, %v4556
        %4632 = vmax.xlane.f32.xlu0 %v4631
        %v4633 = vpop.xlane.xlu0 %4632
        %v4634 = vmax.f32 %v4557, %v4558
        %4635 = vmax.xlane.f32.xlu0 %v4634
        %v4636 = vpop.xlane.xlu0 %4635
        %v4637 = vmax.f32 %v4559, %v4560
        %4638 = vmax.xlane.f32.xlu0 %v4637
        %v4639 = vpop.xlane.xlu0 %4638
        %v4640 = vmax.f32 %v4561, %v4562
        %4641 = vmax.xlane.f32.xlu0 %v4640
        %v4642 = vpop.xlane.xlu0 %4641
        %v4643 = vmax.f32 %v4563, %v4564
        %4644 = vmax.xlane.f32.xlu0 %v4643
        %v4645 = vpop.xlane.xlu0 %4644
        %v4646 = vmax.f32 %v4565, %v4566
        %4647 = vmax.xlane.f32.xlu0 %v4646
        %v4648 = vpop.xlane.xlu0 %4647
        %v4649 = vmax.f32 %v4567, %v4568
        %4650 = vmax.xlane.f32.xlu0 %v4649
        %v4651 = vpop.xlane.xlu0 %4650
        %v4652 = vmax.f32 %v4569, %v4570
        %4653 = vmax.xlane.f32.xlu0 %v4652
        %v4654 = vpop.xlane.xlu0 %4653
        %v4655 = vmax.f32 %v4571, %v4572
        %4656 = vmax.xlane.f32.xlu0 %v4655
        %v4657 = vpop.xlane.xlu0 %4656
        %v4658 = vmax.f32 %v4573, %v4574
        %4659 = vmax.xlane.f32.xlu0 %v4658
        %v4660 = vpop.xlane.xlu0 %4659
        %v4661 = vmax.f32 %v4575, %v4576
        %4662 = vmax.xlane.f32.xlu0 %v4661
        %v4663 = vpop.xlane.xlu0 %4662
        %v4664 = vmax.f32 %v4577, %v4578
        %4665 = vmax.xlane.f32.xlu0 %v4664
        %v4666 = vpop.xlane.xlu0 %4665
        %v4667 = vmax.f32 %v4579, %v4580
        %4668 = vmax.xlane.f32.xlu0 %v4667
        %v4669 = vpop.xlane.xlu0 %4668
        %v4670 = vmax.f32 %v4581, %v4582
        %4671 = vmax.xlane.f32.xlu0 %v4670
        %v4672 = vpop.xlane.xlu0 %4671
        %v4673 = vmax.f32 %v4583, %v4584
        %4674 = vmax.xlane.f32.xlu0 %v4673
        %v4675 = vpop.xlane.xlu0 %4674
        %v4676 = vmax.f32 %v4585, %v4586
        %4677 = vmax.xlane.f32.xlu0 %v4676
        %v4678 = vpop.xlane.xlu0 %4677
        %v4679 = vmax.f32 %v4587, %v4588
        %4680 = vmax.xlane.f32.xlu0 %v4679
        %v4681 = vpop.xlane.xlu0 %4680
        %v4682 = vmax.f32 %v4589, %v4590
        %4683 = vmax.xlane.f32.xlu0 %v4682
        %v4684 = vpop.xlane.xlu0 %4683
        %v4685 = vmax.f32 %v4591, %v4592
        %4686 = vmax.xlane.f32.xlu0 %v4685
        %v4687 = vpop.xlane.xlu0 %4686
        %v4688 = vmax.f32 %v4593, %v4594
        %4689 = vmax.xlane.f32.xlu0 %v4688
        %v4690 = vpop.xlane.xlu0 %4689
        %vm4691 = vcmp.eq.f32.partialorder %v4531, %v4597
        %vm4692 = vcmp.eq.f32.partialorder %v4532, %v4597
        %vm4693 = vcmp.eq.f32.partialorder %v4533, %v4600
        %vm4694 = vcmp.eq.f32.partialorder %v4534, %v4600
        %vm4695 = vcmp.eq.f32.partialorder %v4535, %v4603
        %vm4696 = vcmp.eq.f32.partialorder %v4536, %v4603
        %vm4697 = vcmp.eq.f32.partialorder %v4537, %v4606
        %vm4698 = vcmp.eq.f32.partialorder %v4538, %v4606
        %vm4699 = vcmp.eq.f32.partialorder %v4539, %v4609
        %vm4700 = vcmp.eq.f32.partialorder %v4540, %v4609
        %vm4701 = vcmp.eq.f32.partialorder %v4541, %v4612
        %vm4702 = vcmp.eq.f32.partialorder %v4542, %v4612
        %vm4703 = vcmp.eq.f32.partialorder %v4543, %v4615
        %vm4704 = vcmp.eq.f32.partialorder %v4544, %v4615
        %vm4705 = vcmp.eq.f32.partialorder %v4545, %v4618
        %vm4706 = vcmp.eq.f32.partialorder %v4546, %v4618
        %vm4707 = vcmp.eq.f32.partialorder %v4547, %v4621
        %vm4708 = vcmp.eq.f32.partialorder %v4548, %v4621
        %vm4709 = vcmp.eq.f32.partialorder %v4549, %v4624
        %vm4710 = vcmp.eq.f32.partialorder %v4550, %v4624
        %vm4711 = vcmp.eq.f32.partialorder %v4551, %v4627
        %vm4712 = vcmp.eq.f32.partialorder %v4552, %v4627
        %vm4713 = vcmp.eq.f32.partialorder %v4553, %v4630
        %vm4714 = vcmp.eq.f32.partialorder %v4554, %v4630
        %vm4715 = vcmp.eq.f32.partialorder %v4555, %v4633
        %vm4716 = vcmp.eq.f32.partialorder %v4556, %v4633
        %vm4717 = vcmp.eq.f32.partialorder %v4557, %v4636
        %vm4718 = vcmp.eq.f32.partialorder %v4558, %v4636
        %vm4719 = vcmp.eq.f32.partialorder %v4559, %v4639
        %vm4720 = vcmp.eq.f32.partialorder %v4560, %v4639
        %vm4721 = vcmp.eq.f32.partialorder %v4561, %v4642
        %vm4722 = vcmp.eq.f32.partialorder %v4562, %v4642
        %vm4723 = vcmp.eq.f32.partialorder %v4563, %v4645
        %vm4724 = vcmp.eq.f32.partialorder %v4564, %v4645
        %vm4725 = vcmp.eq.f32.partialorder %v4565, %v4648
        %vm4726 = vcmp.eq.f32.partialorder %v4566, %v4648
        %vm4727 = vcmp.eq.f32.partialorder %v4567, %v4651
        %vm4728 = vcmp.eq.f32.partialorder %v4568, %v4651
        %vm4729 = vcmp.eq.f32.partialorder %v4569, %v4654
        %vm4730 = vcmp.eq.f32.partialorder %v4570, %v4654
        %vm4731 = vcmp.eq.f32.partialorder %v4571, %v4657
        %vm4732 = vcmp.eq.f32.partialorder %v4572, %v4657
        %vm4733 = vcmp.eq.f32.partialorder %v4573, %v4660
        %vm4734 = vcmp.eq.f32.partialorder %v4574, %v4660
        %vm4735 = vcmp.eq.f32.partialorder %v4575, %v4663
        %vm4736 = vcmp.eq.f32.partialorder %v4576, %v4663
        %vm4737 = vcmp.eq.f32.partialorder %v4577, %v4666
        %vm4738 = vcmp.eq.f32.partialorder %v4578, %v4666
        %vm4739 = vcmp.eq.f32.partialorder %v4579, %v4669
        %vm4740 = vcmp.eq.f32.partialorder %v4580, %v4669
        %vm4741 = vcmp.eq.f32.partialorder %v4581, %v4672
        %vm4742 = vcmp.eq.f32.partialorder %v4582, %v4672
        %vm4743 = vcmp.eq.f32.partialorder %v4583, %v4675
        %vm4744 = vcmp.eq.f32.partialorder %v4584, %v4675
        %vm4745 = vcmp.eq.f32.partialorder %v4585, %v4678
        %vm4746 = vcmp.eq.f32.partialorder %v4586, %v4678
        %vm4747 = vcmp.eq.f32.partialorder %v4587, %v4681
        %vm4748 = vcmp.eq.f32.partialorder %v4588, %v4681
        %vm4749 = vcmp.eq.f32.partialorder %v4589, %v4684
        %vm4750 = vcmp.eq.f32.partialorder %v4590, %v4684
        %vm4751 = vcmp.eq.f32.partialorder %v4591, %v4687
        %vm4752 = vcmp.eq.f32.partialorder %v4592, %v4687
        %vm4753 = vcmp.eq.f32.partialorder %v4593, %v4690
        %vm4754 = vcmp.eq.f32.partialorder %v4594, %v4690
        %v4755 = vsel %vm4691, %v1002, 256.0
        %v4756 = vsel %vm4692, %v1003, 256.0
        %v4757 = vsel %vm4693, %v1002, 256.0
        %v4758 = vsel %vm4694, %v1003, 256.0
        %v4759 = vsel %vm4695, %v1002, 256.0
        %v4760 = vsel %vm4696, %v1003, 256.0
        %v4761 = vsel %vm4697, %v1002, 256.0
        %v4762 = vsel %vm4698, %v1003, 256.0
        %v4763 = vsel %vm4699, %v1002, 256.0
        %v4764 = vsel %vm4700, %v1003, 256.0
        %v4765 = vsel %vm4701, %v1002, 256.0
        %v4766 = vsel %vm4702, %v1003, 256.0
        %v4767 = vsel %vm4703, %v1002, 256.0
        %v4768 = vsel %vm4704, %v1003, 256.0
        %v4769 = vsel %vm4705, %v1002, 256.0
        %v4770 = vsel %vm4706, %v1003, 256.0
        %v4771 = vsel %vm4707, %v1002, 256.0
        %v4772 = vsel %vm4708, %v1003, 256.0
        %v4773 = vsel %vm4709, %v1002, 256.0
        %v4774 = vsel %vm4710, %v1003, 256.0
        %v4775 = vsel %vm4711, %v1002, 256.0
        %v4776 = vsel %vm4712, %v1003, 256.0
        %v4777 = vsel %vm4713, %v1002, 256.0
        %v4778 = vsel %vm4714, %v1003, 256.0
        %v4779 = vsel %vm4715, %v1002, 256.0
        %v4780 = vsel %vm4716, %v1003, 256.0
        %v4781 = vsel %vm4717, %v1002, 256.0
        %v4782 = vsel %vm4718, %v1003, 256.0
        %v4783 = vsel %vm4719, %v1002, 256.0
        %v4784 = vsel %vm4720, %v1003, 256.0
        %v4785 = vsel %vm4721, %v1002, 256.0
        %v4786 = vsel %vm4722, %v1003, 256.0
        %v4787 = vsel %vm4723, %v1002, 256.0
        %v4788 = vsel %vm4724, %v1003, 256.0
        %v4789 = vsel %vm4725, %v1002, 256.0
        %v4790 = vsel %vm4726, %v1003, 256.0
        %v4791 = vsel %vm4727, %v1002, 256.0
        %v4792 = vsel %vm4728, %v1003, 256.0
        %v4793 = vsel %vm4729, %v1002, 256.0
        %v4794 = vsel %vm4730, %v1003, 256.0
        %v4795 = vsel %vm4731, %v1002, 256.0
        %v4796 = vsel %vm4732, %v1003, 256.0
        %v4797 = vsel %vm4733, %v1002, 256.0
        %v4798 = vsel %vm4734, %v1003, 256.0
        %v4799 = vsel %vm4735, %v1002, 256.0
        %v4800 = vsel %vm4736, %v1003, 256.0
        %v4801 = vsel %vm4737, %v1002, 256.0
        %v4802 = vsel %vm4738, %v1003, 256.0
        %v4803 = vsel %vm4739, %v1002, 256.0
        %v4804 = vsel %vm4740, %v1003, 256.0
        %v4805 = vsel %vm4741, %v1002, 256.0
        %v4806 = vsel %vm4742, %v1003, 256.0
        %v4807 = vsel %vm4743, %v1002, 256.0
        %v4808 = vsel %vm4744, %v1003, 256.0
        %v4809 = vsel %vm4745, %v1002, 256.0
        %v4810 = vsel %vm4746, %v1003, 256.0
        %v4811 = vsel %vm4747, %v1002, 256.0
        %v4812 = vsel %vm4748, %v1003, 256.0
        %v4813 = vsel %vm4749, %v1002, 256.0
        %v4814 = vsel %vm4750, %v1003, 256.0
        %v4815 = vsel %vm4751, %v1002, 256.0
        %v4816 = vsel %vm4752, %v1003, 256.0
        %v4817 = vsel %vm4753, %v1002, 256.0
        %v4818 = vsel %vm4754, %v1003, 256.0
        %v4819 = vmin.f32 %v4755, %v4756
        %4820 = vmin.xlane.f32.xlu0 %v4819
        %v4821 = vpop.xlane.xlu0 %4820
        %v4822 = vmin.f32 %v4757, %v4758
        %4823 = vmin.xlane.f32.xlu0 %v4822
        %v4824 = vpop.xlane.xlu0 %4823
        %v4825 = vmin.f32 %v4759, %v4760
        %4826 = vmin.xlane.f32.xlu0 %v4825
        %v4827 = vpop.xlane.xlu0 %4826
        %v4828 = vmin.f32 %v4761, %v4762
        %4829 = vmin.xlane.f32.xlu0 %v4828
        %v4830 = vpop.xlane.xlu0 %4829
        %v4831 = vmin.f32 %v4763, %v4764
        %4832 = vmin.xlane.f32.xlu0 %v4831
        %v4833 = vpop.xlane.xlu0 %4832
        %v4834 = vmin.f32 %v4765, %v4766
        %4835 = vmin.xlane.f32.xlu0 %v4834
        %v4836 = vpop.xlane.xlu0 %4835
        %v4837 = vmin.f32 %v4767, %v4768
        %4838 = vmin.xlane.f32.xlu0 %v4837
        %v4839 = vpop.xlane.xlu0 %4838
        %v4840 = vmin.f32 %v4769, %v4770
        %4841 = vmin.xlane.f32.xlu0 %v4840
        %v4842 = vpop.xlane.xlu0 %4841
        %v4843 = vmin.f32 %v4771, %v4772
        %4844 = vmin.xlane.f32.xlu0 %v4843
        %v4845 = vpop.xlane.xlu0 %4844
        %v4846 = vmin.f32 %v4773, %v4774
        %4847 = vmin.xlane.f32.xlu0 %v4846
        %v4848 = vpop.xlane.xlu0 %4847
        %v4849 = vmin.f32 %v4775, %v4776
        %4850 = vmin.xlane.f32.xlu0 %v4849
        %v4851 = vpop.xlane.xlu0 %4850
        %v4852 = vmin.f32 %v4777, %v4778
        %4853 = vmin.xlane.f32.xlu0 %v4852
        %v4854 = vpop.xlane.xlu0 %4853
        %v4855 = vmin.f32 %v4779, %v4780
        %4856 = vmin.xlane.f32.xlu0 %v4855
        %v4857 = vpop.xlane.xlu0 %4856
        %v4858 = vmin.f32 %v4781, %v4782
        %4859 = vmin.xlane.f32.xlu0 %v4858
        %v4860 = vpop.xlane.xlu0 %4859
        %v4861 = vmin.f32 %v4783, %v4784
        %4862 = vmin.xlane.f32.xlu0 %v4861
        %v4863 = vpop.xlane.xlu0 %4862
        %v4864 = vmin.f32 %v4785, %v4786
        %4865 = vmin.xlane.f32.xlu0 %v4864
        %v4866 = vpop.xlane.xlu0 %4865
        %v4867 = vmin.f32 %v4787, %v4788
        %4868 = vmin.xlane.f32.xlu0 %v4867
        %v4869 = vpop.xlane.xlu0 %4868
        %v4870 = vmin.f32 %v4789, %v4790
        %4871 = vmin.xlane.f32.xlu0 %v4870
        %v4872 = vpop.xlane.xlu0 %4871
        %v4873 = vmin.f32 %v4791, %v4792
        %4874 = vmin.xlane.f32.xlu0 %v4873
        %v4875 = vpop.xlane.xlu0 %4874
        %v4876 = vmin.f32 %v4793, %v4794
        %4877 = vmin.xlane.f32.xlu0 %v4876
        %v4878 = vpop.xlane.xlu0 %4877
        %v4879 = vmin.f32 %v4795, %v4796
        %4880 = vmin.xlane.f32.xlu0 %v4879
        %v4881 = vpop.xlane.xlu0 %4880
        %v4882 = vmin.f32 %v4797, %v4798
        %4883 = vmin.xlane.f32.xlu0 %v4882
        %v4884 = vpop.xlane.xlu0 %4883
        %v4885 = vmin.f32 %v4799, %v4800
        %4886 = vmin.xlane.f32.xlu0 %v4885
        %v4887 = vpop.xlane.xlu0 %4886
        %v4888 = vmin.f32 %v4801, %v4802
        %4889 = vmin.xlane.f32.xlu0 %v4888
        %v4890 = vpop.xlane.xlu0 %4889
        %v4891 = vmin.f32 %v4803, %v4804
        %4892 = vmin.xlane.f32.xlu0 %v4891
        %v4893 = vpop.xlane.xlu0 %4892
        %v4894 = vmin.f32 %v4805, %v4806
        %4895 = vmin.xlane.f32.xlu0 %v4894
        %v4896 = vpop.xlane.xlu0 %4895
        %v4897 = vmin.f32 %v4807, %v4808
        %4898 = vmin.xlane.f32.xlu0 %v4897
        %v4899 = vpop.xlane.xlu0 %4898
        %v4900 = vmin.f32 %v4809, %v4810
        %4901 = vmin.xlane.f32.xlu0 %v4900
        %v4902 = vpop.xlane.xlu0 %4901
        %v4903 = vmin.f32 %v4811, %v4812
        %4904 = vmin.xlane.f32.xlu0 %v4903
        %v4905 = vpop.xlane.xlu0 %4904
        %v4906 = vmin.f32 %v4813, %v4814
        %4907 = vmin.xlane.f32.xlu0 %v4906
        %v4908 = vpop.xlane.xlu0 %4907
        %v4909 = vmin.f32 %v4815, %v4816
        %4910 = vmin.xlane.f32.xlu0 %v4909
        %v4911 = vpop.xlane.xlu0 %4910
        %v4912 = vmin.f32 %v4817, %v4818
        %4913 = vmin.xlane.f32.xlu0 %v4912
        %v4914 = vpop.xlane.xlu0 %4913
        %v4915 = vcvt.f32.s32.to.zero.pseudo %v4821
        %v4916 = vcvt.f32.s32.to.zero.pseudo %v4824
        %v4917 = vcvt.f32.s32.to.zero.pseudo %v4827
        %v4918 = vcvt.f32.s32.to.zero.pseudo %v4830
        %v4919 = vcvt.f32.s32.to.zero.pseudo %v4833
        %v4920 = vcvt.f32.s32.to.zero.pseudo %v4836
        %v4921 = vcvt.f32.s32.to.zero.pseudo %v4839
        %v4922 = vcvt.f32.s32.to.zero.pseudo %v4842
        %v4923 = vcvt.f32.s32.to.zero.pseudo %v4845
        %v4924 = vcvt.f32.s32.to.zero.pseudo %v4848
        %v4925 = vcvt.f32.s32.to.zero.pseudo %v4851
        %v4926 = vcvt.f32.s32.to.zero.pseudo %v4854
        %v4927 = vcvt.f32.s32.to.zero.pseudo %v4857
        %v4928 = vcvt.f32.s32.to.zero.pseudo %v4860
        %v4929 = vcvt.f32.s32.to.zero.pseudo %v4863
        %v4930 = vcvt.f32.s32.to.zero.pseudo %v4866
        %v4931 = vcvt.f32.s32.to.zero.pseudo %v4869
        %v4932 = vcvt.f32.s32.to.zero.pseudo %v4872
        %v4933 = vcvt.f32.s32.to.zero.pseudo %v4875
        %v4934 = vcvt.f32.s32.to.zero.pseudo %v4878
        %v4935 = vcvt.f32.s32.to.zero.pseudo %v4881
        %v4936 = vcvt.f32.s32.to.zero.pseudo %v4884
        %v4937 = vcvt.f32.s32.to.zero.pseudo %v4887
        %v4938 = vcvt.f32.s32.to.zero.pseudo %v4890
        %v4939 = vcvt.f32.s32.to.zero.pseudo %v4893
        %v4940 = vcvt.f32.s32.to.zero.pseudo %v4896
        %v4941 = vcvt.f32.s32.to.zero.pseudo %v4899
        %v4942 = vcvt.f32.s32.to.zero.pseudo %v4902
        %v4943 = vcvt.f32.s32.to.zero.pseudo %v4905
        %v4944 = vcvt.f32.s32.to.zero.pseudo %v4908
        %v4945 = vcvt.f32.s32.to.zero.pseudo %v4911
        %v4946 = vcvt.f32.s32.to.zero.pseudo %v4914
        %vm4947 = vcmask 64568
        %4948 = vst.msk [vmem:[%s226] sm:$0xff] %vm4947, %v4915
        %4949 = vst.msk [vmem:[%s226 + $0x8] sm:$0xff] %vm4947, %v4916
        %4950 = vst.msk [vmem:[%s226 + $0x10] sm:$0xff] %vm4947, %v4917
        %4951 = vst.msk [vmem:[%s226 + $0x18] sm:$0xff] %vm4947, %v4918
        %4952 = vst.msk [vmem:[%s226 + $0x20] sm:$0xff] %vm4947, %v4919
        %4953 = vst.msk [vmem:[%s226 + $0x28] sm:$0xff] %vm4947, %v4920
        %4954 = vst.msk [vmem:[%s226 + $0x30] sm:$0xff] %vm4947, %v4921
        %4955 = vst.msk [vmem:[%s226 + $0x38] sm:$0xff] %vm4947, %v4922
        %4956 = vst.msk [vmem:[%s226 + $0x40] sm:$0xff] %vm4947, %v4923
        %4957 = vst.msk [vmem:[%s226 + $0x48] sm:$0xff] %vm4947, %v4924
        %4958 = vst.msk [vmem:[%s226 + $0x50] sm:$0xff] %vm4947, %v4925
        %4959 = vst.msk [vmem:[%s226 + $0x58] sm:$0xff] %vm4947, %v4926
        %4960 = vst.msk [vmem:[%s226 + $0x60] sm:$0xff] %vm4947, %v4927
        %4961 = vst.msk [vmem:[%s226 + $0x68] sm:$0xff] %vm4947, %v4928
        %4962 = vst.msk [vmem:[%s226 + $0x70] sm:$0xff] %vm4947, %v4929
        %4963 = vst.msk [vmem:[%s226 + $0x78] sm:$0xff] %vm4947, %v4930
        %4964 = vst.msk [vmem:[%s226 + $0x80] sm:$0xff] %vm4947, %v4931
        %4965 = vst.msk [vmem:[%s226 + $0x88] sm:$0xff] %vm4947, %v4932
        %4966 = vst.msk [vmem:[%s226 + $0x90] sm:$0xff] %vm4947, %v4933
        %4967 = vst.msk [vmem:[%s226 + $0x98] sm:$0xff] %vm4947, %v4934
        %4968 = vst.msk [vmem:[%s226 + $0xa0] sm:$0xff] %vm4947, %v4935
        %4969 = vst.msk [vmem:[%s226 + $0xa8] sm:$0xff] %vm4947, %v4936
        %4970 = vst.msk [vmem:[%s226 + $0xb0] sm:$0xff] %vm4947, %v4937
        %4971 = vst.msk [vmem:[%s226 + $0xb8] sm:$0xff] %vm4947, %v4938
        %4972 = vst.msk [vmem:[%s226 + $0xc0] sm:$0xff] %vm4947, %v4939
        %4973 = vst.msk [vmem:[%s226 + $0xc8] sm:$0xff] %vm4947, %v4940
        %4974 = vst.msk [vmem:[%s226 + $0xd0] sm:$0xff] %vm4947, %v4941
        %4975 = vst.msk [vmem:[%s226 + $0xd8] sm:$0xff] %vm4947, %v4942
        %4976 = vst.msk [vmem:[%s226 + $0xe0] sm:$0xff] %vm4947, %v4943
        %4977 = vst.msk [vmem:[%s226 + $0xe8] sm:$0xff] %vm4947, %v4944
        %4978 = vst.msk [vmem:[%s226 + $0xf0] sm:$0xff] %vm4947, %v4945
        %4979 = vst.msk [vmem:[%s226 + $0xf8] sm:$0xff] %vm4947, %v4946
        %s4980 = smul.u32 32, %s24
        %p4981 = scmp.lt.s32.totalorder %s23, 1
        %s4982 = scalar_select %p4981, %s23, 1
        %p4983 = scmp.lt.s32.totalorder %s4980, 31
        %s4984 = scalar_select %p4983, %s4980, 31
        %s4985 = smul.addr %s4982, 32
        %s4986 = sadd.s32 %s4984, %s4985
        %s4987 = smul.addr %s4986, 8
        %s4988 = scalar_lea.vmem %s2, %s4987
        // Predicated region
        $region37: #{tpu_custom_call.1} parent=27 // pred_check
          %p4989 = pneg %p105
        $region38: #{tpu_custom_call.1} parent=27 // pred_check_branch
          %4991 = sbr.rel (%p4989) target = $region40
        $region39: #{tpu_custom_call.1} parent=27 // pred_region
          %s4992 = smul.u32 32, %s24
        $region40: #{tpu_custom_call.1} parent=27 // pred_fallthru
          _
      $region28: #{tpu_custom_call.1} parent=5 // pred_fallthru
        _
      %p4993 = scmp.le.s32.totalorder 2, %s14
      // Predicated region
      $region41: #{tpu_custom_call.1} parent=5 // pred_check
        %p4994 = pneg %p4993
      $region42: #{tpu_custom_call.1} parent=5 // pred_check_branch
        %4996 = sbr.rel (%p4994) target = $region44
      $region43: #{tpu_custom_call.1} parent=5 // pred_region
        %s4997 = ssub.s32 %s14, 2
        // Predicated region
        $region45: #{tpu_custom_call.1} parent=43 // pred_check
          %p4998 = pneg %p111
        $region46: #{tpu_custom_call.1} parent=43 // pred_check_branch
          %5000 = sbr.rel (%p4998) target = $region48
        $region47: #{tpu_custom_call.1} parent=43 // pred_region
          %s5001 = smul.u32 32, %s26
          %p5002 = scmp.lt.s32.totalorder %s25, 1
          %s5003 = scalar_select %p5002, %s25, 1
          %p5004 = scmp.lt.s32.totalorder %s5001, 31
          %s5005 = scalar_select %p5004, %s5001, 31
          %s5006 = smul.addr %s5003, 32
          %s5007 = sadd.s32 %s5005, %s5006
          %s5008 = smul.addr %s5007, 8
          %s5009 = scalar_lea.vmem %s2, %s5008
        $region48: #{tpu_custom_call.1} parent=43 // pred_fallthru
          _
      $region44: #{tpu_custom_call.1} parent=5 // pred_fallthru
        _
    $region6: #{tpu_custom_call.1} parent=1 // loop_footer
      %s18 = sadd.s32 1, %s14
    $region7: #{tpu_custom_call.1} parent=1 // loop_footer_branch
      %13 = sbr.rel target = $region3
    $region8: #{tpu_custom_call.1} parent=1 // loop_exit
      _
    %5010 = vsyncpa [#allocation3], 1
    %s5011 = scalar_lea.sflag [#allocation3], 1
    %5012 = vsyncpa %s5011, 1
    %5013 = vsyncpa [#allocation5], 1
    %s5014 = scalar_lea.sflag [#allocation5], 1
    %5015 = vsyncpa %s5014, 1

</llo_original>
